<compile_context>
chip_gen: v7x
topology: tpu7x:2x2x1
jax: 0.10.0
libtpu: 0.0.40
codegen_flags: <defaults>
</compile_context>

<pallas_src>
import functools

import numpy as np
import jax
import jax.numpy as jnp
from jax import lax
from jax.experimental import pallas as pl
from jax.experimental.pallas import tpu as pltpu


_VMEM_BUDGET = 40 << 20   # target working-set (leaves headroom in v7x's 64 MiB VMEM)
_VMEM_LIMIT = 48 << 20    # scoped-VMEM cap handed to Mosaic (< 64 MiB physical on v7x)


def _pick_tile(full, want):
    """Lane-tile size: the full dim if it fits, else largest multiple of 128 <= want."""
    if full <= want:
        return full
    return max((want // 128) * 128, 128)


def _vmem_bytes(cin, hd, n_taps, tm, mx_bytes):
    """Rough per-step VMEM footprint (double-buffered I/O + resident weights/bias)."""
    f32 = 4
    io = 2 * (n_taps * (cin + hd) + (cin + hd)) * tm * f32      # data in/out tiles (x2 buffers)
    bias = 2 * 7 * hd * tm * f32                                # resident bias tiles
    weights = 2 * 6 * hd * n_taps * (cin + hd) * mx_bytes       # resident weight tiles
    inter = 16 * hd * tm * f32                                  # gate pre-activations / temps
    return io + bias + weights + inter


def _lru_kernel(*refs, hd, cin, n_taps, mx_dtype, prec):
    """One lane tile: all channels on sublanes, flattened spatial positions on lanes.

    Ref order: x taps (n_taps), h taps (n_taps), W_ih_rz, W_hh_rz, W_ih_c, W_hh_c,
               b_rz, b_ic, b_h, new_input, new_hidden.
    """
    xs = refs[:n_taps]
    hs = refs[n_taps:2 * n_taps]
    (wih_rz_ref, whh_rz_ref, wih_c_ref, whh_c_ref,
     brz_ref, bic_ref, bh_ref, new_in_ref, new_h_ref) = refs[2 * n_taps:]

    f32 = jnp.float32

    # Bias is folded into the accumulator init (b_ih rows are pre-split / pre-broadcast).
    g_rz = brz_ref[...]                 # (4*hd, tm): [r_i, r_h, z_i, z_h] pre-activations
    gi_c = bic_ref[...]                 # (2*hd, tm): [ii_c, ih_c]
    gh_c = jnp.zeros_like(gi_c)         # (2*hd, tm): [hi_c, hh_c]  (conv_hh has no bias)

    # Per-tap accumulated MXU dots; tap k of the cyclic depth conv pairs with the
    # data stream whose index_map reads depth (d - 1 + k) mod D.
    for k in range(n_taps):
        xk = xs[k][...].astype(mx_dtype)
        hk = hs[k][...].astype(mx_dtype)
        w_ih_rz_k = wih_rz_ref[k * 4 * hd:(k + 1) * 4 * hd, :]
        w_hh_rz_k = whh_rz_ref[k * 4 * hd:(k + 1) * 4 * hd, :]
        w_ih_c_k = wih_c_ref[k * 2 * hd:(k + 1) * 2 * hd, :]
        w_hh_c_k = whh_c_ref[k * 2 * hd:(k + 1) * 2 * hd, :]
        g_rz = g_rz + jnp.dot(w_ih_rz_k, xk, preferred_element_type=f32, precision=prec)
        g_rz = g_rz + jnp.dot(w_hh_rz_k, hk, preferred_element_type=f32, precision=prec)
        gi_c = gi_c + jnp.dot(w_ih_c_k, xk, preferred_element_type=f32, precision=prec)
        gh_c = gh_c + jnp.dot(w_hh_c_k, hk, preferred_element_type=f32, precision=prec)

    reset_i = jax.nn.sigmoid(g_rz[0 * hd:1 * hd, :])     # sigmoid(ii_r + hi_r)
    reset_h = jax.nn.sigmoid(g_rz[1 * hd:2 * hd, :])     # sigmoid(ih_r + hh_r)
    update_i = jax.nn.sigmoid(g_rz[2 * hd:3 * hd, :])    # sigmoid(ii_z + hi_z)
    update_h = jax.nn.sigmoid(g_rz[3 * hd:4 * hd, :])    # sigmoid(ih_z + hh_z)

    ii_c = gi_c[:hd, :]
    ih_c = gi_c[hd:, :]
    hi_c = gh_c[:hd, :]
    hh_c = gh_c[hd:, :]

    cand_i = jnp.tanh(ih_c + reset_h * (hh_c + bh_ref[...]))
    cand_h = jnp.tanh(reset_i * ii_c + hi_c)

    # The center tap IS the original input/hidden slab (no value slicing needed).
    x_c = xs[n_taps // 2][...].astype(f32)
    h_c = hs[n_taps // 2][...].astype(f32)

    new_in_ref[...] = (update_i * cand_h + (1.0 - update_i) * x_c).astype(new_in_ref.dtype)
    new_h_ref[...] = (update_h * cand_i + (1.0 - update_h) * h_c).astype(new_h_ref.dtype)


def lattice_recurrent_unit(x, hidden, w_ih, b_ih, w_hh, bias_h, *,
                           temporal=False, tile_lanes=1024,
                           matmul_dtype=jnp.bfloat16):
    """Pallas implementation of LatticeRecurrentUnit.forward.

    x:      (N, C, D, H, W)           (C == hidden_size, as the module requires)
    hidden: (N, Hd, D, H, W)
    w_ih:   (6*Hd, C, kD, 1, 1), b_ih: (6*Hd,)
    w_hh:   (6*Hd, Hd, kD, 1, 1)
    bias_h: any shape with Hd elements (torch keeps it as (1, Hd, 1, 1, 1))
    returns (new_input, new_hidden), each (N, Hd, D, H, W).
    """
    N, Cin, D, Hs, Ws = x.shape
    Hd = int(bias_h.size)
    kD = 3 if temporal else 1
    assert hidden.shape == (N, Hd, D, Hs, Ws)
    assert Cin == Hd, "candidate_h mixes with input -> input_size must equal hidden_size"
    assert Cin % 8 == 0 and Hd % 8 == 0, "channel counts must be sublane (8) aligned"
    assert w_ih.shape == (6 * Hd, Cin, kD, 1, 1)
    assert w_hh.shape == (6 * Hd, Hd, kD, 1, 1)

    out_dtype = x.dtype
    mx = np.dtype(matmul_dtype)
    prec = lax.Precision.HIGHEST if mx == np.dtype(np.float32) else None

    # --- weights: tap-major row stacking, r/z-fused vs c-gate groups (tiny, one-time) ---
    wih_t = jnp.transpose(w_ih[:, :, :, 0, 0], (2, 0, 1))   # (kD, 6Hd, Cin)
    whh_t = jnp.transpose(w_hh[:, :, :, 0, 0], (2, 0, 1))   # (kD, 6Hd, Hd)
    wih_rz = wih_t[:, :4 * Hd].reshape(kD * 4 * Hd, Cin).astype(mx)
    wih_c = wih_t[:, 4 * Hd:].reshape(kD * 2 * Hd, Cin).astype(mx)
    whh_rz = whh_t[:, :4 * Hd].reshape(kD * 4 * Hd, Hd).astype(mx)
    whh_c = whh_t[:, 4 * Hd:].reshape(kD * 2 * Hd, Hd).astype(mx)

    b_rz = b_ih[:4 * Hd].astype(jnp.float32)
    b_ic = b_ih[4 * Hd:].astype(jnp.float32)
    b_hh = bias_h.reshape(-1).astype(jnp.float32)

    if not temporal:
        # Layout (N, C, M): batch on the grid, channels on sublanes, M = D*H*W on lanes.
        M = D * Hs * Ws
        tm = _pick_tile(M, tile_lanes)
        while _vmem_bytes(Cin, Hd, kD, tm, mx.itemsize) > _VMEM_BUDGET:
            new_tm = _pick_tile(M, tm // 2)
            if new_tm >= tm:
                break
            tm = new_tm
        grid = (N, pl.cdiv(M, tm))
        dims_sem = ("parallel", "parallel")
        const = lambda n, i: (0, 0)

        x_in = x.reshape(N, Cin, M)          # free reshape, no transpose
        h_in = hidden.reshape(N, Hd, M)
        data_inputs = (x_in, h_in)
        data_specs = [
            pl.BlockSpec((pl.Squeezed(), Cin, tm), lambda n, i: (n, 0, i)),
            pl.BlockSpec((pl.Squeezed(), Hd, tm), lambda n, i: (n, 0, i)),
        ]
        out_specs = [
            pl.BlockSpec((pl.Squeezed(), Cin, tm), lambda n, i: (n, 0, i)),
            pl.BlockSpec((pl.Squeezed(), Hd, tm), lambda n, i: (n, 0, i)),
        ]
        out_shapes = (jax.ShapeDtypeStruct((N, Cin, M), out_dtype),
                      jax.ShapeDtypeStruct((N, Hd, M), out_dtype))
    else:
        # Layout (N, C, D, HW): cyclic 3-tap depth conv expressed purely via index_maps.
        HW = Hs * Ws
        tm = _pick_tile(HW, tile_lanes)
        while _vmem_bytes(Cin, Hd, kD, tm, mx.itemsize) > _VMEM_BUDGET:
            new_tm = _pick_tile(HW, tm // 2)
            if new_tm >= tm:
                break
            tm = new_tm
        grid = (N, D, pl.cdiv(HW, tm))
        dims_sem = ("parallel", "parallel", "parallel")
        const = lambda n, d, i: (0, 0)

        x_in = x.reshape(N, Cin, D, HW)      # free reshape; no roll/concat copies
        h_in = hidden.reshape(N, Hd, D, HW)
        data_inputs = (x_in, x_in, x_in, h_in, h_in, h_in)

        def tap_spec(chan, k):
            # tap k of the cyclic depth conv reads depth slice (d - 1 + k) mod D
            return pl.BlockSpec(
                (pl.Squeezed(), chan, pl.Squeezed(), tm),
                lambda n, d, i, _k=k: (n, 0, (d + _k - 1 + D) % D, i))

        data_specs = ([tap_spec(Cin, k) for k in range(kD)] +
                      [tap_spec(Hd, k) for k in range(kD)])
        out_specs = [
            pl.BlockSpec((pl.Squeezed(), Cin, pl.Squeezed(), tm),
                         lambda n, d, i: (n, 0, d, i)),
            pl.BlockSpec((pl.Squeezed(), Hd, pl.Squeezed(), tm),
                         lambda n, d, i: (n, 0, d, i)),
        ]
        out_shapes = (jax.ShapeDtypeStruct((N, Cin, D, HW), out_dtype),
                      jax.ShapeDtypeStruct((N, Hd, D, HW), out_dtype))

    # Biases pre-broadcast once to the lane tile: resident in VMEM, so the kernel's
    # bias handling is a plain elementwise accumulator init (no lane-1 block, no
    # per-step lane broadcast).
    brz_b = jnp.broadcast_to(b_rz[:, None], (4 * Hd, tm))
    bic_b = jnp.broadcast_to(b_ic[:, None], (2 * Hd, tm))
    bh_b = jnp.broadcast_to(b_hh[:, None], (Hd, tm))

    # Constant index_maps -> fetched once, stay resident across all grid steps.
    wb_inputs = (wih_rz, whh_rz, wih_c, whh_c, brz_b, bic_b, bh_b)
    wb_specs = [
        pl.BlockSpec((kD * 4 * Hd, Cin), const),
        pl.BlockSpec((kD * 4 * Hd, Hd), const),
        pl.BlockSpec((kD * 2 * Hd, Cin), const),
        pl.BlockSpec((kD * 2 * Hd, Hd), const),
        pl.BlockSpec((4 * Hd, tm), const),
        pl.BlockSpec((2 * Hd, tm), const),
        pl.BlockSpec((Hd, tm), const),
    ]

    kernel = functools.partial(_lru_kernel, hd=Hd, cin=Cin, n_taps=kD,
                               mx_dtype=mx, prec=prec)

    grid_spec = pltpu.PrefetchScalarGridSpec(
        num_scalar_prefetch=0,
        grid=grid,
        in_specs=list(data_specs) + wb_specs,
        out_specs=out_specs,
    )

    new_in, new_h = pl.pallas_call(
        kernel,
        out_shape=out_shapes,
        grid_spec=grid_spec,
        compiler_params=pltpu.CompilerParams(
            dimension_semantics=dims_sem,
            vmem_limit_bytes=_VMEM_LIMIT),
    )(*data_inputs, *wb_inputs)

    # Outputs come back in the same (N, C, ...) layout -> only free reshapes here.
    return (new_in.reshape(N, Cin, D, Hs, Ws),
            new_h.reshape(N, Hd, D, Hs, Ws))


def lattice_recurrent_unit_ref(x, hidden, w_ih, b_ih, w_hh, bias_h, temporal=False):
    """Pure-JAX reference matching the torch module semantics (XLA conv path)."""
    Hd = int(bias_h.size)

    def conv(inp, w, b):
        if temporal:
            inp = jnp.concatenate([inp[:, :, -1:], inp, inp[:, :, :1]], axis=2)
        out = lax.conv_general_dilated(
            inp, w, window_strides=(1, 1, 1), padding='VALID',
            dimension_numbers=('NCDHW', 'OIDHW', 'NCDHW'),
            precision=lax.Precision.HIGHEST)
        if b is not None:
            out = out + b.reshape(1, -1, 1, 1, 1)
        return out

    gi = conv(x, w_ih, b_ih)
    gh = conv(hidden, w_hh, None)
    ii_r, ih_r, ii_z, ih_z, ii_c, ih_c = jnp.split(gi, 6, axis=1)
    hi_r, hh_r, hi_z, hh_z, hi_c, hh_c = jnp.split(gh, 6, axis=1)
    reset_i = jax.nn.sigmoid(ii_r + hi_r)
    reset_h = jax.nn.sigmoid(ih_r + hh_r)
    update_i = jax.nn.sigmoid(ii_z + hi_z)
    update_h = jax.nn.sigmoid(ih_z + hh_z)
    bh = bias_h.reshape(1, Hd, 1, 1, 1)
    cand_i = jnp.tanh(ih_c + reset_h * (hh_c + bh))
    cand_h = jnp.tanh(reset_i * ii_c + hi_c)
    return (update_i * cand_h + (1.0 - update_i) * x,
            update_h * cand_i + (1.0 - update_h) * hidden)


if __name__ == "__main__":
    # Small shapes: batch=2, input_size=hidden_size=32, depth=4, spatial 8x8.
    N, C, Hd, D, Hs, Ws = 2, 32, 32, 4, 8, 8
    key = jax.random.PRNGKey(0)
    ks = jax.random.split(key, 6)

    x = jax.random.normal(ks[0], (N, C, D, Hs, Ws), dtype=jnp.float32)
    hidden = jax.random.normal(ks[1], (N, Hd, D, Hs, Ws), dtype=jnp.float32)

    # f32 matmul path checked tightly (structural exactness); bf16 MXU path (the
    # fast default) checked at a tolerance appropriate for bf16 operands.
    configs = [
        (False, jnp.float32, 2e-3),
        (True, jnp.float32, 2e-3),
        (False, jnp.bfloat16, 3e-2),
        (True, jnp.bfloat16, 3e-2),
    ]
    for temporal, mx, tol in configs:
        kD = 3 if temporal else 1
        w_ih = 0.1 * jax.random.normal(ks[2], (6 * Hd, C, kD, 1, 1), dtype=jnp.float32)
        w_hh = 0.1 * jax.random.normal(ks[3], (6 * Hd, Hd, kD, 1, 1), dtype=jnp.float32)
        b_ih = 0.1 * jax.random.normal(ks[4], (6 * Hd,), dtype=jnp.float32)
        bias_h = 0.1 * jax.random.normal(ks[5], (1, Hd, 1, 1, 1), dtype=jnp.float32)

        new_in, new_h = lattice_recurrent_unit(
            x, hidden, w_ih, b_ih, w_hh, bias_h,
            temporal=temporal, matmul_dtype=mx)
        new_in, new_h = jax.block_until_ready((new_in, new_h))

        ref_in, ref_h = lattice_recurrent_unit_ref(
            x, hidden, w_ih, b_ih, w_hh, bias_h, temporal=temporal)

        assert new_in.shape == (N, C, D, Hs, Ws)
        assert new_h.shape == (N, Hd, D, Hs, Ws)
        np.testing.assert_allclose(np.asarray(new_in), np.asarray(ref_in),
                                   rtol=tol, atol=tol)
        np.testing.assert_allclose(np.asarray(new_h), np.asarray(ref_h),
                                   rtol=tol, atol=tol)

    print("KERNEL_OK")
</pallas_src>

<mosaic_0001>
module attributes {stable_mosaic.version = 11 : i64} {
  func.func @_lru_kernel(%arg0: i32, %arg1: i32, %arg2: memref<1x32x256xf32, #tpu.memory_space<vmem>>, %arg3: memref<1x32x256xf32, #tpu.memory_space<vmem>>, %arg4: memref<128x32xf32, #tpu.memory_space<vmem>>, %arg5: memref<128x32xf32, #tpu.memory_space<vmem>>, %arg6: memref<64x32xf32, #tpu.memory_space<vmem>>, %arg7: memref<64x32xf32, #tpu.memory_space<vmem>>, %arg8: memref<128x256xf32, #tpu.memory_space<vmem>>, %arg9: memref<64x256xf32, #tpu.memory_space<vmem>>, %arg10: memref<32x256xf32, #tpu.memory_space<vmem>>, %arg11: memref<1x32x256xf32, #tpu.memory_space<vmem>>, %arg12: memref<1x32x256xf32, #tpu.memory_space<vmem>>) attributes {dimension_semantics = [#tpu.dimension_semantics<parallel>, #tpu.dimension_semantics<parallel>], iteration_bounds = array<i64: 2, 1>, scalar_prefetch = 0 : i64, scratch_operands = 0 : i64, tpu.core_type = #tpu.core_type<tc>, window_params = [{transform_indices = @transform_0, window_bounds = array<i64: 1, 32, 256>}, {transform_indices = @transform_1, window_bounds = array<i64: 1, 32, 256>}, {pipeline_mode = #tpu.pipeline_mode<synchronous>, transform_indices = @transform_2, window_bounds = array<i64: 128, 32>}, {pipeline_mode = #tpu.pipeline_mode<synchronous>, transform_indices = @transform_3, window_bounds = array<i64: 128, 32>}, {pipeline_mode = #tpu.pipeline_mode<synchronous>, transform_indices = @transform_4, window_bounds = array<i64: 64, 32>}, {pipeline_mode = #tpu.pipeline_mode<synchronous>, transform_indices = @transform_5, window_bounds = array<i64: 64, 32>}, {pipeline_mode = #tpu.pipeline_mode<synchronous>, transform_indices = @transform_6, window_bounds = array<i64: 128, 256>}, {pipeline_mode = #tpu.pipeline_mode<synchronous>, transform_indices = @transform_7, window_bounds = array<i64: 64, 256>}, {pipeline_mode = #tpu.pipeline_mode<synchronous>, transform_indices = @transform_8, window_bounds = array<i64: 32, 256>}, {transform_indices = @transform_9, window_bounds = array<i64: 1, 32, 256>}, {transform_indices = @transform_10, window_bounds = array<i64: 1, 32, 256>}]} {
    %c0 = arith.constant 0 : index
    %c0_0 = arith.constant 0 : index
    %0 = vector.load %arg8[%c0, %c0_0] : memref<128x256xf32, #tpu.memory_space<vmem>>, vector<128x256xf32>
    %c0_1 = arith.constant 0 : index
    %c0_2 = arith.constant 0 : index
    %1 = vector.load %arg9[%c0_1, %c0_2] : memref<64x256xf32, #tpu.memory_space<vmem>>, vector<64x256xf32>
    %cst = arith.constant 0.000000e+00 : f32
    %2 = vector.broadcast %cst : f32 to vector<64x256xf32>
    %c0_3 = arith.constant 0 : index
    %c0_4 = arith.constant 0 : index
    %c0_5 = arith.constant 0 : index
    %3 = vector.load %arg2[%c0_3, %c0_4, %c0_5] : memref<1x32x256xf32, #tpu.memory_space<vmem>>, vector<1x32x256xf32>
    %4 = vector.shape_cast %3 : vector<1x32x256xf32> to vector<32x256xf32>
    %c0_6 = arith.constant 0 : index
    %c0_7 = arith.constant 0 : index
    %c0_8 = arith.constant 0 : index
    %5 = vector.load %arg3[%c0_6, %c0_7, %c0_8] : memref<1x32x256xf32, #tpu.memory_space<vmem>>, vector<1x32x256xf32>
    %6 = vector.shape_cast %5 : vector<1x32x256xf32> to vector<32x256xf32>
    %c0_9 = arith.constant 0 : index
    %c0_10 = arith.constant 0 : index
    %7 = vector.load %arg4[%c0_9, %c0_10] : memref<128x32xf32, #tpu.memory_space<vmem>>, vector<128x32xf32>
    %c0_11 = arith.constant 0 : index
    %c0_12 = arith.constant 0 : index
    %8 = vector.load %arg5[%c0_11, %c0_12] : memref<128x32xf32, #tpu.memory_space<vmem>>, vector<128x32xf32>
    %c0_13 = arith.constant 0 : index
    %c0_14 = arith.constant 0 : index
    %9 = vector.load %arg6[%c0_13, %c0_14] : memref<64x32xf32, #tpu.memory_space<vmem>>, vector<64x32xf32>
    %c0_15 = arith.constant 0 : index
    %c0_16 = arith.constant 0 : index
    %10 = vector.load %arg7[%c0_15, %c0_16] : memref<64x32xf32, #tpu.memory_space<vmem>>, vector<64x32xf32>
    %cst_17 = arith.constant dense<0.000000e+00> : vector<128x256xf32>
    %11 = tpu.matmul %7, %4, %cst_17 {dimension_numbers = #tpu.dot_dimension_numbers<[1], [0], [0], [1], [0, 0, 1, 1], [], []>, precision = #tpu.contract_precision<fp32>} : vector<128x32xf32>, vector<32x256xf32>, vector<128x256xf32> -> vector<128x256xf32>
    %12 = arith.addf %0, %11 : vector<128x256xf32>
    %cst_18 = arith.constant dense<0.000000e+00> : vector<128x256xf32>
    %13 = tpu.matmul %8, %6, %cst_18 {dimension_numbers = #tpu.dot_dimension_numbers<[1], [0], [0], [1], [0, 0, 1, 1], [], []>, precision = #tpu.contract_precision<fp32>} : vector<128x32xf32>, vector<32x256xf32>, vector<128x256xf32> -> vector<128x256xf32>
    %14 = arith.addf %12, %13 : vector<128x256xf32>
    %cst_19 = arith.constant dense<0.000000e+00> : vector<64x256xf32>
    %15 = tpu.matmul %9, %4, %cst_19 {dimension_numbers = #tpu.dot_dimension_numbers<[1], [0], [0], [1], [0, 0, 1, 1], [], []>, precision = #tpu.contract_precision<fp32>} : vector<64x32xf32>, vector<32x256xf32>, vector<64x256xf32> -> vector<64x256xf32>
    %16 = arith.addf %1, %15 : vector<64x256xf32>
    %cst_20 = arith.constant dense<0.000000e+00> : vector<64x256xf32>
    %17 = tpu.matmul %10, %6, %cst_20 {dimension_numbers = #tpu.dot_dimension_numbers<[1], [0], [0], [1], [0, 0, 1, 1], [], []>, precision = #tpu.contract_precision<fp32>} : vector<64x32xf32>, vector<32x256xf32>, vector<64x256xf32> -> vector<64x256xf32>
    %18 = arith.addf %2, %17 : vector<64x256xf32>
    %19 = vector.extract_strided_slice %14 {offsets = [0, 0], sizes = [32, 256], strides = [1, 1]} : vector<128x256xf32> to vector<32x256xf32>
    %20 = arith.negf %19 : vector<32x256xf32>
    %21 = math.exp %20 : vector<32x256xf32>
    %cst_21 = arith.constant 1.000000e+00 : f32
    %22 = vector.broadcast %cst_21 : f32 to vector<32x256xf32>
    %23 = arith.addf %22, %21 : vector<32x256xf32>
    %24 = arith.divf %22, %23 : vector<32x256xf32>
    %25 = vector.extract_strided_slice %14 {offsets = [32, 0], sizes = [32, 256], strides = [1, 1]} : vector<128x256xf32> to vector<32x256xf32>
    %26 = arith.negf %25 : vector<32x256xf32>
    %27 = math.exp %26 : vector<32x256xf32>
    %cst_22 = arith.constant 1.000000e+00 : f32
    %28 = vector.broadcast %cst_22 : f32 to vector<32x256xf32>
    %29 = arith.addf %28, %27 : vector<32x256xf32>
    %30 = arith.divf %28, %29 : vector<32x256xf32>
    %31 = vector.extract_strided_slice %14 {offsets = [64, 0], sizes = [32, 256], strides = [1, 1]} : vector<128x256xf32> to vector<32x256xf32>
    %32 = arith.negf %31 : vector<32x256xf32>
    %33 = math.exp %32 : vector<32x256xf32>
    %cst_23 = arith.constant 1.000000e+00 : f32
    %34 = vector.broadcast %cst_23 : f32 to vector<32x256xf32>
    %35 = arith.addf %34, %33 : vector<32x256xf32>
    %36 = arith.divf %34, %35 : vector<32x256xf32>
    %37 = vector.extract_strided_slice %14 {offsets = [96, 0], sizes = [32, 256], strides = [1, 1]} : vector<128x256xf32> to vector<32x256xf32>
    %38 = arith.negf %37 : vector<32x256xf32>
    %39 = math.exp %38 : vector<32x256xf32>
    %cst_24 = arith.constant 1.000000e+00 : f32
    %40 = vector.broadcast %cst_24 : f32 to vector<32x256xf32>
    %41 = arith.addf %40, %39 : vector<32x256xf32>
    %42 = arith.divf %40, %41 : vector<32x256xf32>
    %43 = vector.extract_strided_slice %16 {offsets = [0, 0], sizes = [32, 256], strides = [1, 1]} : vector<64x256xf32> to vector<32x256xf32>
    %44 = vector.extract_strided_slice %16 {offsets = [32, 0], sizes = [32, 256], strides = [1, 1]} : vector<64x256xf32> to vector<32x256xf32>
    %45 = vector.extract_strided_slice %18 {offsets = [0, 0], sizes = [32, 256], strides = [1, 1]} : vector<64x256xf32> to vector<32x256xf32>
    %46 = vector.extract_strided_slice %18 {offsets = [32, 0], sizes = [32, 256], strides = [1, 1]} : vector<64x256xf32> to vector<32x256xf32>
    %c0_25 = arith.constant 0 : index
    %c0_26 = arith.constant 0 : index
    %47 = vector.load %arg10[%c0_25, %c0_26] : memref<32x256xf32, #tpu.memory_space<vmem>>, vector<32x256xf32>
    %48 = arith.addf %46, %47 : vector<32x256xf32>
    %49 = arith.mulf %30, %48 : vector<32x256xf32>
    %50 = arith.addf %44, %49 : vector<32x256xf32>
    %51 = math.tanh %50 : vector<32x256xf32>
    %52 = arith.mulf %24, %43 : vector<32x256xf32>
    %53 = arith.addf %52, %45 : vector<32x256xf32>
    %54 = math.tanh %53 : vector<32x256xf32>
    %c0_27 = arith.constant 0 : index
    %c0_28 = arith.constant 0 : index
    %c0_29 = arith.constant 0 : index
    %55 = vector.load %arg2[%c0_27, %c0_28, %c0_29] : memref<1x32x256xf32, #tpu.memory_space<vmem>>, vector<1x32x256xf32>
    %56 = vector.shape_cast %55 : vector<1x32x256xf32> to vector<32x256xf32>
    %c0_30 = arith.constant 0 : index
    %c0_31 = arith.constant 0 : index
    %c0_32 = arith.constant 0 : index
    %57 = vector.load %arg3[%c0_30, %c0_31, %c0_32] : memref<1x32x256xf32, #tpu.memory_space<vmem>>, vector<1x32x256xf32>
    %58 = vector.shape_cast %57 : vector<1x32x256xf32> to vector<32x256xf32>
    %59 = arith.mulf %36, %54 : vector<32x256xf32>
    %cst_33 = arith.constant 1.000000e+00 : f32
    %60 = vector.broadcast %cst_33 : f32 to vector<32x256xf32>
    %61 = arith.subf %60, %36 : vector<32x256xf32>
    %62 = arith.mulf %61, %56 : vector<32x256xf32>
    %63 = arith.addf %59, %62 : vector<32x256xf32>
    %c0_34 = arith.constant 0 : index
    %c0_35 = arith.constant 0 : index
    %c0_36 = arith.constant 0 : index
    %64 = vector.load %arg11[%c0_34, %c0_35, %c0_36] : memref<1x32x256xf32, #tpu.memory_space<vmem>>, vector<1x32x256xf32>
    %65 = vector.shape_cast %64 : vector<1x32x256xf32> to vector<32x256xf32>
    %66 = vector.shape_cast %63 : vector<32x256xf32> to vector<1x32x256xf32>
    tpu.vector_store %arg11[%c0_34, %c0_35, %c0_36], %66 {strides = array<i32>} : memref<1x32x256xf32, #tpu.memory_space<vmem>>, vector<1x32x256xf32>,
    %67 = arith.mulf %42, %51 : vector<32x256xf32>
    %cst_37 = arith.constant 1.000000e+00 : f32
    %68 = vector.broadcast %cst_37 : f32 to vector<32x256xf32>
    %69 = arith.subf %68, %42 : vector<32x256xf32>
    %70 = arith.mulf %69, %58 : vector<32x256xf32>
    %71 = arith.addf %67, %70 : vector<32x256xf32>
    %c0_38 = arith.constant 0 : index
    %c0_39 = arith.constant 0 : index
    %c0_40 = arith.constant 0 : index
    %72 = vector.load %arg12[%c0_38, %c0_39, %c0_40] : memref<1x32x256xf32, #tpu.memory_space<vmem>>, vector<1x32x256xf32>
    %73 = vector.shape_cast %72 : vector<1x32x256xf32> to vector<32x256xf32>
    %74 = vector.shape_cast %71 : vector<32x256xf32> to vector<1x32x256xf32>
    tpu.vector_store %arg12[%c0_38, %c0_39, %c0_40], %74 {strides = array<i32>} : memref<1x32x256xf32, #tpu.memory_space<vmem>>, vector<1x32x256xf32>,
    return
  }
  func.func @transform_0(%arg0: i32, %arg1: i32) -> (i32, i32, i32) {
    %c0_i32 = arith.constant 0 : i32
    %c0_i32_0 = arith.constant 0 : i32
    return %arg0, %c0_i32, %arg1 : i32, i32, i32
  }
  func.func @transform_1(%arg0: i32, %arg1: i32) -> (i32, i32, i32) {
    %c0_i32 = arith.constant 0 : i32
    %c0_i32_0 = arith.constant 0 : i32
    return %arg0, %c0_i32, %arg1 : i32, i32, i32
  }
  func.func @transform_2(%arg0: i32, %arg1: i32) -> (i32, i32) {
    %c0_i32 = arith.constant 0 : i32
    %c0_i32_0 = arith.constant 0 : i32
    %c0_i32_1 = arith.constant 0 : i32
    return %c0_i32, %c0_i32_0 : i32, i32
  }
  func.func @transform_3(%arg0: i32, %arg1: i32) -> (i32, i32) {
    %c0_i32 = arith.constant 0 : i32
    %c0_i32_0 = arith.constant 0 : i32
    %c0_i32_1 = arith.constant 0 : i32
    return %c0_i32, %c0_i32_0 : i32, i32
  }
  func.func @transform_4(%arg0: i32, %arg1: i32) -> (i32, i32) {
    %c0_i32 = arith.constant 0 : i32
    %c0_i32_0 = arith.constant 0 : i32
    %c0_i32_1 = arith.constant 0 : i32
    return %c0_i32, %c0_i32_0 : i32, i32
  }
  func.func @transform_5(%arg0: i32, %arg1: i32) -> (i32, i32) {
    %c0_i32 = arith.constant 0 : i32
    %c0_i32_0 = arith.constant 0 : i32
    %c0_i32_1 = arith.constant 0 : i32
    return %c0_i32, %c0_i32_0 : i32, i32
  }
  func.func @transform_6(%arg0: i32, %arg1: i32) -> (i32, i32) {
    %c0_i32 = arith.constant 0 : i32
    %c0_i32_0 = arith.constant 0 : i32
    %c0_i32_1 = arith.constant 0 : i32
    return %c0_i32, %c0_i32_0 : i32, i32
  }
  func.func @transform_7(%arg0: i32, %arg1: i32) -> (i32, i32) {
    %c0_i32 = arith.constant 0 : i32
    %c0_i32_0 = arith.constant 0 : i32
    %c0_i32_1 = arith.constant 0 : i32
    return %c0_i32, %c0_i32_0 : i32, i32
  }
  func.func @transform_8(%arg0: i32, %arg1: i32) -> (i32, i32) {
    %c0_i32 = arith.constant 0 : i32
    %c0_i32_0 = arith.constant 0 : i32
    %c0_i32_1 = arith.constant 0 : i32
    return %c0_i32, %c0_i32_0 : i32, i32
  }
  func.func @transform_9(%arg0: i32, %arg1: i32) -> (i32, i32, i32) {
    %c0_i32 = arith.constant 0 : i32
    %c0_i32_0 = arith.constant 0 : i32
    return %arg0, %c0_i32, %arg1 : i32, i32, i32
  }
  func.func @transform_10(%arg0: i32, %arg1: i32) -> (i32, i32, i32) {
    %c0_i32 = arith.constant 0 : i32
    %c0_i32_0 = arith.constant 0 : i32
    return %arg0, %c0_i32, %arg1 : i32, i32, i32
  }
}

</mosaic_0001>

<llo_original>
// kernel: tpu_custom_call.1
$region0: #{tpu_custom_call.1}
  #allocation0 [shape = 'u32[]', space=smem, size = 0x4, offset = 0x4, fixed_abs, tag = 'smem constant byte address 0x4 - core index']
  #allocation1 [shape = 'u32[144,128]{1,0:T(1,128)}', space=vmem, size = 0x12000, scoped, tag = 'internal scratch']
  %s0 = inlined_call_operand.vmem [shape: f32[2,32,256], index: 0, kind: input, shape index: {}]
  %s1 = inlined_call_operand.vmem [shape: f32[2,32,256], index: 1, kind: input, shape index: {}]
  %s2 = inlined_call_operand.vmem [shape: f32[128,32], index: 2, kind: input, shape index: {}]
  %s3 = inlined_call_operand.vmem [shape: f32[128,32], index: 3, kind: input, shape index: {}]
  %s4 = inlined_call_operand.vmem [shape: f32[64,32], index: 4, kind: input, shape index: {}]
  %s5 = inlined_call_operand.vmem [shape: f32[64,32], index: 5, kind: input, shape index: {}]
  %s6 = inlined_call_operand.vmem [shape: f32[128,256], index: 6, kind: input, shape index: {}]
  %s7 = inlined_call_operand.hbm [shape: f32[64,256], index: 7, kind: input, shape index: {}]
  %s8 = inlined_call_operand.hbm [shape: f32[32,256], index: 8, kind: input, shape index: {}]
  %s9 = inlined_call_operand.hbm [shape: f32[2,32,256], index: 9, kind: output, shape index: {0}]
  %s10 = inlined_call_operand.hbm [shape: f32[2,32,256], index: 10, kind: output, shape index: {1}]
  %11 = xla_tuple %s9, %s10
  %s12 = sld [smem:[#allocation0]]
  $region85: #{tpu_custom_call.1} parent=0
    _
  %s14 = ssub.s32 1, %s12
  %s15 = scalar_select 0, %s14, %s12
  $region1: #{tpu_custom_call.1} parent=0
    #allocation2 [shape = 'u8[65536]{0}', space=vmem, size = 0x10000, scoped, tag = 'input window, operand 7, single buffered']
    #allocation3 [shape = 's32[2]{0}', space=sflag, size = 0x8, scoped, tag = 'scoped memory for tpu_custom_call.1']
    #allocation4 [shape = 's32[2]{0}', space=sflag, size = 0x8, scoped, tag = 'scoped memory for tpu_custom_call.1']
    #allocation5 [shape = 'u8[32768]{0}', space=vmem, size = 0x8000, scoped, tag = 'input window, operand 8, single buffered']
    #allocation6 [shape = 's32[1]{0}', space=sflag, size = 0x4, scoped, tag = 'scoped memory for tpu_custom_call.1']
    #allocation7 [shape = 'u8[65536]{0}', space=vmem, size = 0x10000, scoped, tag = 'output window, operand 0']
    #allocation8 [shape = 'u8[65536]{0}', space=vmem, size = 0x10000, scoped, tag = 'output window, operand 1']
    #allocation9 [shape = 's32[2]{0}', space=sflag, size = 0x8, scoped, tag = 'scoped memory for tpu_custom_call.1']
    %16 = vsyncpa [#allocation3], 0
    %17 = vsyncpa [#allocation6], 0
    %18 = vsyncpa [#allocation4], 0
    %s19 = scalar_lea.sflag [#allocation4], 1
    %20 = vsyncpa %s19, 0
    %21 = vsyncpa [#allocation9], 0
    %s22 = scalar_lea.sflag [#allocation9], 1
    %23 = vsyncpa %s22, 0
    loop: start=0, step=1, limit=4
    $region2: #{tpu_custom_call.1} parent=1 // loop_pre_header
      _
    $region3: #{tpu_custom_call.1} parent=1 // loop_header
      %s25 = sphi 0, %s29
      %p26 = scmp.ge.s32.totalorder %s25, 4
      %s32 = sphi 0, %s44
      %s33 = sphi 0, %s40
      %s34 = sphi 0, %s32
      %s35 = sphi 0, %s33
      %s36 = sphi 0, %s34
      %s37 = sphi 0, %s35
      %s49 = sphi 0, %s51
      %s52 = sphi 0, %s49
      %s53 = sphi 0, %s52
      %s69 = sphi 0, %s53
      %s77 = sphi 0, %s79
      %s80 = sphi 0, %s77
      %s81 = sphi 0, %s80
      %s97 = sphi 0, %s81
      %s101 = sphi 0, %s101
      %s103 = sphi 0, %s101
      %s104 = sphi 0, %s103
      %s118 = sphi 0, %s104
      %s122 = sphi 0, %s122
      %s124 = sphi 0, %s122
      %s125 = sphi 0, %s124
      %s139 = sphi 0, %s125
      %s143 = sphi 0, %s143
      %s145 = sphi 0, %s143
      %s146 = sphi 0, %s145
      %s160 = sphi 0, %s146
      %s164 = sphi 0, %s164
      %s166 = sphi 0, %s164
      %s167 = sphi 0, %s166
      %s181 = sphi 0, %s167
      %s185 = sphi 0, %s185
      %s187 = sphi 0, %s185
      %s188 = sphi 0, %s187
      %s202 = sphi 0, %s188
      %s206 = sphi 0, %s206
      %s208 = sphi 0, %s206
      %s209 = sphi 0, %s208
      %s223 = sphi 0, %s209
      %s227 = sphi 0, %s227
      %s229 = sphi 0, %s227
      %s230 = sphi 0, %s229
      %s244 = sphi 0, %s230
      %s252 = sphi 0, %s254
      %s255 = sphi 0, %s252
      %s256 = sphi 0, %s255
      %s272 = sphi 0, %s256
      %s280 = sphi 0, %s282
      %s283 = sphi 0, %s280
      %s284 = sphi 0, %s283
      %s300 = sphi 0, %s284
    $region4: #{tpu_custom_call.1} parent=1 // loop_header_branch
      %28 = sbr.rel (%p26) target = $region8
    $region5: #{tpu_custom_call.1} parent=1 // loop_body
      %s30 = ssub.s32 %s25, 1
      %s31 = ssub.s32 %s25, 2
      %s38 = sadd.s32 1, %s33
      %p39 = scmp.ge.s32.totalorder %s38, 1
      %s40 = scalar_select %p39, 0, %s38
      %s41 = sadd.s32 1, %s32
      %s42 = scalar_select %p39, %s41, %s32
      %p43 = scmp.ge.s32.totalorder %s42, 2
      %s44 = scalar_select %p43, 0, %s42
      %s45 = ssub.s32 %s32, %s44
      %s46 = ssub.s32 %s33, %s40
      %s47 = sor.u32 %s45, %s46
      %p48 = scmp.eq.s32.totalorder %s47, 0
      %s50 = sadd.s32 %s49, 1
      %s51 = scalar_select %p48, %s49, %s50
      %p54 = pneg %p48
      %p55 = scmp.eq.s32.totalorder %s25, 1
      %p56 = por %p54, %p55
      %p57 = scmp.ne.s32.totalorder %s49, %s52
      %p58 = scmp.eq.s32.totalorder %s25, 0
      %p59 = por %p57, %p58
      %p60 = scmp.ne.s32.totalorder %s49, %s52
      %p61 = scmp.eq.s32.totalorder %s30, 1
      %p62 = por %p60, %p61
      %p63 = scmp.ne.s32.totalorder %s52, %s53
      %p64 = scmp.eq.s32.totalorder %s30, 0
      %p65 = por %p63, %p64
      %p66 = scmp.ne.s32.totalorder %s52, %s53
      %p67 = scmp.eq.s32.totalorder %s31, 1
      %p68 = por %p66, %p67
      %p70 = scmp.ne.s32.totalorder %s53, %s69
      %p71 = scmp.eq.s32.totalorder %s31, 0
      %p72 = por %p70, %p71
      %s73 = ssub.s32 %s32, %s44
      %s74 = ssub.s32 %s33, %s40
      %s75 = sor.u32 %s73, %s74
      %p76 = scmp.eq.s32.totalorder %s75, 0
      %s78 = sadd.s32 %s77, 1
      %s79 = scalar_select %p76, %s77, %s78
      %p82 = pneg %p76
      %p83 = scmp.eq.s32.totalorder %s25, 1
      %p84 = por %p82, %p83
      %p85 = scmp.ne.s32.totalorder %s77, %s80
      %p86 = scmp.eq.s32.totalorder %s25, 0
      %p87 = por %p85, %p86
      %p88 = scmp.ne.s32.totalorder %s77, %s80
      %p89 = scmp.eq.s32.totalorder %s30, 1
      %p90 = por %p88, %p89
      %p91 = scmp.ne.s32.totalorder %s80, %s81
      %p92 = scmp.eq.s32.totalorder %s30, 0
      %p93 = por %p91, %p92
      %p94 = scmp.ne.s32.totalorder %s80, %s81
      %p95 = scmp.eq.s32.totalorder %s31, 1
      %p96 = por %p94, %p95
      %p98 = scmp.ne.s32.totalorder %s81, %s97
      %p99 = scmp.eq.s32.totalorder %s31, 0
      %p100 = por %p98, %p99
      %s102 = sadd.s32 %s101, 1
      %p105 = scmp.eq.s32.totalorder %s25, 1
      %p106 = scmp.ne.s32.totalorder %s101, %s103
      %p107 = scmp.eq.s32.totalorder %s25, 0
      %p108 = por %p106, %p107
      %p109 = scmp.ne.s32.totalorder %s101, %s103
      %p110 = scmp.eq.s32.totalorder %s30, 1
      %p111 = por %p109, %p110
      %p112 = scmp.ne.s32.totalorder %s103, %s104
      %p113 = scmp.eq.s32.totalorder %s30, 0
      %p114 = por %p112, %p113
      %p115 = scmp.ne.s32.totalorder %s103, %s104
      %p116 = scmp.eq.s32.totalorder %s31, 1
      %p117 = por %p115, %p116
      %p119 = scmp.ne.s32.totalorder %s104, %s118
      %p120 = scmp.eq.s32.totalorder %s31, 0
      %p121 = por %p119, %p120
      %s123 = sadd.s32 %s122, 1
      %p126 = scmp.eq.s32.totalorder %s25, 1
      %p127 = scmp.ne.s32.totalorder %s122, %s124
      %p128 = scmp.eq.s32.totalorder %s25, 0
      %p129 = por %p127, %p128
      %p130 = scmp.ne.s32.totalorder %s122, %s124
      %p131 = scmp.eq.s32.totalorder %s30, 1
      %p132 = por %p130, %p131
      %p133 = scmp.ne.s32.totalorder %s124, %s125
      %p134 = scmp.eq.s32.totalorder %s30, 0
      %p135 = por %p133, %p134
      %p136 = scmp.ne.s32.totalorder %s124, %s125
      %p137 = scmp.eq.s32.totalorder %s31, 1
      %p138 = por %p136, %p137
      %p140 = scmp.ne.s32.totalorder %s125, %s139
      %p141 = scmp.eq.s32.totalorder %s31, 0
      %p142 = por %p140, %p141
      %s144 = sadd.s32 %s143, 1
      %p147 = scmp.eq.s32.totalorder %s25, 1
      %p148 = scmp.ne.s32.totalorder %s143, %s145
      %p149 = scmp.eq.s32.totalorder %s25, 0
      %p150 = por %p148, %p149
      %p151 = scmp.ne.s32.totalorder %s143, %s145
      %p152 = scmp.eq.s32.totalorder %s30, 1
      %p153 = por %p151, %p152
      %p154 = scmp.ne.s32.totalorder %s145, %s146
      %p155 = scmp.eq.s32.totalorder %s30, 0
      %p156 = por %p154, %p155
      %p157 = scmp.ne.s32.totalorder %s145, %s146
      %p158 = scmp.eq.s32.totalorder %s31, 1
      %p159 = por %p157, %p158
      %p161 = scmp.ne.s32.totalorder %s146, %s160
      %p162 = scmp.eq.s32.totalorder %s31, 0
      %p163 = por %p161, %p162
      %s165 = sadd.s32 %s164, 1
      %p168 = scmp.eq.s32.totalorder %s25, 1
      %p169 = scmp.ne.s32.totalorder %s164, %s166
      %p170 = scmp.eq.s32.totalorder %s25, 0
      %p171 = por %p169, %p170
      %p172 = scmp.ne.s32.totalorder %s164, %s166
      %p173 = scmp.eq.s32.totalorder %s30, 1
      %p174 = por %p172, %p173
      %p175 = scmp.ne.s32.totalorder %s166, %s167
      %p176 = scmp.eq.s32.totalorder %s30, 0
      %p177 = por %p175, %p176
      %p178 = scmp.ne.s32.totalorder %s166, %s167
      %p179 = scmp.eq.s32.totalorder %s31, 1
      %p180 = por %p178, %p179
      %p182 = scmp.ne.s32.totalorder %s167, %s181
      %p183 = scmp.eq.s32.totalorder %s31, 0
      %p184 = por %p182, %p183
      %s186 = sadd.s32 %s185, 1
      %p189 = scmp.eq.s32.totalorder %s25, 1
      %p190 = scmp.ne.s32.totalorder %s185, %s187
      %p191 = scmp.eq.s32.totalorder %s25, 0
      %p192 = por %p190, %p191
      %p193 = scmp.ne.s32.totalorder %s185, %s187
      %p194 = scmp.eq.s32.totalorder %s30, 1
      %p195 = por %p193, %p194
      %p196 = scmp.ne.s32.totalorder %s187, %s188
      %p197 = scmp.eq.s32.totalorder %s30, 0
      %p198 = por %p196, %p197
      %p199 = scmp.ne.s32.totalorder %s187, %s188
      %p200 = scmp.eq.s32.totalorder %s31, 1
      %p201 = por %p199, %p200
      %p203 = scmp.ne.s32.totalorder %s188, %s202
      %p204 = scmp.eq.s32.totalorder %s31, 0
      %p205 = por %p203, %p204
      %s207 = sadd.s32 %s206, 1
      %p210 = scmp.eq.s32.totalorder %s25, 1
      %p211 = scmp.ne.s32.totalorder %s206, %s208
      %p212 = scmp.eq.s32.totalorder %s25, 0
      %p213 = por %p211, %p212
      %p214 = scmp.ne.s32.totalorder %s206, %s208
      %p215 = scmp.eq.s32.totalorder %s30, 1
      %p216 = por %p214, %p215
      %p217 = scmp.ne.s32.totalorder %s208, %s209
      %p218 = scmp.eq.s32.totalorder %s30, 0
      %p219 = por %p217, %p218
      %p220 = scmp.ne.s32.totalorder %s208, %s209
      %p221 = scmp.eq.s32.totalorder %s31, 1
      %p222 = por %p220, %p221
      %p224 = scmp.ne.s32.totalorder %s209, %s223
      %p225 = scmp.eq.s32.totalorder %s31, 0
      %p226 = por %p224, %p225
      %s228 = sadd.s32 %s227, 1
      %p231 = scmp.eq.s32.totalorder %s25, 1
      %p232 = scmp.ne.s32.totalorder %s227, %s229
      %p233 = scmp.eq.s32.totalorder %s25, 0
      %p234 = por %p232, %p233
      %p235 = scmp.ne.s32.totalorder %s227, %s229
      %p236 = scmp.eq.s32.totalorder %s30, 1
      %p237 = por %p235, %p236
      %p238 = scmp.ne.s32.totalorder %s229, %s230
      %p239 = scmp.eq.s32.totalorder %s30, 0
      %p240 = por %p238, %p239
      %p241 = scmp.ne.s32.totalorder %s229, %s230
      %p242 = scmp.eq.s32.totalorder %s31, 1
      %p243 = por %p241, %p242
      %p245 = scmp.ne.s32.totalorder %s230, %s244
      %p246 = scmp.eq.s32.totalorder %s31, 0
      %p247 = por %p245, %p246
      %s248 = ssub.s32 %s32, %s44
      %s249 = ssub.s32 %s33, %s40
      %s250 = sor.u32 %s248, %s249
      %p251 = scmp.eq.s32.totalorder %s250, 0
      %s253 = sadd.s32 %s252, 1
      %s254 = scalar_select %p251, %s252, %s253
      %p257 = pneg %p251
      %p258 = scmp.eq.s32.totalorder %s25, 1
      %p259 = por %p257, %p258
      %p260 = scmp.ne.s32.totalorder %s252, %s255
      %p261 = scmp.eq.s32.totalorder %s25, 0
      %p262 = por %p260, %p261
      %p263 = scmp.ne.s32.totalorder %s252, %s255
      %p264 = scmp.eq.s32.totalorder %s30, 1
      %p265 = por %p263, %p264
      %p266 = scmp.ne.s32.totalorder %s255, %s256
      %p267 = scmp.eq.s32.totalorder %s30, 0
      %p268 = por %p266, %p267
      %p269 = scmp.ne.s32.totalorder %s255, %s256
      %p270 = scmp.eq.s32.totalorder %s31, 1
      %p271 = por %p269, %p270
      %p273 = scmp.ne.s32.totalorder %s256, %s272
      %p274 = scmp.eq.s32.totalorder %s31, 0
      %p275 = por %p273, %p274
      %s276 = ssub.s32 %s32, %s44
      %s277 = ssub.s32 %s33, %s40
      %s278 = sor.u32 %s276, %s277
      %p279 = scmp.eq.s32.totalorder %s278, 0
      %s281 = sadd.s32 %s280, 1
      %s282 = scalar_select %p279, %s280, %s281
      %p285 = pneg %p279
      %p286 = scmp.eq.s32.totalorder %s25, 1
      %p287 = por %p285, %p286
      %p288 = scmp.ne.s32.totalorder %s280, %s283
      %p289 = scmp.eq.s32.totalorder %s25, 0
      %p290 = por %p288, %p289
      %p291 = scmp.ne.s32.totalorder %s280, %s283
      %p292 = scmp.eq.s32.totalorder %s30, 1
      %p293 = por %p291, %p292
      %p294 = scmp.ne.s32.totalorder %s283, %s284
      %p295 = scmp.eq.s32.totalorder %s30, 0
      %p296 = por %p294, %p295
      %p297 = scmp.ne.s32.totalorder %s283, %s284
      %p298 = scmp.eq.s32.totalorder %s31, 1
      %p299 = por %p297, %p298
      %p301 = scmp.ne.s32.totalorder %s284, %s300
      %p302 = scmp.eq.s32.totalorder %s31, 0
      %p303 = por %p301, %p302
      %p304 = scmp.le.s32.totalorder 1, %s25
      %p305 = scmp.lt.s32.totalorder %s25, 3
      %p306 = pnand %p304, %p305
      %p307 = pneg %p306
      // Predicated region
      $region9: #{tpu_custom_call.1} parent=5 // pred_check
        _
      $region10: #{tpu_custom_call.1} parent=5 // pred_check_branch
        %309 = sbr.rel (%p306) target = $region12
      $region11: #{tpu_custom_call.1} parent=5 // pred_region
        %s310 = ssub.s32 %s25, 1
        // Predicated region
        $region13: #{tpu_custom_call.1} parent=11 // pred_check
          %p311 = pneg %p114
        $region14: #{tpu_custom_call.1} parent=11 // pred_check_branch
          %313 = sbr.rel (%p311) target = $region16
        $region15: #{tpu_custom_call.1} parent=11 // pred_region
          _
        $region16: #{tpu_custom_call.1} parent=11 // pred_fallthru
          _
        // Predicated region
        $region17: #{tpu_custom_call.1} parent=11 // pred_check
          %p314 = pneg %p135
        $region18: #{tpu_custom_call.1} parent=11 // pred_check_branch
          %316 = sbr.rel (%p314) target = $region20
        $region19: #{tpu_custom_call.1} parent=11 // pred_region
          _
        $region20: #{tpu_custom_call.1} parent=11 // pred_fallthru
          _
        // Predicated region
        $region21: #{tpu_custom_call.1} parent=11 // pred_check
          %p317 = pneg %p156
        $region22: #{tpu_custom_call.1} parent=11 // pred_check_branch
          %319 = sbr.rel (%p317) target = $region24
        $region23: #{tpu_custom_call.1} parent=11 // pred_region
          _
        $region24: #{tpu_custom_call.1} parent=11 // pred_fallthru
          _
        // Predicated region
        $region25: #{tpu_custom_call.1} parent=11 // pred_check
          %p320 = pneg %p177
        $region26: #{tpu_custom_call.1} parent=11 // pred_check_branch
          %322 = sbr.rel (%p320) target = $region28
        $region27: #{tpu_custom_call.1} parent=11 // pred_region
          _
        $region28: #{tpu_custom_call.1} parent=11 // pred_fallthru
          _
        // Predicated region
        $region29: #{tpu_custom_call.1} parent=11 // pred_check
          %p323 = pneg %p198
        $region30: #{tpu_custom_call.1} parent=11 // pred_check_branch
          %325 = sbr.rel (%p323) target = $region32
        $region31: #{tpu_custom_call.1} parent=11 // pred_region
          _
        $region32: #{tpu_custom_call.1} parent=11 // pred_fallthru
          _
        // Predicated region
        $region33: #{tpu_custom_call.1} parent=11 // pred_check
          %p326 = pneg %p219
        $region34: #{tpu_custom_call.1} parent=11 // pred_check_branch
          %328 = sbr.rel (%p326) target = $region36
        $region35: #{tpu_custom_call.1} parent=11 // pred_region
          %s330 = ssub.s32 2048, 2048
          %331 = vsyncadd [#allocation3], %s330
          %s332 = sshll.u32 [#allocation2], 4
          %s333 = int_to_ptr.vmem [resolvable:$true] %s332
          %338 = dma.hbm_to_vmem [thread:$0]  %s7, 2048, %s333, [#allocation3], 256, 256, 16
        $region36: #{tpu_custom_call.1} parent=11 // pred_fallthru
          _
        // Predicated region
        $region37: #{tpu_custom_call.1} parent=11 // pred_check
          %p339 = pneg %p240
        $region38: #{tpu_custom_call.1} parent=11 // pred_check_branch
          %341 = sbr.rel (%p339) target = $region40
        $region39: #{tpu_custom_call.1} parent=11 // pred_region
          %s343 = ssub.s32 1024, 1024
          %344 = vsyncadd [#allocation6], %s343
          %s345 = sshll.u32 [#allocation5], 4
          %s346 = int_to_ptr.vmem [resolvable:$true] %s345
          %351 = dma.hbm_to_vmem [thread:$0]  %s8, 1024, %s346, [#allocation6], 256, 256, 16
        $region40: #{tpu_custom_call.1} parent=11 // pred_fallthru
          _
      $region12: #{tpu_custom_call.1} parent=5 // pred_fallthru
        _
      %p352 = scmp.lt.s32.totalorder %s25, 2
      // Predicated region
      $region41: #{tpu_custom_call.1} parent=5 // pred_check
        %p353 = pneg %p352
      $region42: #{tpu_custom_call.1} parent=5 // pred_check_branch
        %355 = sbr.rel (%p353) target = $region44
      $region43: #{tpu_custom_call.1} parent=5 // pred_region
        // Predicated region
        $region45: #{tpu_custom_call.1} parent=43 // pred_check
          %p356 = pneg %p59
        $region46: #{tpu_custom_call.1} parent=43 // pred_check_branch
          %358 = sbr.rel (%p356) target = $region48
        $region47: #{tpu_custom_call.1} parent=43 // pred_region
          %s359 = smul.u32 2, %s33
          %p360 = scmp.lt.s32.totalorder %s32, 1
          %s361 = scalar_select %p360, %s32, 1
          %p362 = scmp.lt.s32.totalorder %s359, 1
          %s363 = scalar_select %p362, %s359, 1
          %s364 = smul.addr %s361, 8
          %s365 = sadd.s32 %s363, %s364
          %s366 = smul.addr %s365, 8
          %s367 = scalar_lea.vmem %s0, %s366
          %s368 = smul.u32 2, %s33
        $region48: #{tpu_custom_call.1} parent=43 // pred_fallthru
          _
        // Predicated region
        $region49: #{tpu_custom_call.1} parent=43 // pred_check
          %p369 = pneg %p87
        $region50: #{tpu_custom_call.1} parent=43 // pred_check_branch
          %371 = sbr.rel (%p369) target = $region52
        $region51: #{tpu_custom_call.1} parent=43 // pred_region
          %s372 = smul.u32 2, %s33
          %p373 = scmp.lt.s32.totalorder %s32, 1
          %s374 = scalar_select %p373, %s32, 1
          %p375 = scmp.lt.s32.totalorder %s372, 1
          %s376 = scalar_select %p375, %s372, 1
          %s377 = smul.addr %s374, 8
          %s378 = sadd.s32 %s376, %s377
          %s379 = smul.addr %s378, 8
          %s380 = scalar_lea.vmem %s1, %s379
          %s381 = smul.u32 2, %s33
        $region52: #{tpu_custom_call.1} parent=43 // pred_fallthru
          _
      $region44: #{tpu_custom_call.1} parent=5 // pred_fallthru
        _
      %p382 = scmp.le.s32.totalorder 1, %s25
      %p383 = scmp.lt.s32.totalorder %s25, 3
      %p384 = pnand %p382, %p383
      %p385 = pneg %p384
      // Predicated region
      $region53: #{tpu_custom_call.1} parent=5 // pred_check
        _
      $region54: #{tpu_custom_call.1} parent=5 // pred_check_branch
        %387 = sbr.rel (%p384) target = $region56
      $region55: #{tpu_custom_call.1} parent=5 // pred_region
        %s388 = ssub.s32 %s25, 1
        // Predicated region
        $region57: #{tpu_custom_call.1} parent=55 // pred_check
          %p389 = pneg %p219
        $region58: #{tpu_custom_call.1} parent=55 // pred_check_branch
          %391 = sbr.rel (%p389) target = $region60
        $region59: #{tpu_custom_call.1} parent=55 // pred_region
          %392 = dma.done [#allocation3], 2048
        $region60: #{tpu_custom_call.1} parent=55 // pred_fallthru
          _
        // Predicated region
        $region61: #{tpu_custom_call.1} parent=55 // pred_check
          %p393 = pneg %p240
        $region62: #{tpu_custom_call.1} parent=55 // pred_check_branch
          %395 = sbr.rel (%p393) target = $region64
        $region63: #{tpu_custom_call.1} parent=55 // pred_region
          %396 = dma.done [#allocation6], 1024
        $region64: #{tpu_custom_call.1} parent=55 // pred_fallthru
          _
        %s397 = smul.u32 2, %s35
        %p398 = scmp.lt.s32.totalorder %s34, 1
        %s399 = scalar_select %p398, %s34, 1
        %p400 = scmp.lt.s32.totalorder %s397, 1
        %s401 = scalar_select %p400, %s397, 1
        %s402 = smul.addr %s399, 8
        %s403 = sadd.s32 %s401, %s402
        %s404 = smul.addr %s403, 8
        %s405 = scalar_lea.vmem %s0, %s404
        %p406 = pneg %p65
        %p407 = pneg %p62
        %s408 = smul.u32 2, %s35
        %p409 = scmp.lt.s32.totalorder %s34, 1
        %s410 = scalar_select %p409, %s34, 1
        %p411 = scmp.lt.s32.totalorder %s408, 1
        %s412 = scalar_select %p411, %s408, 1
        %s413 = smul.addr %s410, 8
        %s414 = sadd.s32 %s412, %s413
        %s415 = smul.addr %s414, 8
        %s416 = scalar_lea.vmem %s1, %s415
        %p417 = pneg %p93
        %p418 = pneg %p90
        %p419 = pneg %p114
        %p420 = pneg %p111
        %p421 = pneg %p135
        %p422 = pneg %p132
        %p423 = pneg %p156
        %p424 = pneg %p153
        %p425 = pneg %p177
        %p426 = pneg %p174
        %p427 = pneg %p198
        %p428 = pneg %p195
        %p429 = pneg %p219
        %p430 = pneg %p216
        %p431 = pneg %p240
        %p432 = pneg %p237
        %p433 = pneg %p268
        %p434 = pneg %p265
        %s435 = sand.u32 %s255, 1
        %s436 = scalar_lea.sflag [#allocation4], %s435
        %s437 = sand.u32 %s255, 1
        %s438 = smul.addr %s437, 64
        %s439 = scalar_lea.vmem [#allocation7], %s438
        %p440 = pneg %p296
        %p441 = pneg %p293
        %s442 = sand.u32 %s283, 1
        %s443 = scalar_lea.sflag [#allocation9], %s442
        %s444 = sand.u32 %s283, 1
        %s445 = smul.addr %s444, 64
        %s446 = scalar_lea.vmem [#allocation8], %s445
        %s447 = smul.u32 2, %s35
        %p448 = scmp.lt.s32.totalorder %s34, 1
        %s449 = scalar_select %p448, %s34, 1
        %p450 = scmp.lt.s32.totalorder %s447, 1
        %s451 = scalar_select %p450, %s447, 1
        %s452 = smul.addr %s449, 8
        %s453 = sadd.s32 %s451, %s452
        %s454 = smul.addr %s453, 8
        %s455 = scalar_lea.vmem %s0, %s454
        %s456 = smul.u32 2, %s35
        %s457 = smul.u32 2, %s35
        %p458 = scmp.lt.s32.totalorder %s34, 1
        %s459 = scalar_select %p458, %s34, 1
        %p460 = scmp.lt.s32.totalorder %s457, 1
        %s461 = scalar_select %p460, %s457, 1
        %s462 = smul.addr %s459, 8
        %s463 = sadd.s32 %s461, %s462
        %s464 = smul.addr %s463, 8
        %s465 = scalar_lea.vmem %s1, %s464
        %s466 = smul.u32 2, %s35
        %s467 = smul.u32 2, %s35
        %s468 = smul.u32 2, %s35
        %v469 = vld [vmem:[%s6] sm:$0xff]
        %v470 = vld [vmem:[%s6 + $0x8] sm:$0xff]
        %v471 = vld [vmem:[%s6 + $0x10] sm:$0xff]
        %v472 = vld [vmem:[%s6 + $0x18] sm:$0xff]
        %v473 = vld [vmem:[%s6 + $0x20] sm:$0xff]
        %v474 = vld [vmem:[%s6 + $0x28] sm:$0xff]
        %v475 = vld [vmem:[%s6 + $0x30] sm:$0xff]
        %v476 = vld [vmem:[%s6 + $0x38] sm:$0xff]
        %v477 = vld [vmem:[%s6 + $0x40] sm:$0xff]
        %v478 = vld [vmem:[%s6 + $0x48] sm:$0xff]
        %v479 = vld [vmem:[%s6 + $0x50] sm:$0xff]
        %v480 = vld [vmem:[%s6 + $0x58] sm:$0xff]
        %v481 = vld [vmem:[%s6 + $0x60] sm:$0xff]
        %v482 = vld [vmem:[%s6 + $0x68] sm:$0xff]
        %v483 = vld [vmem:[%s6 + $0x70] sm:$0xff]
        %v484 = vld [vmem:[%s6 + $0x78] sm:$0xff]
        %v485 = vld [vmem:[%s6 + $0x80] sm:$0xff]
        %v486 = vld [vmem:[%s6 + $0x88] sm:$0xff]
        %v487 = vld [vmem:[%s6 + $0x90] sm:$0xff]
        %v488 = vld [vmem:[%s6 + $0x98] sm:$0xff]
        %v489 = vld [vmem:[%s6 + $0xa0] sm:$0xff]
        %v490 = vld [vmem:[%s6 + $0xa8] sm:$0xff]
        %v491 = vld [vmem:[%s6 + $0xb0] sm:$0xff]
        %v492 = vld [vmem:[%s6 + $0xb8] sm:$0xff]
        %v493 = vld [vmem:[%s6 + $0xc0] sm:$0xff]
        %v494 = vld [vmem:[%s6 + $0xc8] sm:$0xff]
        %v495 = vld [vmem:[%s6 + $0xd0] sm:$0xff]
        %v496 = vld [vmem:[%s6 + $0xd8] sm:$0xff]
        %v497 = vld [vmem:[%s6 + $0xe0] sm:$0xff]
        %v498 = vld [vmem:[%s6 + $0xe8] sm:$0xff]
        %v499 = vld [vmem:[%s6 + $0xf0] sm:$0xff]
        %v500 = vld [vmem:[%s6 + $0xf8] sm:$0xff]
        %v501 = vld [vmem:[#allocation2] sm:$0xff]
        %v502 = vld [vmem:[#allocation2 + $0x8] sm:$0xff]
        %v503 = vld [vmem:[#allocation2 + $0x10] sm:$0xff]
        %v504 = vld [vmem:[#allocation2 + $0x18] sm:$0xff]
        %v505 = vld [vmem:[#allocation2 + $0x20] sm:$0xff]
        %v506 = vld [vmem:[#allocation2 + $0x28] sm:$0xff]
        %v507 = vld [vmem:[#allocation2 + $0x30] sm:$0xff]
        %v508 = vld [vmem:[#allocation2 + $0x38] sm:$0xff]
        %v509 = vld [vmem:[#allocation2 + $0x40] sm:$0xff]
        %v510 = vld [vmem:[#allocation2 + $0x48] sm:$0xff]
        %v511 = vld [vmem:[#allocation2 + $0x50] sm:$0xff]
        %v512 = vld [vmem:[#allocation2 + $0x58] sm:$0xff]
        %v513 = vld [vmem:[#allocation2 + $0x60] sm:$0xff]
        %v514 = vld [vmem:[#allocation2 + $0x68] sm:$0xff]
        %v515 = vld [vmem:[#allocation2 + $0x70] sm:$0xff]
        %v516 = vld [vmem:[#allocation2 + $0x78] sm:$0xff]
        %v517 = vld [vmem:[%s455] sm:$0xff]
        %v518 = vld [vmem:[%s455 + $0x8] sm:$0xff]
        %v519 = vld [vmem:[%s455 + $0x10] sm:$0xff]
        %v520 = vld [vmem:[%s455 + $0x18] sm:$0xff]
        %v521 = vld [vmem:[%s455 + $0x20] sm:$0xff]
        %v522 = vld [vmem:[%s455 + $0x28] sm:$0xff]
        %v523 = vld [vmem:[%s455 + $0x30] sm:$0xff]
        %v524 = vld [vmem:[%s455 + $0x38] sm:$0xff]
        %v525 = vld [vmem:[%s465] sm:$0xff]
        %v526 = vld [vmem:[%s465 + $0x8] sm:$0xff]
        %v527 = vld [vmem:[%s465 + $0x10] sm:$0xff]
        %v528 = vld [vmem:[%s465 + $0x18] sm:$0xff]
        %v529 = vld [vmem:[%s465 + $0x20] sm:$0xff]
        %v530 = vld [vmem:[%s465 + $0x28] sm:$0xff]
        %v531 = vld [vmem:[%s465 + $0x30] sm:$0xff]
        %v532 = vld [vmem:[%s465 + $0x38] sm:$0xff]
        %v533 = vld [vmem:[%s2] sm:$0xff]
        %v534 = vld [vmem:[%s2 + $0x8] sm:$0xff]
        %v535 = vld [vmem:[%s2 + $0x10] sm:$0xff]
        %v536 = vld [vmem:[%s2 + $0x18] sm:$0xff]
        %v537 = vld [vmem:[%s2 + $0x20] sm:$0xff]
        %v538 = vld [vmem:[%s2 + $0x28] sm:$0xff]
        %v539 = vld [vmem:[%s2 + $0x30] sm:$0xff]
        %v540 = vld [vmem:[%s2 + $0x38] sm:$0xff]
        %v541 = vld [vmem:[%s2 + $0x40] sm:$0xff]
        %v542 = vld [vmem:[%s2 + $0x48] sm:$0xff]
        %v543 = vld [vmem:[%s2 + $0x50] sm:$0xff]
        %v544 = vld [vmem:[%s2 + $0x58] sm:$0xff]
        %v545 = vld [vmem:[%s2 + $0x60] sm:$0xff]
        %v546 = vld [vmem:[%s2 + $0x68] sm:$0xff]
        %v547 = vld [vmem:[%s2 + $0x70] sm:$0xff]
        %v548 = vld [vmem:[%s2 + $0x78] sm:$0xff]
        %v549 = vld [vmem:[%s3] sm:$0xff]
        %v550 = vld [vmem:[%s3 + $0x8] sm:$0xff]
        %v551 = vld [vmem:[%s3 + $0x10] sm:$0xff]
        %v552 = vld [vmem:[%s3 + $0x18] sm:$0xff]
        %v553 = vld [vmem:[%s3 + $0x20] sm:$0xff]
        %v554 = vld [vmem:[%s3 + $0x28] sm:$0xff]
        %v555 = vld [vmem:[%s3 + $0x30] sm:$0xff]
        %v556 = vld [vmem:[%s3 + $0x38] sm:$0xff]
        %v557 = vld [vmem:[%s3 + $0x40] sm:$0xff]
        %v558 = vld [vmem:[%s3 + $0x48] sm:$0xff]
        %v559 = vld [vmem:[%s3 + $0x50] sm:$0xff]
        %v560 = vld [vmem:[%s3 + $0x58] sm:$0xff]
        %v561 = vld [vmem:[%s3 + $0x60] sm:$0xff]
        %v562 = vld [vmem:[%s3 + $0x68] sm:$0xff]
        %v563 = vld [vmem:[%s3 + $0x70] sm:$0xff]
        %v564 = vld [vmem:[%s3 + $0x78] sm:$0xff]
        %v565 = vld [vmem:[%s4] sm:$0xff]
        %v566 = vld [vmem:[%s4 + $0x8] sm:$0xff]
        %v567 = vld [vmem:[%s4 + $0x10] sm:$0xff]
        %v568 = vld [vmem:[%s4 + $0x18] sm:$0xff]
        %v569 = vld [vmem:[%s4 + $0x20] sm:$0xff]
        %v570 = vld [vmem:[%s4 + $0x28] sm:$0xff]
        %v571 = vld [vmem:[%s4 + $0x30] sm:$0xff]
        %v572 = vld [vmem:[%s4 + $0x38] sm:$0xff]
        %v573 = vld [vmem:[%s5] sm:$0xff]
        %v574 = vld [vmem:[%s5 + $0x8] sm:$0xff]
        %v575 = vld [vmem:[%s5 + $0x10] sm:$0xff]
        %v576 = vld [vmem:[%s5 + $0x18] sm:$0xff]
        %v577 = vld [vmem:[%s5 + $0x20] sm:$0xff]
        %v578 = vld [vmem:[%s5 + $0x28] sm:$0xff]
        %v579 = vld [vmem:[%s5 + $0x30] sm:$0xff]
        %v580 = vld [vmem:[%s5 + $0x38] sm:$0xff]
        %vm581 = vcmask 261120
        %v583 = vsel %vm581, %v533, 0
        %v586 = vsel %vm581, %v534, 0
        %v589 = vsel %vm581, %v535, 0
        %v592 = vsel %vm581, %v536, 0
        %v595 = vsel %vm581, %v537, 0
        %v598 = vsel %vm581, %v538, 0
        %v601 = vsel %vm581, %v539, 0
        %v604 = vsel %vm581, %v540, 0
        %v607 = vsel %vm581, %v541, 0
        %v610 = vsel %vm581, %v542, 0
        %v613 = vsel %vm581, %v543, 0
        %v616 = vsel %vm581, %v544, 0
        %v619 = vsel %vm581, %v545, 0
        %v622 = vsel %vm581, %v546, 0
        %v625 = vsel %vm581, %v547, 0
        %v628 = vsel %vm581, %v548, 0
        %v630 = vand.u32 %v518, 4294901760
        %631 = vmatprep.subr.mxu0 %v630
        %v632 = vand.u32 %v517, 4294901760
        %633 = vmatpush1.msra.mxu0 %v632
        %v634 = vand.u32 %v520, 4294901760
        %635 = vmatprep.subr.mxu0 %v634
        %v636 = vand.u32 %v519, 4294901760
        %637 = vmatpush1.msra.mxu0 %v636
        %v638 = vand.u32 %v522, 4294901760
        %639 = vmatprep.subr.mxu0 %v638
        %v640 = vand.u32 %v521, 4294901760
        %641 = vmatpush1.msra.mxu0 %v640
        %v642 = vand.u32 %v524, 4294901760
        %643 = vmatprep.subr.mxu0 %v642
        %v644 = vand.u32 %v523, 4294901760
        %645 = vmatpush1.msra.mxu0 %v644
        %646 = vmatprep.subr.mxu0 0.0
        %647 = vmatpush1.msra.mxu0 0.0
        %648 = vmatprep.subr.mxu0 0.0
        %649 = vmatpush1.msra.mxu0 0.0
        %650 = vmatprep.subr.mxu0 0.0
        %651 = vmatpush1.msra.mxu0 0.0
        %652 = vmatprep.subr.mxu0 0.0
        %653 = vmatpush1.msra.mxu0 0.0
        %654 = vmatprep.subr.mxu0 0.0
        %655 = vmatpush1.msra.mxu0 0.0
        %656 = vmatprep.subr.mxu0 0.0
        %657 = vmatpush1.msra.mxu0 0.0
        %658 = vmatprep.subr.mxu0 0.0
        %659 = vmatpush1.msra.mxu0 0.0
        %660 = vmatprep.subr.mxu0 0.0
        %661 = vmatpush1.msra.mxu0 0.0
        %662 = vmatprep.subr.mxu0 0.0
        %663 = vmatpush1.msra.mxu0 0.0
        %664 = vmatprep.subr.mxu0 0.0
        %665 = vmatpush1.msra.mxu0 0.0
        %666 = vmatprep.subr.mxu0 0.0
        %667 = vmatpush1.msra.mxu0 0.0
        %668 = vmatprep.subr.mxu0 0.0
        %669 = vmatpush1.msra.mxu0 0.0
        %670 = vmatprep.subr.mxu0 0.0
        %671 = vmatpush1.msra.mxu0 0.0
        %672 = vmatprep.subr.mxu0 0.0
        %673 = vmatpush1.msra.mxu0 0.0
        %674 = vmatprep.subr.mxu0 0.0
        %675 = vmatpush1.msra.mxu0 0.0
        %676 = vmatprep.subr.mxu0 0.0
        %677 = vmatpush1.msra.mxu0 0.0
        %678 = vmatprep.subr.mxu0 0.0
        %679 = vmatpush1.msra.mxu0 0.0
        %680 = vmatprep.subr.mxu0 0.0
        %681 = vmatpush1.msra.mxu0 0.0
        %682 = vmatprep.subr.mxu0 0.0
        %683 = vmatpush1.msra.mxu0 0.0
        %684 = vmatprep.subr.mxu0 0.0
        %685 = vmatpush1.msra.mxu0 0.0
        %686 = vmatprep.subr.mxu0 0.0
        %687 = vmatpush1.msra.mxu0 0.0
        %688 = vmatprep.subr.mxu0 0.0
        %689 = vmatpush1.msra.mxu0 0.0
        %690 = vmatprep.subr.mxu0 0.0
        %691 = vmatpush1.msra.mxu0 0.0
        %692 = vmatprep.subr.mxu0 0.0
        %693 = vmatpush1.msra.mxu0 0.0
        %694 = vmatprep.subr.mxu0 0.0
        %695 = vmatpush1.msra.mxu0 0.0
        %696 = vmatprep.subr.mxu0 0.0
        %697 = vmatpush1.msra.mxu0 0.0
        %698 = vmatprep.subr.mxu0 0.0
        %699 = vmatpush1.msra.mxu0 0.0
        %700 = vmatprep.subr.mxu0 0.0
        %701 = vmatpush1.msra.mxu0 0.0
        %702 = vmatprep.mubr.f32.mxu0 0.0
        %v703 = vand.u32 %v583, 4294901760
        %v704 = vsub.f32 %v583, %v703
        %v705 = vand.u32 %v704, 4294901760
        %v706 = vsub.f32 %v704, %v705
        %v707 = vand.u32 %v706, 4294901760
        %708 = vmatmul.mubr.f32.gmra.mrb[0].mxu0 %v707
        %v709 = vpop.f32.mrb[0].mxu0
        %v710 = vadd.f32 0.0, %v709
        %v711 = vpop.f32.mrb[0].mxu0
        %v712 = vadd.f32 0.0, %v711
        %713 = vmatprep.mubr.f32.mxu0 0.0
        %v714 = vand.u32 %v586, 4294901760
        %v715 = vsub.f32 %v586, %v714
        %v716 = vand.u32 %v715, 4294901760
        %v717 = vsub.f32 %v715, %v716
        %v718 = vand.u32 %v717, 4294901760
        %719 = vmatmul.mubr.f32.gmra.mrb[0].mxu0 %v718
        %v720 = vpop.f32.mrb[0].mxu0
        %v721 = vadd.f32 0.0, %v720
        %v722 = vpop.f32.mrb[0].mxu0
        %v723 = vadd.f32 0.0, %v722
        %724 = vmatprep.mubr.f32.mxu0 0.0
        %v725 = vand.u32 %v589, 4294901760
        %v726 = vsub.f32 %v589, %v725
        %v727 = vand.u32 %v726, 4294901760
        %v728 = vsub.f32 %v726, %v727
        %v729 = vand.u32 %v728, 4294901760
        %730 = vmatmul.mubr.f32.gmra.mrb[0].mxu0 %v729
        %v731 = vpop.f32.mrb[0].mxu0
        %v732 = vadd.f32 0.0, %v731
        %v733 = vpop.f32.mrb[0].mxu0
        %v734 = vadd.f32 0.0, %v733
        %735 = vmatprep.mubr.f32.mxu0 0.0
        %v736 = vand.u32 %v592, 4294901760
        %v737 = vsub.f32 %v592, %v736
        %v738 = vand.u32 %v737, 4294901760
        %v739 = vsub.f32 %v737, %v738
        %v740 = vand.u32 %v739, 4294901760
        %741 = vmatmul.mubr.f32.gmra.mrb[0].mxu0 %v740
        %v742 = vpop.f32.mrb[0].mxu0
        %v743 = vadd.f32 0.0, %v742
        %v744 = vpop.f32.mrb[0].mxu0
        %v745 = vadd.f32 0.0, %v744
        %746 = vmatprep.mubr.f32.mxu0 0.0
        %v747 = vand.u32 %v595, 4294901760
        %v748 = vsub.f32 %v595, %v747
        %v749 = vand.u32 %v748, 4294901760
        %v750 = vsub.f32 %v748, %v749
        %v751 = vand.u32 %v750, 4294901760
        %752 = vmatmul.mubr.f32.gmra.mrb[0].mxu0 %v751
        %v753 = vpop.f32.mrb[0].mxu0
        %v754 = vadd.f32 0.0, %v753
        %v755 = vpop.f32.mrb[0].mxu0
        %v756 = vadd.f32 0.0, %v755
        %757 = vmatprep.mubr.f32.mxu0 0.0
        %v758 = vand.u32 %v598, 4294901760
        %v759 = vsub.f32 %v598, %v758
        %v760 = vand.u32 %v759, 4294901760
        %v761 = vsub.f32 %v759, %v760
        %v762 = vand.u32 %v761, 4294901760
        %763 = vmatmul.mubr.f32.gmra.mrb[0].mxu0 %v762
        %v764 = vpop.f32.mrb[0].mxu0
        %v765 = vadd.f32 0.0, %v764
        %v766 = vpop.f32.mrb[0].mxu0
        %v767 = vadd.f32 0.0, %v766
        %768 = vmatprep.mubr.f32.mxu0 0.0
        %v769 = vand.u32 %v601, 4294901760
        %v770 = vsub.f32 %v601, %v769
        %v771 = vand.u32 %v770, 4294901760
        %v772 = vsub.f32 %v770, %v771
        %v773 = vand.u32 %v772, 4294901760
        %774 = vmatmul.mubr.f32.gmra.mrb[0].mxu0 %v773
        %v775 = vpop.f32.mrb[0].mxu0
        %v776 = vadd.f32 0.0, %v775
        %v777 = vpop.f32.mrb[0].mxu0
        %v778 = vadd.f32 0.0, %v777
        %779 = vmatprep.mubr.f32.mxu0 0.0
        %v780 = vand.u32 %v604, 4294901760
        %v781 = vsub.f32 %v604, %v780
        %v782 = vand.u32 %v781, 4294901760
        %v783 = vsub.f32 %v781, %v782
        %v784 = vand.u32 %v783, 4294901760
        %785 = vmatmul.mubr.f32.gmra.mrb[0].mxu0 %v784
        %v786 = vpop.f32.mrb[0].mxu0
        %v787 = vadd.f32 0.0, %v786
        %v788 = vpop.f32.mrb[0].mxu0
        %v789 = vadd.f32 0.0, %v788
        %790 = vmatprep.mubr.f32.mxu0 0.0
        %v791 = vand.u32 %v607, 4294901760
        %v792 = vsub.f32 %v607, %v791
        %v793 = vand.u32 %v792, 4294901760
        %v794 = vsub.f32 %v792, %v793
        %v795 = vand.u32 %v794, 4294901760
        %796 = vmatmul.mubr.f32.gmra.mrb[0].mxu0 %v795
        %v797 = vpop.f32.mrb[0].mxu0
        %v798 = vadd.f32 0.0, %v797
        %v799 = vpop.f32.mrb[0].mxu0
        %v800 = vadd.f32 0.0, %v799
        %801 = vmatprep.mubr.f32.mxu0 0.0
        %v802 = vand.u32 %v610, 4294901760
        %v803 = vsub.f32 %v610, %v802
        %v804 = vand.u32 %v803, 4294901760
        %v805 = vsub.f32 %v803, %v804
        %v806 = vand.u32 %v805, 4294901760
        %807 = vmatmul.mubr.f32.gmra.mrb[0].mxu0 %v806
        %v808 = vpop.f32.mrb[0].mxu0
        %v809 = vadd.f32 0.0, %v808
        %v810 = vpop.f32.mrb[0].mxu0
        %v811 = vadd.f32 0.0, %v810
        %812 = vmatprep.mubr.f32.mxu0 0.0
        %v813 = vand.u32 %v613, 4294901760
        %v814 = vsub.f32 %v613, %v813
        %v815 = vand.u32 %v814, 4294901760
        %v816 = vsub.f32 %v814, %v815
        %v817 = vand.u32 %v816, 4294901760
        %818 = vmatmul.mubr.f32.gmra.mrb[0].mxu0 %v817
        %v819 = vpop.f32.mrb[0].mxu0
        %v820 = vadd.f32 0.0, %v819
        %v821 = vpop.f32.mrb[0].mxu0
        %v822 = vadd.f32 0.0, %v821
        %823 = vmatprep.mubr.f32.mxu0 0.0
        %v824 = vand.u32 %v616, 4294901760
        %v825 = vsub.f32 %v616, %v824
        %v826 = vand.u32 %v825, 4294901760
        %v827 = vsub.f32 %v825, %v826
        %v828 = vand.u32 %v827, 4294901760
        %829 = vmatmul.mubr.f32.gmra.mrb[0].mxu0 %v828
        %v830 = vpop.f32.mrb[0].mxu0
        %v831 = vadd.f32 0.0, %v830
        %v832 = vpop.f32.mrb[0].mxu0
        %v833 = vadd.f32 0.0, %v832
        %834 = vmatprep.mubr.f32.mxu0 0.0
        %v835 = vand.u32 %v619, 4294901760
        %v836 = vsub.f32 %v619, %v835
        %v837 = vand.u32 %v836, 4294901760
        %v838 = vsub.f32 %v836, %v837
        %v839 = vand.u32 %v838, 4294901760
        %840 = vmatmul.mubr.f32.gmra.mrb[0].mxu0 %v839
        %v841 = vpop.f32.mrb[0].mxu0
        %v842 = vadd.f32 0.0, %v841
        %v843 = vpop.f32.mrb[0].mxu0
        %v844 = vadd.f32 0.0, %v843
        %845 = vmatprep.mubr.f32.mxu0 0.0
        %v846 = vand.u32 %v622, 4294901760
        %v847 = vsub.f32 %v622, %v846
        %v848 = vand.u32 %v847, 4294901760
        %v849 = vsub.f32 %v847, %v848
        %v850 = vand.u32 %v849, 4294901760
        %851 = vmatmul.mubr.f32.gmra.mrb[0].mxu0 %v850
        %v852 = vpop.f32.mrb[0].mxu0
        %v853 = vadd.f32 0.0, %v852
        %v854 = vpop.f32.mrb[0].mxu0
        %v855 = vadd.f32 0.0, %v854
        %856 = vmatprep.mubr.f32.mxu0 0.0
        %v857 = vand.u32 %v625, 4294901760
        %v858 = vsub.f32 %v625, %v857
        %v859 = vand.u32 %v858, 4294901760
        %v860 = vsub.f32 %v858, %v859
        %v861 = vand.u32 %v860, 4294901760
        %862 = vmatmul.mubr.f32.gmra.mrb[0].mxu0 %v861
        %v863 = vpop.f32.mrb[0].mxu0
        %v864 = vadd.f32 0.0, %v863
        %v865 = vpop.f32.mrb[0].mxu0
        %v866 = vadd.f32 0.0, %v865
        %867 = vmatprep.mubr.f32.mxu0 0.0
        %v868 = vand.u32 %v628, 4294901760
        %v869 = vsub.f32 %v628, %v868
        %v870 = vand.u32 %v869, 4294901760
        %v871 = vsub.f32 %v869, %v870
        %v872 = vand.u32 %v871, 4294901760
        %873 = vmatmul.mubr.f32.gmra.mrb[0].mxu0 %v872
        %v874 = vpop.f32.mrb[0].mxu0
        %v875 = vadd.f32 0.0, %v874
        %v876 = vpop.f32.mrb[0].mxu0
        %v877 = vadd.f32 0.0, %v876
        %878 = vdwg.mxu0
        %v879 = vand.u32 %v518, 4294901760
        %v880 = vsub.f32 %v518, %v879
        %v881 = vand.u32 %v880, 4294901760
        %v882 = vsub.f32 %v880, %v881
        %v883 = vand.u32 %v882, 4294901760
        %884 = vmatprep.subr.mxu0 %v883
        %v885 = vand.u32 %v517, 4294901760
        %v886 = vsub.f32 %v517, %v885
        %v887 = vand.u32 %v886, 4294901760
        %v888 = vsub.f32 %v886, %v887
        %v889 = vand.u32 %v888, 4294901760
        %890 = vmatpush1.msra.mxu0 %v889
        %v891 = vand.u32 %v520, 4294901760
        %v892 = vsub.f32 %v520, %v891
        %v893 = vand.u32 %v892, 4294901760
        %v894 = vsub.f32 %v892, %v893
        %v895 = vand.u32 %v894, 4294901760
        %896 = vmatprep.subr.mxu0 %v895
        %v897 = vand.u32 %v519, 4294901760
        %v898 = vsub.f32 %v519, %v897
        %v899 = vand.u32 %v898, 4294901760
        %v900 = vsub.f32 %v898, %v899
        %v901 = vand.u32 %v900, 4294901760
        %902 = vmatpush1.msra.mxu0 %v901
        %v903 = vand.u32 %v522, 4294901760
        %v904 = vsub.f32 %v522, %v903
        %v905 = vand.u32 %v904, 4294901760
        %v906 = vsub.f32 %v904, %v905
        %v907 = vand.u32 %v906, 4294901760
        %908 = vmatprep.subr.mxu0 %v907
        %v909 = vand.u32 %v521, 4294901760
        %v910 = vsub.f32 %v521, %v909
        %v911 = vand.u32 %v910, 4294901760
        %v912 = vsub.f32 %v910, %v911
        %v913 = vand.u32 %v912, 4294901760
        %914 = vmatpush1.msra.mxu0 %v913
        %v915 = vand.u32 %v524, 4294901760
        %v916 = vsub.f32 %v524, %v915
        %v917 = vand.u32 %v916, 4294901760
        %v918 = vsub.f32 %v916, %v917
        %v919 = vand.u32 %v918, 4294901760
        %920 = vmatprep.subr.mxu0 %v919
        %v921 = vand.u32 %v523, 4294901760
        %v922 = vsub.f32 %v523, %v921
        %v923 = vand.u32 %v922, 4294901760
        %v924 = vsub.f32 %v922, %v923
        %v925 = vand.u32 %v924, 4294901760
        %926 = vmatpush1.msra.mxu0 %v925
        %927 = vmatprep.subr.mxu0 0.0
        %928 = vmatpush1.msra.mxu0 0.0
        %929 = vmatprep.subr.mxu0 0.0
        %930 = vmatpush1.msra.mxu0 0.0
        %931 = vmatprep.subr.mxu0 0.0
        %932 = vmatpush1.msra.mxu0 0.0
        %933 = vmatprep.subr.mxu0 0.0
        %934 = vmatpush1.msra.mxu0 0.0
        %935 = vmatprep.subr.mxu0 0.0
        %936 = vmatpush1.msra.mxu0 0.0
        %937 = vmatprep.subr.mxu0 0.0
        %938 = vmatpush1.msra.mxu0 0.0
        %939 = vmatprep.subr.mxu0 0.0
        %940 = vmatpush1.msra.mxu0 0.0
        %941 = vmatprep.subr.mxu0 0.0
        %942 = vmatpush1.msra.mxu0 0.0
        %943 = vmatprep.subr.mxu0 0.0
        %944 = vmatpush1.msra.mxu0 0.0
        %945 = vmatprep.subr.mxu0 0.0
        %946 = vmatpush1.msra.mxu0 0.0
        %947 = vmatprep.subr.mxu0 0.0
        %948 = vmatpush1.msra.mxu0 0.0
        %949 = vmatprep.subr.mxu0 0.0
        %950 = vmatpush1.msra.mxu0 0.0
        %951 = vmatprep.subr.mxu0 0.0
        %952 = vmatpush1.msra.mxu0 0.0
        %953 = vmatprep.subr.mxu0 0.0
        %954 = vmatpush1.msra.mxu0 0.0
        %955 = vmatprep.subr.mxu0 0.0
        %956 = vmatpush1.msra.mxu0 0.0
        %957 = vmatprep.subr.mxu0 0.0
        %958 = vmatpush1.msra.mxu0 0.0
        %959 = vmatprep.subr.mxu0 0.0
        %960 = vmatpush1.msra.mxu0 0.0
        %961 = vmatprep.subr.mxu0 0.0
        %962 = vmatpush1.msra.mxu0 0.0
        %963 = vmatprep.subr.mxu0 0.0
        %964 = vmatpush1.msra.mxu0 0.0
        %965 = vmatprep.subr.mxu0 0.0
        %966 = vmatpush1.msra.mxu0 0.0
        %967 = vmatprep.subr.mxu0 0.0
        %968 = vmatpush1.msra.mxu0 0.0
        %969 = vmatprep.subr.mxu0 0.0
        %970 = vmatpush1.msra.mxu0 0.0
        %971 = vmatprep.subr.mxu0 0.0
        %972 = vmatpush1.msra.mxu0 0.0
        %973 = vmatprep.subr.mxu0 0.0
        %974 = vmatpush1.msra.mxu0 0.0
        %975 = vmatprep.subr.mxu0 0.0
        %976 = vmatpush1.msra.mxu0 0.0
        %977 = vmatprep.subr.mxu0 0.0
        %978 = vmatpush1.msra.mxu0 0.0
        %979 = vmatprep.subr.mxu0 0.0
        %980 = vmatpush1.msra.mxu0 0.0
        %981 = vmatprep.subr.mxu0 0.0
        %982 = vmatpush1.msra.mxu0 0.0
        %983 = vmatprep.mubr.f32.mxu0 0.0
        %v984 = vand.u32 %v583, 4294901760
        %985 = vmatmul.mubr.f32.gmra.mrb[0].mxu0 %v984
        %v986 = vpop.f32.mrb[0].mxu0
        %v987 = vadd.f32 %v710, %v986
        %v988 = vpop.f32.mrb[0].mxu0
        %v989 = vadd.f32 %v712, %v988
        %990 = vmatprep.mubr.f32.mxu0 0.0
        %v991 = vand.u32 %v586, 4294901760
        %992 = vmatmul.mubr.f32.gmra.mrb[0].mxu0 %v991
        %v993 = vpop.f32.mrb[0].mxu0
        %v994 = vadd.f32 %v721, %v993
        %v995 = vpop.f32.mrb[0].mxu0
        %v996 = vadd.f32 %v723, %v995
        %997 = vmatprep.mubr.f32.mxu0 0.0
        %v998 = vand.u32 %v589, 4294901760
        %999 = vmatmul.mubr.f32.gmra.mrb[0].mxu0 %v998
        %v1000 = vpop.f32.mrb[0].mxu0
        %v1001 = vadd.f32 %v732, %v1000
        %v1002 = vpop.f32.mrb[0].mxu0
        %v1003 = vadd.f32 %v734, %v1002
        %1004 = vmatprep.mubr.f32.mxu0 0.0
        %v1005 = vand.u32 %v592, 4294901760
        %1006 = vmatmul.mubr.f32.gmra.mrb[0].mxu0 %v1005
        %v1007 = vpop.f32.mrb[0].mxu0
        %v1008 = vadd.f32 %v743, %v1007
        %v1009 = vpop.f32.mrb[0].mxu0
        %v1010 = vadd.f32 %v745, %v1009
        %1011 = vmatprep.mubr.f32.mxu0 0.0
        %v1012 = vand.u32 %v595, 4294901760
        %1013 = vmatmul.mubr.f32.gmra.mrb[0].mxu0 %v1012
        %v1014 = vpop.f32.mrb[0].mxu0
        %v1015 = vadd.f32 %v754, %v1014
        %v1016 = vpop.f32.mrb[0].mxu0
        %v1017 = vadd.f32 %v756, %v1016
        %1018 = vmatprep.mubr.f32.mxu0 0.0
        %v1019 = vand.u32 %v598, 4294901760
        %1020 = vmatmul.mubr.f32.gmra.mrb[0].mxu0 %v1019
        %v1021 = vpop.f32.mrb[0].mxu0
        %v1022 = vadd.f32 %v765, %v1021
        %v1023 = vpop.f32.mrb[0].mxu0
        %v1024 = vadd.f32 %v767, %v1023
        %1025 = vmatprep.mubr.f32.mxu0 0.0
        %v1026 = vand.u32 %v601, 4294901760
        %1027 = vmatmul.mubr.f32.gmra.mrb[0].mxu0 %v1026
        %v1028 = vpop.f32.mrb[0].mxu0
        %v1029 = vadd.f32 %v776, %v1028
        %v1030 = vpop.f32.mrb[0].mxu0
        %v1031 = vadd.f32 %v778, %v1030
        %1032 = vmatprep.mubr.f32.mxu0 0.0
        %v1033 = vand.u32 %v604, 4294901760
        %1034 = vmatmul.mubr.f32.gmra.mrb[0].mxu0 %v1033
        %v1035 = vpop.f32.mrb[0].mxu0
        %v1036 = vadd.f32 %v787, %v1035
        %v1037 = vpop.f32.mrb[0].mxu0
        %v1038 = vadd.f32 %v789, %v1037
        %1039 = vmatprep.mubr.f32.mxu0 0.0
        %v1040 = vand.u32 %v607, 4294901760
        %1041 = vmatmul.mubr.f32.gmra.mrb[0].mxu0 %v1040
        %v1042 = vpop.f32.mrb[0].mxu0
        %v1043 = vadd.f32 %v798, %v1042
        %v1044 = vpop.f32.mrb[0].mxu0
        %v1045 = vadd.f32 %v800, %v1044
        %1046 = vmatprep.mubr.f32.mxu0 0.0
        %v1047 = vand.u32 %v610, 4294901760
        %1048 = vmatmul.mubr.f32.gmra.mrb[0].mxu0 %v1047
        %v1049 = vpop.f32.mrb[0].mxu0
        %v1050 = vadd.f32 %v809, %v1049
        %v1051 = vpop.f32.mrb[0].mxu0
        %v1052 = vadd.f32 %v811, %v1051
        %1053 = vmatprep.mubr.f32.mxu0 0.0
        %v1054 = vand.u32 %v613, 4294901760
        %1055 = vmatmul.mubr.f32.gmra.mrb[0].mxu0 %v1054
        %v1056 = vpop.f32.mrb[0].mxu0
        %v1057 = vadd.f32 %v820, %v1056
        %v1058 = vpop.f32.mrb[0].mxu0
        %v1059 = vadd.f32 %v822, %v1058
        %1060 = vmatprep.mubr.f32.mxu0 0.0
        %v1061 = vand.u32 %v616, 4294901760
        %1062 = vmatmul.mubr.f32.gmra.mrb[0].mxu0 %v1061
        %v1063 = vpop.f32.mrb[0].mxu0
        %v1064 = vadd.f32 %v831, %v1063
        %v1065 = vpop.f32.mrb[0].mxu0
        %v1066 = vadd.f32 %v833, %v1065
        %1067 = vmatprep.mubr.f32.mxu0 0.0
        %v1068 = vand.u32 %v619, 4294901760
        %1069 = vmatmul.mubr.f32.gmra.mrb[0].mxu0 %v1068
        %v1070 = vpop.f32.mrb[0].mxu0
        %v1071 = vadd.f32 %v842, %v1070
        %v1072 = vpop.f32.mrb[0].mxu0
        %v1073 = vadd.f32 %v844, %v1072
        %1074 = vmatprep.mubr.f32.mxu0 0.0
        %v1075 = vand.u32 %v622, 4294901760
        %1076 = vmatmul.mubr.f32.gmra.mrb[0].mxu0 %v1075
        %v1077 = vpop.f32.mrb[0].mxu0
        %v1078 = vadd.f32 %v853, %v1077
        %v1079 = vpop.f32.mrb[0].mxu0
        %v1080 = vadd.f32 %v855, %v1079
        %1081 = vmatprep.mubr.f32.mxu0 0.0
        %v1082 = vand.u32 %v625, 4294901760
        %1083 = vmatmul.mubr.f32.gmra.mrb[0].mxu0 %v1082
        %v1084 = vpop.f32.mrb[0].mxu0
        %v1085 = vadd.f32 %v864, %v1084
        %v1086 = vpop.f32.mrb[0].mxu0
        %v1087 = vadd.f32 %v866, %v1086
        %1088 = vmatprep.mubr.f32.mxu0 0.0
        %v1089 = vand.u32 %v628, 4294901760
        %1090 = vmatmul.mubr.f32.gmra.mrb[0].mxu0 %v1089
        %v1091 = vpop.f32.mrb[0].mxu0
        %v1092 = vadd.f32 %v875, %v1091
        %v1093 = vpop.f32.mrb[0].mxu0
        %v1094 = vadd.f32 %v877, %v1093
        %1095 = vdwg.mxu0
        %v1096 = vand.u32 %v518, 4294901760
        %v1097 = vsub.f32 %v518, %v1096
        %1098 = vmatprep.subr.mxu0 %v1097
        %v1099 = vand.u32 %v517, 4294901760
        %v1100 = vsub.f32 %v517, %v1099
        %1101 = vmatpush1.msra.mxu0 %v1100
        %v1102 = vand.u32 %v520, 4294901760
        %v1103 = vsub.f32 %v520, %v1102
        %1104 = vmatprep.subr.mxu0 %v1103
        %v1105 = vand.u32 %v519, 4294901760
        %v1106 = vsub.f32 %v519, %v1105
        %1107 = vmatpush1.msra.mxu0 %v1106
        %v1108 = vand.u32 %v522, 4294901760
        %v1109 = vsub.f32 %v522, %v1108
        %1110 = vmatprep.subr.mxu0 %v1109
        %v1111 = vand.u32 %v521, 4294901760
        %v1112 = vsub.f32 %v521, %v1111
        %1113 = vmatpush1.msra.mxu0 %v1112
        %v1114 = vand.u32 %v524, 4294901760
        %v1115 = vsub.f32 %v524, %v1114
        %1116 = vmatprep.subr.mxu0 %v1115
        %v1117 = vand.u32 %v523, 4294901760
        %v1118 = vsub.f32 %v523, %v1117
        %1119 = vmatpush1.msra.mxu0 %v1118
        %1120 = vmatprep.subr.mxu0 0.0
        %1121 = vmatpush1.msra.mxu0 0.0
        %1122 = vmatprep.subr.mxu0 0.0
        %1123 = vmatpush1.msra.mxu0 0.0
        %1124 = vmatprep.subr.mxu0 0.0
        %1125 = vmatpush1.msra.mxu0 0.0
        %1126 = vmatprep.subr.mxu0 0.0
        %1127 = vmatpush1.msra.mxu0 0.0
        %1128 = vmatprep.subr.mxu0 0.0
        %1129 = vmatpush1.msra.mxu0 0.0
        %1130 = vmatprep.subr.mxu0 0.0
        %1131 = vmatpush1.msra.mxu0 0.0
        %1132 = vmatprep.subr.mxu0 0.0
        %1133 = vmatpush1.msra.mxu0 0.0
        %1134 = vmatprep.subr.mxu0 0.0
        %1135 = vmatpush1.msra.mxu0 0.0
        %1136 = vmatprep.subr.mxu0 0.0
        %1137 = vmatpush1.msra.mxu0 0.0
        %1138 = vmatprep.subr.mxu0 0.0
        %1139 = vmatpush1.msra.mxu0 0.0
        %1140 = vmatprep.subr.mxu0 0.0
        %1141 = vmatpush1.msra.mxu0 0.0
        %1142 = vmatprep.subr.mxu0 0.0
        %1143 = vmatpush1.msra.mxu0 0.0
        %1144 = vmatprep.subr.mxu0 0.0
        %1145 = vmatpush1.msra.mxu0 0.0
        %1146 = vmatprep.subr.mxu0 0.0
        %1147 = vmatpush1.msra.mxu0 0.0
        %1148 = vmatprep.subr.mxu0 0.0
        %1149 = vmatpush1.msra.mxu0 0.0
        %1150 = vmatprep.subr.mxu0 0.0
        %1151 = vmatpush1.msra.mxu0 0.0
        %1152 = vmatprep.subr.mxu0 0.0
        %1153 = vmatpush1.msra.mxu0 0.0
        %1154 = vmatprep.subr.mxu0 0.0
        %1155 = vmatpush1.msra.mxu0 0.0
        %1156 = vmatprep.subr.mxu0 0.0
        %1157 = vmatpush1.msra.mxu0 0.0
        %1158 = vmatprep.subr.mxu0 0.0
        %1159 = vmatpush1.msra.mxu0 0.0
        %1160 = vmatprep.subr.mxu0 0.0
        %1161 = vmatpush1.msra.mxu0 0.0
        %1162 = vmatprep.subr.mxu0 0.0
        %1163 = vmatpush1.msra.mxu0 0.0
        %1164 = vmatprep.subr.mxu0 0.0
        %1165 = vmatpush1.msra.mxu0 0.0
        %1166 = vmatprep.subr.mxu0 0.0
        %1167 = vmatpush1.msra.mxu0 0.0
        %1168 = vmatprep.subr.mxu0 0.0
        %1169 = vmatpush1.msra.mxu0 0.0
        %1170 = vmatprep.subr.mxu0 0.0
        %1171 = vmatpush1.msra.mxu0 0.0
        %1172 = vmatprep.subr.mxu0 0.0
        %1173 = vmatpush1.msra.mxu0 0.0
        %1174 = vmatprep.subr.mxu0 0.0
        %1175 = vmatpush1.msra.mxu0 0.0
        %1176 = vmatprep.mubr.f32.mxu0 0.0
        %v1177 = vand.u32 %v583, 4294901760
        %v1178 = vsub.f32 %v583, %v1177
        %1179 = vmatmul.mubr.f32.gmra.mrb[0].mxu0 %v1178
        %v1180 = vpop.f32.mrb[0].mxu0
        %v1181 = vadd.f32 %v987, %v1180
        %v1182 = vpop.f32.mrb[0].mxu0
        %v1183 = vadd.f32 %v989, %v1182
        %1184 = vmatprep.mubr.f32.mxu0 0.0
        %v1185 = vand.u32 %v586, 4294901760
        %v1186 = vsub.f32 %v586, %v1185
        %1187 = vmatmul.mubr.f32.gmra.mrb[0].mxu0 %v1186
        %v1188 = vpop.f32.mrb[0].mxu0
        %v1189 = vadd.f32 %v994, %v1188
        %v1190 = vpop.f32.mrb[0].mxu0
        %v1191 = vadd.f32 %v996, %v1190
        %1192 = vmatprep.mubr.f32.mxu0 0.0
        %v1193 = vand.u32 %v589, 4294901760
        %v1194 = vsub.f32 %v589, %v1193
        %1195 = vmatmul.mubr.f32.gmra.mrb[0].mxu0 %v1194
        %v1196 = vpop.f32.mrb[0].mxu0
        %v1197 = vadd.f32 %v1001, %v1196
        %v1198 = vpop.f32.mrb[0].mxu0
        %v1199 = vadd.f32 %v1003, %v1198
        %1200 = vmatprep.mubr.f32.mxu0 0.0
        %v1201 = vand.u32 %v592, 4294901760
        %v1202 = vsub.f32 %v592, %v1201
        %1203 = vmatmul.mubr.f32.gmra.mrb[0].mxu0 %v1202
        %v1204 = vpop.f32.mrb[0].mxu0
        %v1205 = vadd.f32 %v1008, %v1204
        %v1206 = vpop.f32.mrb[0].mxu0
        %v1207 = vadd.f32 %v1010, %v1206
        %1208 = vmatprep.mubr.f32.mxu0 0.0
        %v1209 = vand.u32 %v595, 4294901760
        %v1210 = vsub.f32 %v595, %v1209
        %1211 = vmatmul.mubr.f32.gmra.mrb[0].mxu0 %v1210
        %v1212 = vpop.f32.mrb[0].mxu0
        %v1213 = vadd.f32 %v1015, %v1212
        %v1214 = vpop.f32.mrb[0].mxu0
        %v1215 = vadd.f32 %v1017, %v1214
        %1216 = vmatprep.mubr.f32.mxu0 0.0
        %v1217 = vand.u32 %v598, 4294901760
        %v1218 = vsub.f32 %v598, %v1217
        %1219 = vmatmul.mubr.f32.gmra.mrb[0].mxu0 %v1218
        %v1220 = vpop.f32.mrb[0].mxu0
        %v1221 = vadd.f32 %v1022, %v1220
        %v1222 = vpop.f32.mrb[0].mxu0
        %v1223 = vadd.f32 %v1024, %v1222
        %1224 = vmatprep.mubr.f32.mxu0 0.0
        %v1225 = vand.u32 %v601, 4294901760
        %v1226 = vsub.f32 %v601, %v1225
        %1227 = vmatmul.mubr.f32.gmra.mrb[0].mxu0 %v1226
        %v1228 = vpop.f32.mrb[0].mxu0
        %v1229 = vadd.f32 %v1029, %v1228
        %v1230 = vpop.f32.mrb[0].mxu0
        %v1231 = vadd.f32 %v1031, %v1230
        %1232 = vmatprep.mubr.f32.mxu0 0.0
        %v1233 = vand.u32 %v604, 4294901760
        %v1234 = vsub.f32 %v604, %v1233
        %1235 = vmatmul.mubr.f32.gmra.mrb[0].mxu0 %v1234
        %v1236 = vpop.f32.mrb[0].mxu0
        %v1237 = vadd.f32 %v1036, %v1236
        %v1238 = vpop.f32.mrb[0].mxu0
        %v1239 = vadd.f32 %v1038, %v1238
        %1240 = vmatprep.mubr.f32.mxu0 0.0
        %v1241 = vand.u32 %v607, 4294901760
        %v1242 = vsub.f32 %v607, %v1241
        %1243 = vmatmul.mubr.f32.gmra.mrb[0].mxu0 %v1242
        %v1244 = vpop.f32.mrb[0].mxu0
        %v1245 = vadd.f32 %v1043, %v1244
        %v1246 = vpop.f32.mrb[0].mxu0
        %v1247 = vadd.f32 %v1045, %v1246
        %1248 = vmatprep.mubr.f32.mxu0 0.0
        %v1249 = vand.u32 %v610, 4294901760
        %v1250 = vsub.f32 %v610, %v1249
        %1251 = vmatmul.mubr.f32.gmra.mrb[0].mxu0 %v1250
        %v1252 = vpop.f32.mrb[0].mxu0
        %v1253 = vadd.f32 %v1050, %v1252
        %v1254 = vpop.f32.mrb[0].mxu0
        %v1255 = vadd.f32 %v1052, %v1254
        %1256 = vmatprep.mubr.f32.mxu0 0.0
        %v1257 = vand.u32 %v613, 4294901760
        %v1258 = vsub.f32 %v613, %v1257
        %1259 = vmatmul.mubr.f32.gmra.mrb[0].mxu0 %v1258
        %v1260 = vpop.f32.mrb[0].mxu0
        %v1261 = vadd.f32 %v1057, %v1260
        %v1262 = vpop.f32.mrb[0].mxu0
        %v1263 = vadd.f32 %v1059, %v1262
        %1264 = vmatprep.mubr.f32.mxu0 0.0
        %v1265 = vand.u32 %v616, 4294901760
        %v1266 = vsub.f32 %v616, %v1265
        %1267 = vmatmul.mubr.f32.gmra.mrb[0].mxu0 %v1266
        %v1268 = vpop.f32.mrb[0].mxu0
        %v1269 = vadd.f32 %v1064, %v1268
        %v1270 = vpop.f32.mrb[0].mxu0
        %v1271 = vadd.f32 %v1066, %v1270
        %1272 = vmatprep.mubr.f32.mxu0 0.0
        %v1273 = vand.u32 %v619, 4294901760
        %v1274 = vsub.f32 %v619, %v1273
        %1275 = vmatmul.mubr.f32.gmra.mrb[0].mxu0 %v1274
        %v1276 = vpop.f32.mrb[0].mxu0
        %v1277 = vadd.f32 %v1071, %v1276
        %v1278 = vpop.f32.mrb[0].mxu0
        %v1279 = vadd.f32 %v1073, %v1278
        %1280 = vmatprep.mubr.f32.mxu0 0.0
        %v1281 = vand.u32 %v622, 4294901760
        %v1282 = vsub.f32 %v622, %v1281
        %1283 = vmatmul.mubr.f32.gmra.mrb[0].mxu0 %v1282
        %v1284 = vpop.f32.mrb[0].mxu0
        %v1285 = vadd.f32 %v1078, %v1284
        %v1286 = vpop.f32.mrb[0].mxu0
        %v1287 = vadd.f32 %v1080, %v1286
        %1288 = vmatprep.mubr.f32.mxu0 0.0
        %v1289 = vand.u32 %v625, 4294901760
        %v1290 = vsub.f32 %v625, %v1289
        %1291 = vmatmul.mubr.f32.gmra.mrb[0].mxu0 %v1290
        %v1292 = vpop.f32.mrb[0].mxu0
        %v1293 = vadd.f32 %v1085, %v1292
        %v1294 = vpop.f32.mrb[0].mxu0
        %v1295 = vadd.f32 %v1087, %v1294
        %1296 = vmatprep.mubr.f32.mxu0 0.0
        %v1297 = vand.u32 %v628, 4294901760
        %v1298 = vsub.f32 %v628, %v1297
        %1299 = vmatmul.mubr.f32.gmra.mrb[0].mxu0 %v1298
        %v1300 = vpop.f32.mrb[0].mxu0
        %v1301 = vadd.f32 %v1092, %v1300
        %v1302 = vpop.f32.mrb[0].mxu0
        %v1303 = vadd.f32 %v1094, %v1302
        %1304 = vdwg.mxu0
        %v1305 = vand.u32 %v518, 4294901760
        %1306 = vmatprep.subr.mxu0 %v1305
        %v1307 = vand.u32 %v517, 4294901760
        %1308 = vmatpush1.msra.mxu0 %v1307
        %v1309 = vand.u32 %v520, 4294901760
        %1310 = vmatprep.subr.mxu0 %v1309
        %v1311 = vand.u32 %v519, 4294901760
        %1312 = vmatpush1.msra.mxu0 %v1311
        %v1313 = vand.u32 %v522, 4294901760
        %1314 = vmatprep.subr.mxu0 %v1313
        %v1315 = vand.u32 %v521, 4294901760
        %1316 = vmatpush1.msra.mxu0 %v1315
        %v1317 = vand.u32 %v524, 4294901760
        %1318 = vmatprep.subr.mxu0 %v1317
        %v1319 = vand.u32 %v523, 4294901760
        %1320 = vmatpush1.msra.mxu0 %v1319
        %1321 = vmatprep.subr.mxu0 0.0
        %1322 = vmatpush1.msra.mxu0 0.0
        %1323 = vmatprep.subr.mxu0 0.0
        %1324 = vmatpush1.msra.mxu0 0.0
        %1325 = vmatprep.subr.mxu0 0.0
        %1326 = vmatpush1.msra.mxu0 0.0
        %1327 = vmatprep.subr.mxu0 0.0
        %1328 = vmatpush1.msra.mxu0 0.0
        %1329 = vmatprep.subr.mxu0 0.0
        %1330 = vmatpush1.msra.mxu0 0.0
        %1331 = vmatprep.subr.mxu0 0.0
        %1332 = vmatpush1.msra.mxu0 0.0
        %1333 = vmatprep.subr.mxu0 0.0
        %1334 = vmatpush1.msra.mxu0 0.0
        %1335 = vmatprep.subr.mxu0 0.0
        %1336 = vmatpush1.msra.mxu0 0.0
        %1337 = vmatprep.subr.mxu0 0.0
        %1338 = vmatpush1.msra.mxu0 0.0
        %1339 = vmatprep.subr.mxu0 0.0
        %1340 = vmatpush1.msra.mxu0 0.0
        %1341 = vmatprep.subr.mxu0 0.0
        %1342 = vmatpush1.msra.mxu0 0.0
        %1343 = vmatprep.subr.mxu0 0.0
        %1344 = vmatpush1.msra.mxu0 0.0
        %1345 = vmatprep.subr.mxu0 0.0
        %1346 = vmatpush1.msra.mxu0 0.0
        %1347 = vmatprep.subr.mxu0 0.0
        %1348 = vmatpush1.msra.mxu0 0.0
        %1349 = vmatprep.subr.mxu0 0.0
        %1350 = vmatpush1.msra.mxu0 0.0
        %1351 = vmatprep.subr.mxu0 0.0
        %1352 = vmatpush1.msra.mxu0 0.0
        %1353 = vmatprep.subr.mxu0 0.0
        %1354 = vmatpush1.msra.mxu0 0.0
        %1355 = vmatprep.subr.mxu0 0.0
        %1356 = vmatpush1.msra.mxu0 0.0
        %1357 = vmatprep.subr.mxu0 0.0
        %1358 = vmatpush1.msra.mxu0 0.0
        %1359 = vmatprep.subr.mxu0 0.0
        %1360 = vmatpush1.msra.mxu0 0.0
        %1361 = vmatprep.subr.mxu0 0.0
        %1362 = vmatpush1.msra.mxu0 0.0
        %1363 = vmatprep.subr.mxu0 0.0
        %1364 = vmatpush1.msra.mxu0 0.0
        %1365 = vmatprep.subr.mxu0 0.0
        %1366 = vmatpush1.msra.mxu0 0.0
        %1367 = vmatprep.subr.mxu0 0.0
        %1368 = vmatpush1.msra.mxu0 0.0
        %1369 = vmatprep.subr.mxu0 0.0
        %1370 = vmatpush1.msra.mxu0 0.0
        %1371 = vmatprep.subr.mxu0 0.0
        %1372 = vmatpush1.msra.mxu0 0.0
        %1373 = vmatprep.subr.mxu0 0.0
        %1374 = vmatpush1.msra.mxu0 0.0
        %1375 = vmatprep.subr.mxu0 0.0
        %1376 = vmatpush1.msra.mxu0 0.0
        %1377 = vmatprep.mubr.f32.mxu0 0.0
        %v1378 = vand.u32 %v583, 4294901760
        %v1379 = vsub.f32 %v583, %v1378
        %v1380 = vand.u32 %v1379, 4294901760
        %1381 = vmatmul.mubr.f32.gmra.mrb[0].mxu0 %v1380
        %v1382 = vpop.f32.mrb[0].mxu0
        %v1383 = vadd.f32 %v1181, %v1382
        %v1384 = vpop.f32.mrb[0].mxu0
        %v1385 = vadd.f32 %v1183, %v1384
        %1386 = vmatprep.mubr.f32.mxu0 0.0
        %v1387 = vand.u32 %v586, 4294901760
        %v1388 = vsub.f32 %v586, %v1387
        %v1389 = vand.u32 %v1388, 4294901760
        %1390 = vmatmul.mubr.f32.gmra.mrb[0].mxu0 %v1389
        %v1391 = vpop.f32.mrb[0].mxu0
        %v1392 = vadd.f32 %v1189, %v1391
        %v1393 = vpop.f32.mrb[0].mxu0
        %v1394 = vadd.f32 %v1191, %v1393
        %1395 = vmatprep.mubr.f32.mxu0 0.0
        %v1396 = vand.u32 %v589, 4294901760
        %v1397 = vsub.f32 %v589, %v1396
        %v1398 = vand.u32 %v1397, 4294901760
        %1399 = vmatmul.mubr.f32.gmra.mrb[0].mxu0 %v1398
        %v1400 = vpop.f32.mrb[0].mxu0
        %v1401 = vadd.f32 %v1197, %v1400
        %v1402 = vpop.f32.mrb[0].mxu0
        %v1403 = vadd.f32 %v1199, %v1402
        %1404 = vmatprep.mubr.f32.mxu0 0.0
        %v1405 = vand.u32 %v592, 4294901760
        %v1406 = vsub.f32 %v592, %v1405
        %v1407 = vand.u32 %v1406, 4294901760
        %1408 = vmatmul.mubr.f32.gmra.mrb[0].mxu0 %v1407
        %v1409 = vpop.f32.mrb[0].mxu0
        %v1410 = vadd.f32 %v1205, %v1409
        %v1411 = vpop.f32.mrb[0].mxu0
        %v1412 = vadd.f32 %v1207, %v1411
        %1413 = vmatprep.mubr.f32.mxu0 0.0
        %v1414 = vand.u32 %v595, 4294901760
        %v1415 = vsub.f32 %v595, %v1414
        %v1416 = vand.u32 %v1415, 4294901760
        %1417 = vmatmul.mubr.f32.gmra.mrb[0].mxu0 %v1416
        %v1418 = vpop.f32.mrb[0].mxu0
        %v1419 = vadd.f32 %v1213, %v1418
        %v1420 = vpop.f32.mrb[0].mxu0
        %v1421 = vadd.f32 %v1215, %v1420
        %1422 = vmatprep.mubr.f32.mxu0 0.0
        %v1423 = vand.u32 %v598, 4294901760
        %v1424 = vsub.f32 %v598, %v1423
        %v1425 = vand.u32 %v1424, 4294901760
        %1426 = vmatmul.mubr.f32.gmra.mrb[0].mxu0 %v1425
        %v1427 = vpop.f32.mrb[0].mxu0
        %v1428 = vadd.f32 %v1221, %v1427
        %v1429 = vpop.f32.mrb[0].mxu0
        %v1430 = vadd.f32 %v1223, %v1429
        %1431 = vmatprep.mubr.f32.mxu0 0.0
        %v1432 = vand.u32 %v601, 4294901760
        %v1433 = vsub.f32 %v601, %v1432
        %v1434 = vand.u32 %v1433, 4294901760
        %1435 = vmatmul.mubr.f32.gmra.mrb[0].mxu0 %v1434
        %v1436 = vpop.f32.mrb[0].mxu0
        %v1437 = vadd.f32 %v1229, %v1436
        %v1438 = vpop.f32.mrb[0].mxu0
        %v1439 = vadd.f32 %v1231, %v1438
        %1440 = vmatprep.mubr.f32.mxu0 0.0
        %v1441 = vand.u32 %v604, 4294901760
        %v1442 = vsub.f32 %v604, %v1441
        %v1443 = vand.u32 %v1442, 4294901760
        %1444 = vmatmul.mubr.f32.gmra.mrb[0].mxu0 %v1443
        %v1445 = vpop.f32.mrb[0].mxu0
        %v1446 = vadd.f32 %v1237, %v1445
        %v1447 = vpop.f32.mrb[0].mxu0
        %v1448 = vadd.f32 %v1239, %v1447
        %1449 = vmatprep.mubr.f32.mxu0 0.0
        %v1450 = vand.u32 %v607, 4294901760
        %v1451 = vsub.f32 %v607, %v1450
        %v1452 = vand.u32 %v1451, 4294901760
        %1453 = vmatmul.mubr.f32.gmra.mrb[0].mxu0 %v1452
        %v1454 = vpop.f32.mrb[0].mxu0
        %v1455 = vadd.f32 %v1245, %v1454
        %v1456 = vpop.f32.mrb[0].mxu0
        %v1457 = vadd.f32 %v1247, %v1456
        %1458 = vmatprep.mubr.f32.mxu0 0.0
        %v1459 = vand.u32 %v610, 4294901760
        %v1460 = vsub.f32 %v610, %v1459
        %v1461 = vand.u32 %v1460, 4294901760
        %1462 = vmatmul.mubr.f32.gmra.mrb[0].mxu0 %v1461
        %v1463 = vpop.f32.mrb[0].mxu0
        %v1464 = vadd.f32 %v1253, %v1463
        %v1465 = vpop.f32.mrb[0].mxu0
        %v1466 = vadd.f32 %v1255, %v1465
        %1467 = vmatprep.mubr.f32.mxu0 0.0
        %v1468 = vand.u32 %v613, 4294901760
        %v1469 = vsub.f32 %v613, %v1468
        %v1470 = vand.u32 %v1469, 4294901760
        %1471 = vmatmul.mubr.f32.gmra.mrb[0].mxu0 %v1470
        %v1472 = vpop.f32.mrb[0].mxu0
        %v1473 = vadd.f32 %v1261, %v1472
        %v1474 = vpop.f32.mrb[0].mxu0
        %v1475 = vadd.f32 %v1263, %v1474
        %1476 = vmatprep.mubr.f32.mxu0 0.0
        %v1477 = vand.u32 %v616, 4294901760
        %v1478 = vsub.f32 %v616, %v1477
        %v1479 = vand.u32 %v1478, 4294901760
        %1480 = vmatmul.mubr.f32.gmra.mrb[0].mxu0 %v1479
        %v1481 = vpop.f32.mrb[0].mxu0
        %v1482 = vadd.f32 %v1269, %v1481
        %v1483 = vpop.f32.mrb[0].mxu0
        %v1484 = vadd.f32 %v1271, %v1483
        %1485 = vmatprep.mubr.f32.mxu0 0.0
        %v1486 = vand.u32 %v619, 4294901760
        %v1487 = vsub.f32 %v619, %v1486
        %v1488 = vand.u32 %v1487, 4294901760
        %1489 = vmatmul.mubr.f32.gmra.mrb[0].mxu0 %v1488
        %v1490 = vpop.f32.mrb[0].mxu0
        %v1491 = vadd.f32 %v1277, %v1490
        %v1492 = vpop.f32.mrb[0].mxu0
        %v1493 = vadd.f32 %v1279, %v1492
        %1494 = vmatprep.mubr.f32.mxu0 0.0
        %v1495 = vand.u32 %v622, 4294901760
        %v1496 = vsub.f32 %v622, %v1495
        %v1497 = vand.u32 %v1496, 4294901760
        %1498 = vmatmul.mubr.f32.gmra.mrb[0].mxu0 %v1497
        %v1499 = vpop.f32.mrb[0].mxu0
        %v1500 = vadd.f32 %v1285, %v1499
        %v1501 = vpop.f32.mrb[0].mxu0
        %v1502 = vadd.f32 %v1287, %v1501
        %1503 = vmatprep.mubr.f32.mxu0 0.0
        %v1504 = vand.u32 %v625, 4294901760
        %v1505 = vsub.f32 %v625, %v1504
        %v1506 = vand.u32 %v1505, 4294901760
        %1507 = vmatmul.mubr.f32.gmra.mrb[0].mxu0 %v1506
        %v1508 = vpop.f32.mrb[0].mxu0
        %v1509 = vadd.f32 %v1293, %v1508
        %v1510 = vpop.f32.mrb[0].mxu0
        %v1511 = vadd.f32 %v1295, %v1510
        %1512 = vmatprep.mubr.f32.mxu0 0.0
        %v1513 = vand.u32 %v628, 4294901760
        %v1514 = vsub.f32 %v628, %v1513
        %v1515 = vand.u32 %v1514, 4294901760
        %1516 = vmatmul.mubr.f32.gmra.mrb[0].mxu0 %v1515
        %v1517 = vpop.f32.mrb[0].mxu0
        %v1518 = vadd.f32 %v1301, %v1517
        %v1519 = vpop.f32.mrb[0].mxu0
        %v1520 = vadd.f32 %v1303, %v1519
        %1521 = vdwg.mxu0
        %v1522 = vand.u32 %v518, 4294901760
        %v1523 = vsub.f32 %v518, %v1522
        %v1524 = vand.u32 %v1523, 4294901760
        %1525 = vmatprep.subr.mxu0 %v1524
        %v1526 = vand.u32 %v517, 4294901760
        %v1527 = vsub.f32 %v517, %v1526
        %v1528 = vand.u32 %v1527, 4294901760
        %1529 = vmatpush1.msra.mxu0 %v1528
        %v1530 = vand.u32 %v520, 4294901760
        %v1531 = vsub.f32 %v520, %v1530
        %v1532 = vand.u32 %v1531, 4294901760
        %1533 = vmatprep.subr.mxu0 %v1532
        %v1534 = vand.u32 %v519, 4294901760
        %v1535 = vsub.f32 %v519, %v1534
        %v1536 = vand.u32 %v1535, 4294901760
        %1537 = vmatpush1.msra.mxu0 %v1536
        %v1538 = vand.u32 %v522, 4294901760
        %v1539 = vsub.f32 %v522, %v1538
        %v1540 = vand.u32 %v1539, 4294901760
        %1541 = vmatprep.subr.mxu0 %v1540
        %v1542 = vand.u32 %v521, 4294901760
        %v1543 = vsub.f32 %v521, %v1542
        %v1544 = vand.u32 %v1543, 4294901760
        %1545 = vmatpush1.msra.mxu0 %v1544
        %v1546 = vand.u32 %v524, 4294901760
        %v1547 = vsub.f32 %v524, %v1546
        %v1548 = vand.u32 %v1547, 4294901760
        %1549 = vmatprep.subr.mxu0 %v1548
        %v1550 = vand.u32 %v523, 4294901760
        %v1551 = vsub.f32 %v523, %v1550
        %v1552 = vand.u32 %v1551, 4294901760
        %1553 = vmatpush1.msra.mxu0 %v1552
        %1554 = vmatprep.subr.mxu0 0.0
        %1555 = vmatpush1.msra.mxu0 0.0
        %1556 = vmatprep.subr.mxu0 0.0
        %1557 = vmatpush1.msra.mxu0 0.0
        %1558 = vmatprep.subr.mxu0 0.0
        %1559 = vmatpush1.msra.mxu0 0.0
        %1560 = vmatprep.subr.mxu0 0.0
        %1561 = vmatpush1.msra.mxu0 0.0
        %1562 = vmatprep.subr.mxu0 0.0
        %1563 = vmatpush1.msra.mxu0 0.0
        %1564 = vmatprep.subr.mxu0 0.0
        %1565 = vmatpush1.msra.mxu0 0.0
        %1566 = vmatprep.subr.mxu0 0.0
        %1567 = vmatpush1.msra.mxu0 0.0
        %1568 = vmatprep.subr.mxu0 0.0
        %1569 = vmatpush1.msra.mxu0 0.0
        %1570 = vmatprep.subr.mxu0 0.0
        %1571 = vmatpush1.msra.mxu0 0.0
        %1572 = vmatprep.subr.mxu0 0.0
        %1573 = vmatpush1.msra.mxu0 0.0
        %1574 = vmatprep.subr.mxu0 0.0
        %1575 = vmatpush1.msra.mxu0 0.0
        %1576 = vmatprep.subr.mxu0 0.0
        %1577 = vmatpush1.msra.mxu0 0.0
        %1578 = vmatprep.subr.mxu0 0.0
        %1579 = vmatpush1.msra.mxu0 0.0
        %1580 = vmatprep.subr.mxu0 0.0
        %1581 = vmatpush1.msra.mxu0 0.0
        %1582 = vmatprep.subr.mxu0 0.0
        %1583 = vmatpush1.msra.mxu0 0.0
        %1584 = vmatprep.subr.mxu0 0.0
        %1585 = vmatpush1.msra.mxu0 0.0
        %1586 = vmatprep.subr.mxu0 0.0
        %1587 = vmatpush1.msra.mxu0 0.0
        %1588 = vmatprep.subr.mxu0 0.0
        %1589 = vmatpush1.msra.mxu0 0.0
        %1590 = vmatprep.subr.mxu0 0.0
        %1591 = vmatpush1.msra.mxu0 0.0
        %1592 = vmatprep.subr.mxu0 0.0
        %1593 = vmatpush1.msra.mxu0 0.0
        %1594 = vmatprep.subr.mxu0 0.0
        %1595 = vmatpush1.msra.mxu0 0.0
        %1596 = vmatprep.subr.mxu0 0.0
        %1597 = vmatpush1.msra.mxu0 0.0
        %1598 = vmatprep.subr.mxu0 0.0
        %1599 = vmatpush1.msra.mxu0 0.0
        %1600 = vmatprep.subr.mxu0 0.0
        %1601 = vmatpush1.msra.mxu0 0.0
        %1602 = vmatprep.subr.mxu0 0.0
        %1603 = vmatpush1.msra.mxu0 0.0
        %1604 = vmatprep.subr.mxu0 0.0
        %1605 = vmatpush1.msra.mxu0 0.0
        %1606 = vmatprep.subr.mxu0 0.0
        %1607 = vmatpush1.msra.mxu0 0.0
        %1608 = vmatprep.subr.mxu0 0.0
        %1609 = vmatpush1.msra.mxu0 0.0
        %1610 = vmatprep.mubr.f32.mxu0 0.0
        %v1611 = vand.u32 %v583, 4294901760
        %1612 = vmatmul.mubr.f32.gmra.mrb[0].mxu0 %v1611
        %v1613 = vpop.f32.mrb[0].mxu0
        %v1614 = vadd.f32 %v1383, %v1613
        %v1615 = vpop.f32.mrb[0].mxu0
        %v1616 = vadd.f32 %v1385, %v1615
        %1617 = vmatprep.mubr.f32.mxu0 0.0
        %v1618 = vand.u32 %v586, 4294901760
        %1619 = vmatmul.mubr.f32.gmra.mrb[0].mxu0 %v1618
        %v1620 = vpop.f32.mrb[0].mxu0
        %v1621 = vadd.f32 %v1392, %v1620
        %v1622 = vpop.f32.mrb[0].mxu0
        %v1623 = vadd.f32 %v1394, %v1622
        %1624 = vmatprep.mubr.f32.mxu0 0.0
        %v1625 = vand.u32 %v589, 4294901760
        %1626 = vmatmul.mubr.f32.gmra.mrb[0].mxu0 %v1625
        %v1627 = vpop.f32.mrb[0].mxu0
        %v1628 = vadd.f32 %v1401, %v1627
        %v1629 = vpop.f32.mrb[0].mxu0
        %v1630 = vadd.f32 %v1403, %v1629
        %1631 = vmatprep.mubr.f32.mxu0 0.0
        %v1632 = vand.u32 %v592, 4294901760
        %1633 = vmatmul.mubr.f32.gmra.mrb[0].mxu0 %v1632
        %v1634 = vpop.f32.mrb[0].mxu0
        %v1635 = vadd.f32 %v1410, %v1634
        %v1636 = vpop.f32.mrb[0].mxu0
        %v1637 = vadd.f32 %v1412, %v1636
        %1638 = vmatprep.mubr.f32.mxu0 0.0
        %v1639 = vand.u32 %v595, 4294901760
        %1640 = vmatmul.mubr.f32.gmra.mrb[0].mxu0 %v1639
        %v1641 = vpop.f32.mrb[0].mxu0
        %v1642 = vadd.f32 %v1419, %v1641
        %v1643 = vpop.f32.mrb[0].mxu0
        %v1644 = vadd.f32 %v1421, %v1643
        %1645 = vmatprep.mubr.f32.mxu0 0.0
        %v1646 = vand.u32 %v598, 4294901760
        %1647 = vmatmul.mubr.f32.gmra.mrb[0].mxu0 %v1646
        %v1648 = vpop.f32.mrb[0].mxu0
        %v1649 = vadd.f32 %v1428, %v1648
        %v1650 = vpop.f32.mrb[0].mxu0
        %v1651 = vadd.f32 %v1430, %v1650
        %1652 = vmatprep.mubr.f32.mxu0 0.0
        %v1653 = vand.u32 %v601, 4294901760
        %1654 = vmatmul.mubr.f32.gmra.mrb[0].mxu0 %v1653
        %v1655 = vpop.f32.mrb[0].mxu0
        %v1656 = vadd.f32 %v1437, %v1655
        %v1657 = vpop.f32.mrb[0].mxu0
        %v1658 = vadd.f32 %v1439, %v1657
        %1659 = vmatprep.mubr.f32.mxu0 0.0
        %v1660 = vand.u32 %v604, 4294901760
        %1661 = vmatmul.mubr.f32.gmra.mrb[0].mxu0 %v1660
        %v1662 = vpop.f32.mrb[0].mxu0
        %v1663 = vadd.f32 %v1446, %v1662
        %v1664 = vpop.f32.mrb[0].mxu0
        %v1665 = vadd.f32 %v1448, %v1664
        %1666 = vmatprep.mubr.f32.mxu0 0.0
        %v1667 = vand.u32 %v607, 4294901760
        %1668 = vmatmul.mubr.f32.gmra.mrb[0].mxu0 %v1667
        %v1669 = vpop.f32.mrb[0].mxu0
        %v1670 = vadd.f32 %v1455, %v1669
        %v1671 = vpop.f32.mrb[0].mxu0
        %v1672 = vadd.f32 %v1457, %v1671
        %1673 = vmatprep.mubr.f32.mxu0 0.0
        %v1674 = vand.u32 %v610, 4294901760
        %1675 = vmatmul.mubr.f32.gmra.mrb[0].mxu0 %v1674
        %v1676 = vpop.f32.mrb[0].mxu0
        %v1677 = vadd.f32 %v1464, %v1676
        %v1678 = vpop.f32.mrb[0].mxu0
        %v1679 = vadd.f32 %v1466, %v1678
        %1680 = vmatprep.mubr.f32.mxu0 0.0
        %v1681 = vand.u32 %v613, 4294901760
        %1682 = vmatmul.mubr.f32.gmra.mrb[0].mxu0 %v1681
        %v1683 = vpop.f32.mrb[0].mxu0
        %v1684 = vadd.f32 %v1473, %v1683
        %v1685 = vpop.f32.mrb[0].mxu0
        %v1686 = vadd.f32 %v1475, %v1685
        %1687 = vmatprep.mubr.f32.mxu0 0.0
        %v1688 = vand.u32 %v616, 4294901760
        %1689 = vmatmul.mubr.f32.gmra.mrb[0].mxu0 %v1688
        %v1690 = vpop.f32.mrb[0].mxu0
        %v1691 = vadd.f32 %v1482, %v1690
        %v1692 = vpop.f32.mrb[0].mxu0
        %v1693 = vadd.f32 %v1484, %v1692
        %1694 = vmatprep.mubr.f32.mxu0 0.0
        %v1695 = vand.u32 %v619, 4294901760
        %1696 = vmatmul.mubr.f32.gmra.mrb[0].mxu0 %v1695
        %v1697 = vpop.f32.mrb[0].mxu0
        %v1698 = vadd.f32 %v1491, %v1697
        %v1699 = vpop.f32.mrb[0].mxu0
        %v1700 = vadd.f32 %v1493, %v1699
        %1701 = vmatprep.mubr.f32.mxu0 0.0
        %v1702 = vand.u32 %v622, 4294901760
        %1703 = vmatmul.mubr.f32.gmra.mrb[0].mxu0 %v1702
        %v1704 = vpop.f32.mrb[0].mxu0
        %v1705 = vadd.f32 %v1500, %v1704
        %v1706 = vpop.f32.mrb[0].mxu0
        %v1707 = vadd.f32 %v1502, %v1706
        %1708 = vmatprep.mubr.f32.mxu0 0.0
        %v1709 = vand.u32 %v625, 4294901760
        %1710 = vmatmul.mubr.f32.gmra.mrb[0].mxu0 %v1709
        %v1711 = vpop.f32.mrb[0].mxu0
        %v1712 = vadd.f32 %v1509, %v1711
        %v1713 = vpop.f32.mrb[0].mxu0
        %v1714 = vadd.f32 %v1511, %v1713
        %1715 = vmatprep.mubr.f32.mxu0 0.0
        %v1716 = vand.u32 %v628, 4294901760
        %1717 = vmatmul.mubr.f32.gmra.mrb[0].mxu0 %v1716
        %v1718 = vpop.f32.mrb[0].mxu0
        %v1719 = vadd.f32 %v1518, %v1718
        %v1720 = vpop.f32.mrb[0].mxu0
        %v1721 = vadd.f32 %v1520, %v1720
        %1722 = vdwg.mxu0
        %v1723 = vand.u32 %v518, 4294901760
        %1724 = vmatprep.subr.mxu0 %v1723
        %v1725 = vand.u32 %v517, 4294901760
        %1726 = vmatpush1.msra.mxu0 %v1725
        %v1727 = vand.u32 %v520, 4294901760
        %1728 = vmatprep.subr.mxu0 %v1727
        %v1729 = vand.u32 %v519, 4294901760
        %1730 = vmatpush1.msra.mxu0 %v1729
        %v1731 = vand.u32 %v522, 4294901760
        %1732 = vmatprep.subr.mxu0 %v1731
        %v1733 = vand.u32 %v521, 4294901760
        %1734 = vmatpush1.msra.mxu0 %v1733
        %v1735 = vand.u32 %v524, 4294901760
        %1736 = vmatprep.subr.mxu0 %v1735
        %v1737 = vand.u32 %v523, 4294901760
        %1738 = vmatpush1.msra.mxu0 %v1737
        %1739 = vmatprep.subr.mxu0 0.0
        %1740 = vmatpush1.msra.mxu0 0.0
        %1741 = vmatprep.subr.mxu0 0.0
        %1742 = vmatpush1.msra.mxu0 0.0
        %1743 = vmatprep.subr.mxu0 0.0
        %1744 = vmatpush1.msra.mxu0 0.0
        %1745 = vmatprep.subr.mxu0 0.0
        %1746 = vmatpush1.msra.mxu0 0.0
        %1747 = vmatprep.subr.mxu0 0.0
        %1748 = vmatpush1.msra.mxu0 0.0
        %1749 = vmatprep.subr.mxu0 0.0
        %1750 = vmatpush1.msra.mxu0 0.0
        %1751 = vmatprep.subr.mxu0 0.0
        %1752 = vmatpush1.msra.mxu0 0.0
        %1753 = vmatprep.subr.mxu0 0.0
        %1754 = vmatpush1.msra.mxu0 0.0
        %1755 = vmatprep.subr.mxu0 0.0
        %1756 = vmatpush1.msra.mxu0 0.0
        %1757 = vmatprep.subr.mxu0 0.0
        %1758 = vmatpush1.msra.mxu0 0.0
        %1759 = vmatprep.subr.mxu0 0.0
        %1760 = vmatpush1.msra.mxu0 0.0
        %1761 = vmatprep.subr.mxu0 0.0
        %1762 = vmatpush1.msra.mxu0 0.0
        %1763 = vmatprep.subr.mxu0 0.0
        %1764 = vmatpush1.msra.mxu0 0.0
        %1765 = vmatprep.subr.mxu0 0.0
        %1766 = vmatpush1.msra.mxu0 0.0
        %1767 = vmatprep.subr.mxu0 0.0
        %1768 = vmatpush1.msra.mxu0 0.0
        %1769 = vmatprep.subr.mxu0 0.0
        %1770 = vmatpush1.msra.mxu0 0.0
        %1771 = vmatprep.subr.mxu0 0.0
        %1772 = vmatpush1.msra.mxu0 0.0
        %1773 = vmatprep.subr.mxu0 0.0
        %1774 = vmatpush1.msra.mxu0 0.0
        %1775 = vmatprep.subr.mxu0 0.0
        %1776 = vmatpush1.msra.mxu0 0.0
        %1777 = vmatprep.subr.mxu0 0.0
        %1778 = vmatpush1.msra.mxu0 0.0
        %1779 = vmatprep.subr.mxu0 0.0
        %1780 = vmatpush1.msra.mxu0 0.0
        %1781 = vmatprep.subr.mxu0 0.0
        %1782 = vmatpush1.msra.mxu0 0.0
        %1783 = vmatprep.subr.mxu0 0.0
        %1784 = vmatpush1.msra.mxu0 0.0
        %1785 = vmatprep.subr.mxu0 0.0
        %1786 = vmatpush1.msra.mxu0 0.0
        %1787 = vmatprep.subr.mxu0 0.0
        %1788 = vmatpush1.msra.mxu0 0.0
        %1789 = vmatprep.subr.mxu0 0.0
        %1790 = vmatpush1.msra.mxu0 0.0
        %1791 = vmatprep.subr.mxu0 0.0
        %1792 = vmatpush1.msra.mxu0 0.0
        %1793 = vmatprep.subr.mxu0 0.0
        %1794 = vmatpush1.msra.mxu0 0.0
        %1795 = vmatprep.mubr.f32.mxu0 0.0
        %v1796 = vand.u32 %v583, 4294901760
        %1797 = vmatmul.mubr.f32.gmra.mrb[0].mxu0 %v1796
        %v1798 = vpop.f32.mrb[0].mxu0
        %v1799 = vadd.f32 %v1614, %v1798
        %v1800 = vpop.f32.mrb[0].mxu0
        %v1801 = vadd.f32 %v1616, %v1800
        %1802 = vmatprep.mubr.f32.mxu0 0.0
        %v1803 = vand.u32 %v586, 4294901760
        %1804 = vmatmul.mubr.f32.gmra.mrb[0].mxu0 %v1803
        %v1805 = vpop.f32.mrb[0].mxu0
        %v1806 = vadd.f32 %v1621, %v1805
        %v1807 = vpop.f32.mrb[0].mxu0
        %v1808 = vadd.f32 %v1623, %v1807
        %1809 = vmatprep.mubr.f32.mxu0 0.0
        %v1810 = vand.u32 %v589, 4294901760
        %1811 = vmatmul.mubr.f32.gmra.mrb[0].mxu0 %v1810
        %v1812 = vpop.f32.mrb[0].mxu0
        %v1813 = vadd.f32 %v1628, %v1812
        %v1814 = vpop.f32.mrb[0].mxu0
        %v1815 = vadd.f32 %v1630, %v1814
        %1816 = vmatprep.mubr.f32.mxu0 0.0
        %v1817 = vand.u32 %v592, 4294901760
        %1818 = vmatmul.mubr.f32.gmra.mrb[0].mxu0 %v1817
        %v1819 = vpop.f32.mrb[0].mxu0
        %v1820 = vadd.f32 %v1635, %v1819
        %v1821 = vpop.f32.mrb[0].mxu0
        %v1822 = vadd.f32 %v1637, %v1821
        %1823 = vmatprep.mubr.f32.mxu0 0.0
        %v1824 = vand.u32 %v595, 4294901760
        %1825 = vmatmul.mubr.f32.gmra.mrb[0].mxu0 %v1824
        %v1826 = vpop.f32.mrb[0].mxu0
        %v1827 = vadd.f32 %v1642, %v1826
        %v1828 = vpop.f32.mrb[0].mxu0
        %v1829 = vadd.f32 %v1644, %v1828
        %1830 = vmatprep.mubr.f32.mxu0 0.0
        %v1831 = vand.u32 %v598, 4294901760
        %1832 = vmatmul.mubr.f32.gmra.mrb[0].mxu0 %v1831
        %v1833 = vpop.f32.mrb[0].mxu0
        %v1834 = vadd.f32 %v1649, %v1833
        %v1835 = vpop.f32.mrb[0].mxu0
        %v1836 = vadd.f32 %v1651, %v1835
        %1837 = vmatprep.mubr.f32.mxu0 0.0
        %v1838 = vand.u32 %v601, 4294901760
        %1839 = vmatmul.mubr.f32.gmra.mrb[0].mxu0 %v1838
        %v1840 = vpop.f32.mrb[0].mxu0
        %v1841 = vadd.f32 %v1656, %v1840
        %v1842 = vpop.f32.mrb[0].mxu0
        %v1843 = vadd.f32 %v1658, %v1842
        %1844 = vmatprep.mubr.f32.mxu0 0.0
        %v1845 = vand.u32 %v604, 4294901760
        %1846 = vmatmul.mubr.f32.gmra.mrb[0].mxu0 %v1845
        %v1847 = vpop.f32.mrb[0].mxu0
        %v1848 = vadd.f32 %v1663, %v1847
        %v1849 = vpop.f32.mrb[0].mxu0
        %v1850 = vadd.f32 %v1665, %v1849
        %1851 = vmatprep.mubr.f32.mxu0 0.0
        %v1852 = vand.u32 %v607, 4294901760
        %1853 = vmatmul.mubr.f32.gmra.mrb[0].mxu0 %v1852
        %v1854 = vpop.f32.mrb[0].mxu0
        %v1855 = vadd.f32 %v1670, %v1854
        %v1856 = vpop.f32.mrb[0].mxu0
        %v1857 = vadd.f32 %v1672, %v1856
        %1858 = vmatprep.mubr.f32.mxu0 0.0
        %v1859 = vand.u32 %v610, 4294901760
        %1860 = vmatmul.mubr.f32.gmra.mrb[0].mxu0 %v1859
        %v1861 = vpop.f32.mrb[0].mxu0
        %v1862 = vadd.f32 %v1677, %v1861
        %v1863 = vpop.f32.mrb[0].mxu0
        %v1864 = vadd.f32 %v1679, %v1863
        %1865 = vmatprep.mubr.f32.mxu0 0.0
        %v1866 = vand.u32 %v613, 4294901760
        %1867 = vmatmul.mubr.f32.gmra.mrb[0].mxu0 %v1866
        %v1868 = vpop.f32.mrb[0].mxu0
        %v1869 = vadd.f32 %v1684, %v1868
        %v1870 = vpop.f32.mrb[0].mxu0
        %v1871 = vadd.f32 %v1686, %v1870
        %1872 = vmatprep.mubr.f32.mxu0 0.0
        %v1873 = vand.u32 %v616, 4294901760
        %1874 = vmatmul.mubr.f32.gmra.mrb[0].mxu0 %v1873
        %v1875 = vpop.f32.mrb[0].mxu0
        %v1876 = vadd.f32 %v1691, %v1875
        %v1877 = vpop.f32.mrb[0].mxu0
        %v1878 = vadd.f32 %v1693, %v1877
        %1879 = vmatprep.mubr.f32.mxu0 0.0
        %v1880 = vand.u32 %v619, 4294901760
        %1881 = vmatmul.mubr.f32.gmra.mrb[0].mxu0 %v1880
        %v1882 = vpop.f32.mrb[0].mxu0
        %v1883 = vadd.f32 %v1698, %v1882
        %v1884 = vpop.f32.mrb[0].mxu0
        %v1885 = vadd.f32 %v1700, %v1884
        %1886 = vmatprep.mubr.f32.mxu0 0.0
        %v1887 = vand.u32 %v622, 4294901760
        %1888 = vmatmul.mubr.f32.gmra.mrb[0].mxu0 %v1887
        %v1889 = vpop.f32.mrb[0].mxu0
        %v1890 = vadd.f32 %v1705, %v1889
        %v1891 = vpop.f32.mrb[0].mxu0
        %v1892 = vadd.f32 %v1707, %v1891
        %1893 = vmatprep.mubr.f32.mxu0 0.0
        %v1894 = vand.u32 %v625, 4294901760
        %1895 = vmatmul.mubr.f32.gmra.mrb[0].mxu0 %v1894
        %v1896 = vpop.f32.mrb[0].mxu0
        %v1897 = vadd.f32 %v1712, %v1896
        %v1898 = vpop.f32.mrb[0].mxu0
        %v1899 = vadd.f32 %v1714, %v1898
        %1900 = vmatprep.mubr.f32.mxu0 0.0
        %v1901 = vand.u32 %v628, 4294901760
        %1902 = vmatmul.mubr.f32.gmra.mrb[0].mxu0 %v1901
        %v1903 = vpop.f32.mrb[0].mxu0
        %v1904 = vadd.f32 %v1719, %v1903
        %v1905 = vpop.f32.mrb[0].mxu0
        %v1906 = vadd.f32 %v1721, %v1905
        %1907 = vdwg.mxu0
        %v1908 = vadd.f32 %v469, %v1799
        %v1909 = vadd.f32 %v470, %v1801
        %v1910 = vadd.f32 %v471, %v1806
        %v1911 = vadd.f32 %v472, %v1808
        %v1912 = vadd.f32 %v473, %v1813
        %v1913 = vadd.f32 %v474, %v1815
        %v1914 = vadd.f32 %v475, %v1820
        %v1915 = vadd.f32 %v476, %v1822
        %v1916 = vadd.f32 %v477, %v1827
        %v1917 = vadd.f32 %v478, %v1829
        %v1918 = vadd.f32 %v479, %v1834
        %v1919 = vadd.f32 %v480, %v1836
        %v1920 = vadd.f32 %v481, %v1841
        %v1921 = vadd.f32 %v482, %v1843
        %v1922 = vadd.f32 %v483, %v1848
        %v1923 = vadd.f32 %v484, %v1850
        %v1924 = vadd.f32 %v485, %v1855
        %v1925 = vadd.f32 %v486, %v1857
        %v1926 = vadd.f32 %v487, %v1862
        %v1927 = vadd.f32 %v488, %v1864
        %v1928 = vadd.f32 %v489, %v1869
        %v1929 = vadd.f32 %v490, %v1871
        %v1930 = vadd.f32 %v491, %v1876
        %v1931 = vadd.f32 %v492, %v1878
        %v1932 = vadd.f32 %v493, %v1883
        %v1933 = vadd.f32 %v494, %v1885
        %v1934 = vadd.f32 %v495, %v1890
        %v1935 = vadd.f32 %v496, %v1892
        %v1936 = vadd.f32 %v497, %v1897
        %v1937 = vadd.f32 %v498, %v1899
        %v1938 = vadd.f32 %v499, %v1904
        %v1939 = vadd.f32 %v500, %v1906
        %v1941 = vsel %vm581, %v549, 0
        %v1944 = vsel %vm581, %v550, 0
        %v1947 = vsel %vm581, %v551, 0
        %v1950 = vsel %vm581, %v552, 0
        %v1953 = vsel %vm581, %v553, 0
        %v1956 = vsel %vm581, %v554, 0
        %v1959 = vsel %vm581, %v555, 0
        %v1962 = vsel %vm581, %v556, 0
        %v1965 = vsel %vm581, %v557, 0
        %v1968 = vsel %vm581, %v558, 0
        %v1971 = vsel %vm581, %v559, 0
        %v1974 = vsel %vm581, %v560, 0
        %v1977 = vsel %vm581, %v561, 0
        %v1980 = vsel %vm581, %v562, 0
        %v1983 = vsel %vm581, %v563, 0
        %v1986 = vsel %vm581, %v564, 0
        %v1988 = vand.u32 %v526, 4294901760
        %1989 = vmatprep.subr.mxu0 %v1988
        %v1990 = vand.u32 %v525, 4294901760
        %1991 = vmatpush1.msra.mxu0 %v1990
        %v1992 = vand.u32 %v528, 4294901760
        %1993 = vmatprep.subr.mxu0 %v1992
        %v1994 = vand.u32 %v527, 4294901760
        %1995 = vmatpush1.msra.mxu0 %v1994
        %v1996 = vand.u32 %v530, 4294901760
        %1997 = vmatprep.subr.mxu0 %v1996
        %v1998 = vand.u32 %v529, 4294901760
        %1999 = vmatpush1.msra.mxu0 %v1998
        %v2000 = vand.u32 %v532, 4294901760
        %2001 = vmatprep.subr.mxu0 %v2000
        %v2002 = vand.u32 %v531, 4294901760
        %2003 = vmatpush1.msra.mxu0 %v2002
        %2004 = vmatprep.subr.mxu0 0.0
        %2005 = vmatpush1.msra.mxu0 0.0
        %2006 = vmatprep.subr.mxu0 0.0
        %2007 = vmatpush1.msra.mxu0 0.0
        %2008 = vmatprep.subr.mxu0 0.0
        %2009 = vmatpush1.msra.mxu0 0.0
        %2010 = vmatprep.subr.mxu0 0.0
        %2011 = vmatpush1.msra.mxu0 0.0
        %2012 = vmatprep.subr.mxu0 0.0
        %2013 = vmatpush1.msra.mxu0 0.0
        %2014 = vmatprep.subr.mxu0 0.0
        %2015 = vmatpush1.msra.mxu0 0.0
        %2016 = vmatprep.subr.mxu0 0.0
        %2017 = vmatpush1.msra.mxu0 0.0
        %2018 = vmatprep.subr.mxu0 0.0
        %2019 = vmatpush1.msra.mxu0 0.0
        %2020 = vmatprep.subr.mxu0 0.0
        %2021 = vmatpush1.msra.mxu0 0.0
        %2022 = vmatprep.subr.mxu0 0.0
        %2023 = vmatpush1.msra.mxu0 0.0
        %2024 = vmatprep.subr.mxu0 0.0
        %2025 = vmatpush1.msra.mxu0 0.0
        %2026 = vmatprep.subr.mxu0 0.0
        %2027 = vmatpush1.msra.mxu0 0.0
        %2028 = vmatprep.subr.mxu0 0.0
        %2029 = vmatpush1.msra.mxu0 0.0
        %2030 = vmatprep.subr.mxu0 0.0
        %2031 = vmatpush1.msra.mxu0 0.0
        %2032 = vmatprep.subr.mxu0 0.0
        %2033 = vmatpush1.msra.mxu0 0.0
        %2034 = vmatprep.subr.mxu0 0.0
        %2035 = vmatpush1.msra.mxu0 0.0
        %2036 = vmatprep.subr.mxu0 0.0
        %2037 = vmatpush1.msra.mxu0 0.0
        %2038 = vmatprep.subr.mxu0 0.0
        %2039 = vmatpush1.msra.mxu0 0.0
        %2040 = vmatprep.subr.mxu0 0.0
        %2041 = vmatpush1.msra.mxu0 0.0
        %2042 = vmatprep.subr.mxu0 0.0
        %2043 = vmatpush1.msra.mxu0 0.0
        %2044 = vmatprep.subr.mxu0 0.0
        %2045 = vmatpush1.msra.mxu0 0.0
        %2046 = vmatprep.subr.mxu0 0.0
        %2047 = vmatpush1.msra.mxu0 0.0
        %2048 = vmatprep.subr.mxu0 0.0
        %2049 = vmatpush1.msra.mxu0 0.0
        %2050 = vmatprep.subr.mxu0 0.0
        %2051 = vmatpush1.msra.mxu0 0.0
        %2052 = vmatprep.subr.mxu0 0.0
        %2053 = vmatpush1.msra.mxu0 0.0
        %2054 = vmatprep.subr.mxu0 0.0
        %2055 = vmatpush1.msra.mxu0 0.0
        %2056 = vmatprep.subr.mxu0 0.0
        %2057 = vmatpush1.msra.mxu0 0.0
        %2058 = vmatprep.subr.mxu0 0.0
        %2059 = vmatpush1.msra.mxu0 0.0
        %2060 = vmatprep.mubr.f32.mxu0 0.0
        %v2061 = vand.u32 %v1941, 4294901760
        %v2062 = vsub.f32 %v1941, %v2061
        %v2063 = vand.u32 %v2062, 4294901760
        %v2064 = vsub.f32 %v2062, %v2063
        %v2065 = vand.u32 %v2064, 4294901760
        %2066 = vmatmul.mubr.f32.gmra.mrb[0].mxu0 %v2065
        %v2067 = vpop.f32.mrb[0].mxu0
        %v2068 = vadd.f32 0.0, %v2067
        %v2069 = vpop.f32.mrb[0].mxu0
        %v2070 = vadd.f32 0.0, %v2069
        %2071 = vmatprep.mubr.f32.mxu0 0.0
        %v2072 = vand.u32 %v1944, 4294901760
        %v2073 = vsub.f32 %v1944, %v2072
        %v2074 = vand.u32 %v2073, 4294901760
        %v2075 = vsub.f32 %v2073, %v2074
        %v2076 = vand.u32 %v2075, 4294901760
        %2077 = vmatmul.mubr.f32.gmra.mrb[0].mxu0 %v2076
        %v2078 = vpop.f32.mrb[0].mxu0
        %v2079 = vadd.f32 0.0, %v2078
        %v2080 = vpop.f32.mrb[0].mxu0
        %v2081 = vadd.f32 0.0, %v2080
        %2082 = vmatprep.mubr.f32.mxu0 0.0
        %v2083 = vand.u32 %v1947, 4294901760
        %v2084 = vsub.f32 %v1947, %v2083
        %v2085 = vand.u32 %v2084, 4294901760
        %v2086 = vsub.f32 %v2084, %v2085
        %v2087 = vand.u32 %v2086, 4294901760
        %2088 = vmatmul.mubr.f32.gmra.mrb[0].mxu0 %v2087
        %v2089 = vpop.f32.mrb[0].mxu0
        %v2090 = vadd.f32 0.0, %v2089
        %v2091 = vpop.f32.mrb[0].mxu0
        %v2092 = vadd.f32 0.0, %v2091
        %2093 = vmatprep.mubr.f32.mxu0 0.0
        %v2094 = vand.u32 %v1950, 4294901760
        %v2095 = vsub.f32 %v1950, %v2094
        %v2096 = vand.u32 %v2095, 4294901760
        %v2097 = vsub.f32 %v2095, %v2096
        %v2098 = vand.u32 %v2097, 4294901760
        %2099 = vmatmul.mubr.f32.gmra.mrb[0].mxu0 %v2098
        %v2100 = vpop.f32.mrb[0].mxu0
        %v2101 = vadd.f32 0.0, %v2100
        %v2102 = vpop.f32.mrb[0].mxu0
        %v2103 = vadd.f32 0.0, %v2102
        %2104 = vmatprep.mubr.f32.mxu0 0.0
        %v2105 = vand.u32 %v1953, 4294901760
        %v2106 = vsub.f32 %v1953, %v2105
        %v2107 = vand.u32 %v2106, 4294901760
        %v2108 = vsub.f32 %v2106, %v2107
        %v2109 = vand.u32 %v2108, 4294901760
        %2110 = vmatmul.mubr.f32.gmra.mrb[0].mxu0 %v2109
        %v2111 = vpop.f32.mrb[0].mxu0
        %v2112 = vadd.f32 0.0, %v2111
        %v2113 = vpop.f32.mrb[0].mxu0
        %v2114 = vadd.f32 0.0, %v2113
        %2115 = vmatprep.mubr.f32.mxu0 0.0
        %v2116 = vand.u32 %v1956, 4294901760
        %v2117 = vsub.f32 %v1956, %v2116
        %v2118 = vand.u32 %v2117, 4294901760
        %v2119 = vsub.f32 %v2117, %v2118
        %v2120 = vand.u32 %v2119, 4294901760
        %2121 = vmatmul.mubr.f32.gmra.mrb[0].mxu0 %v2120
        %v2122 = vpop.f32.mrb[0].mxu0
        %v2123 = vadd.f32 0.0, %v2122
        %v2124 = vpop.f32.mrb[0].mxu0
        %v2125 = vadd.f32 0.0, %v2124
        %2126 = vmatprep.mubr.f32.mxu0 0.0
        %v2127 = vand.u32 %v1959, 4294901760
        %v2128 = vsub.f32 %v1959, %v2127
        %v2129 = vand.u32 %v2128, 4294901760
        %v2130 = vsub.f32 %v2128, %v2129
        %v2131 = vand.u32 %v2130, 4294901760
        %2132 = vmatmul.mubr.f32.gmra.mrb[0].mxu0 %v2131
        %v2133 = vpop.f32.mrb[0].mxu0
        %v2134 = vadd.f32 0.0, %v2133
        %v2135 = vpop.f32.mrb[0].mxu0
        %v2136 = vadd.f32 0.0, %v2135
        %2137 = vmatprep.mubr.f32.mxu0 0.0
        %v2138 = vand.u32 %v1962, 4294901760
        %v2139 = vsub.f32 %v1962, %v2138
        %v2140 = vand.u32 %v2139, 4294901760
        %v2141 = vsub.f32 %v2139, %v2140
        %v2142 = vand.u32 %v2141, 4294901760
        %2143 = vmatmul.mubr.f32.gmra.mrb[0].mxu0 %v2142
        %v2144 = vpop.f32.mrb[0].mxu0
        %v2145 = vadd.f32 0.0, %v2144
        %v2146 = vpop.f32.mrb[0].mxu0
        %v2147 = vadd.f32 0.0, %v2146
        %2148 = vmatprep.mubr.f32.mxu0 0.0
        %v2149 = vand.u32 %v1965, 4294901760
        %v2150 = vsub.f32 %v1965, %v2149
        %v2151 = vand.u32 %v2150, 4294901760
        %v2152 = vsub.f32 %v2150, %v2151
        %v2153 = vand.u32 %v2152, 4294901760
        %2154 = vmatmul.mubr.f32.gmra.mrb[0].mxu0 %v2153
        %v2155 = vpop.f32.mrb[0].mxu0
        %v2156 = vadd.f32 0.0, %v2155
        %v2157 = vpop.f32.mrb[0].mxu0
        %v2158 = vadd.f32 0.0, %v2157
        %2159 = vmatprep.mubr.f32.mxu0 0.0
        %v2160 = vand.u32 %v1968, 4294901760
        %v2161 = vsub.f32 %v1968, %v2160
        %v2162 = vand.u32 %v2161, 4294901760
        %v2163 = vsub.f32 %v2161, %v2162
        %v2164 = vand.u32 %v2163, 4294901760
        %2165 = vmatmul.mubr.f32.gmra.mrb[0].mxu0 %v2164
        %v2166 = vpop.f32.mrb[0].mxu0
        %v2167 = vadd.f32 0.0, %v2166
        %v2168 = vpop.f32.mrb[0].mxu0
        %v2169 = vadd.f32 0.0, %v2168
        %2170 = vmatprep.mubr.f32.mxu0 0.0
        %v2171 = vand.u32 %v1971, 4294901760
        %v2172 = vsub.f32 %v1971, %v2171
        %v2173 = vand.u32 %v2172, 4294901760
        %v2174 = vsub.f32 %v2172, %v2173
        %v2175 = vand.u32 %v2174, 4294901760
        %2176 = vmatmul.mubr.f32.gmra.mrb[0].mxu0 %v2175
        %v2177 = vpop.f32.mrb[0].mxu0
        %v2178 = vadd.f32 0.0, %v2177
        %v2179 = vpop.f32.mrb[0].mxu0
        %v2180 = vadd.f32 0.0, %v2179
        %2181 = vmatprep.mubr.f32.mxu0 0.0
        %v2182 = vand.u32 %v1974, 4294901760
        %v2183 = vsub.f32 %v1974, %v2182
        %v2184 = vand.u32 %v2183, 4294901760
        %v2185 = vsub.f32 %v2183, %v2184
        %v2186 = vand.u32 %v2185, 4294901760
        %2187 = vmatmul.mubr.f32.gmra.mrb[0].mxu0 %v2186
        %v2188 = vpop.f32.mrb[0].mxu0
        %v2189 = vadd.f32 0.0, %v2188
        %v2190 = vpop.f32.mrb[0].mxu0
        %v2191 = vadd.f32 0.0, %v2190
        %2192 = vmatprep.mubr.f32.mxu0 0.0
        %v2193 = vand.u32 %v1977, 4294901760
        %v2194 = vsub.f32 %v1977, %v2193
        %v2195 = vand.u32 %v2194, 4294901760
        %v2196 = vsub.f32 %v2194, %v2195
        %v2197 = vand.u32 %v2196, 4294901760
        %2198 = vmatmul.mubr.f32.gmra.mrb[0].mxu0 %v2197
        %v2199 = vpop.f32.mrb[0].mxu0
        %v2200 = vadd.f32 0.0, %v2199
        %v2201 = vpop.f32.mrb[0].mxu0
        %v2202 = vadd.f32 0.0, %v2201
        %2203 = vmatprep.mubr.f32.mxu0 0.0
        %v2204 = vand.u32 %v1980, 4294901760
        %v2205 = vsub.f32 %v1980, %v2204
        %v2206 = vand.u32 %v2205, 4294901760
        %v2207 = vsub.f32 %v2205, %v2206
        %v2208 = vand.u32 %v2207, 4294901760
        %2209 = vmatmul.mubr.f32.gmra.mrb[0].mxu0 %v2208
        %v2210 = vpop.f32.mrb[0].mxu0
        %v2211 = vadd.f32 0.0, %v2210
        %v2212 = vpop.f32.mrb[0].mxu0
        %v2213 = vadd.f32 0.0, %v2212
        %2214 = vmatprep.mubr.f32.mxu0 0.0
        %v2215 = vand.u32 %v1983, 4294901760
        %v2216 = vsub.f32 %v1983, %v2215
        %v2217 = vand.u32 %v2216, 4294901760
        %v2218 = vsub.f32 %v2216, %v2217
        %v2219 = vand.u32 %v2218, 4294901760
        %2220 = vmatmul.mubr.f32.gmra.mrb[0].mxu0 %v2219
        %v2221 = vpop.f32.mrb[0].mxu0
        %v2222 = vadd.f32 0.0, %v2221
        %v2223 = vpop.f32.mrb[0].mxu0
        %v2224 = vadd.f32 0.0, %v2223
        %2225 = vmatprep.mubr.f32.mxu0 0.0
        %v2226 = vand.u32 %v1986, 4294901760
        %v2227 = vsub.f32 %v1986, %v2226
        %v2228 = vand.u32 %v2227, 4294901760
        %v2229 = vsub.f32 %v2227, %v2228
        %v2230 = vand.u32 %v2229, 4294901760
        %2231 = vmatmul.mubr.f32.gmra.mrb[0].mxu0 %v2230
        %v2232 = vpop.f32.mrb[0].mxu0
        %v2233 = vadd.f32 0.0, %v2232
        %v2234 = vpop.f32.mrb[0].mxu0
        %v2235 = vadd.f32 0.0, %v2234
        %2236 = vdwg.mxu0
        %v2237 = vand.u32 %v526, 4294901760
        %v2238 = vsub.f32 %v526, %v2237
        %v2239 = vand.u32 %v2238, 4294901760
        %v2240 = vsub.f32 %v2238, %v2239
        %v2241 = vand.u32 %v2240, 4294901760
        %2242 = vmatprep.subr.mxu0 %v2241
        %v2243 = vand.u32 %v525, 4294901760
        %v2244 = vsub.f32 %v525, %v2243
        %v2245 = vand.u32 %v2244, 4294901760
        %v2246 = vsub.f32 %v2244, %v2245
        %v2247 = vand.u32 %v2246, 4294901760
        %2248 = vmatpush1.msra.mxu0 %v2247
        %v2249 = vand.u32 %v528, 4294901760
        %v2250 = vsub.f32 %v528, %v2249
        %v2251 = vand.u32 %v2250, 4294901760
        %v2252 = vsub.f32 %v2250, %v2251
        %v2253 = vand.u32 %v2252, 4294901760
        %2254 = vmatprep.subr.mxu0 %v2253
        %v2255 = vand.u32 %v527, 4294901760
        %v2256 = vsub.f32 %v527, %v2255
        %v2257 = vand.u32 %v2256, 4294901760
        %v2258 = vsub.f32 %v2256, %v2257
        %v2259 = vand.u32 %v2258, 4294901760
        %2260 = vmatpush1.msra.mxu0 %v2259
        %v2261 = vand.u32 %v530, 4294901760
        %v2262 = vsub.f32 %v530, %v2261
        %v2263 = vand.u32 %v2262, 4294901760
        %v2264 = vsub.f32 %v2262, %v2263
        %v2265 = vand.u32 %v2264, 4294901760
        %2266 = vmatprep.subr.mxu0 %v2265
        %v2267 = vand.u32 %v529, 4294901760
        %v2268 = vsub.f32 %v529, %v2267
        %v2269 = vand.u32 %v2268, 4294901760
        %v2270 = vsub.f32 %v2268, %v2269
        %v2271 = vand.u32 %v2270, 4294901760
        %2272 = vmatpush1.msra.mxu0 %v2271
        %v2273 = vand.u32 %v532, 4294901760
        %v2274 = vsub.f32 %v532, %v2273
        %v2275 = vand.u32 %v2274, 4294901760
        %v2276 = vsub.f32 %v2274, %v2275
        %v2277 = vand.u32 %v2276, 4294901760
        %2278 = vmatprep.subr.mxu0 %v2277
        %v2279 = vand.u32 %v531, 4294901760
        %v2280 = vsub.f32 %v531, %v2279
        %v2281 = vand.u32 %v2280, 4294901760
        %v2282 = vsub.f32 %v2280, %v2281
        %v2283 = vand.u32 %v2282, 4294901760
        %2284 = vmatpush1.msra.mxu0 %v2283
        %2285 = vmatprep.subr.mxu0 0.0
        %2286 = vmatpush1.msra.mxu0 0.0
        %2287 = vmatprep.subr.mxu0 0.0
        %2288 = vmatpush1.msra.mxu0 0.0
        %2289 = vmatprep.subr.mxu0 0.0
        %2290 = vmatpush1.msra.mxu0 0.0
        %2291 = vmatprep.subr.mxu0 0.0
        %2292 = vmatpush1.msra.mxu0 0.0
        %2293 = vmatprep.subr.mxu0 0.0
        %2294 = vmatpush1.msra.mxu0 0.0
        %2295 = vmatprep.subr.mxu0 0.0
        %2296 = vmatpush1.msra.mxu0 0.0
        %2297 = vmatprep.subr.mxu0 0.0
        %2298 = vmatpush1.msra.mxu0 0.0
        %2299 = vmatprep.subr.mxu0 0.0
        %2300 = vmatpush1.msra.mxu0 0.0
        %2301 = vmatprep.subr.mxu0 0.0
        %2302 = vmatpush1.msra.mxu0 0.0
        %2303 = vmatprep.subr.mxu0 0.0
        %2304 = vmatpush1.msra.mxu0 0.0
        %2305 = vmatprep.subr.mxu0 0.0
        %2306 = vmatpush1.msra.mxu0 0.0
        %2307 = vmatprep.subr.mxu0 0.0
        %2308 = vmatpush1.msra.mxu0 0.0
        %2309 = vmatprep.subr.mxu0 0.0
        %2310 = vmatpush1.msra.mxu0 0.0
        %2311 = vmatprep.subr.mxu0 0.0
        %2312 = vmatpush1.msra.mxu0 0.0
        %2313 = vmatprep.subr.mxu0 0.0
        %2314 = vmatpush1.msra.mxu0 0.0
        %2315 = vmatprep.subr.mxu0 0.0
        %2316 = vmatpush1.msra.mxu0 0.0
        %2317 = vmatprep.subr.mxu0 0.0
        %2318 = vmatpush1.msra.mxu0 0.0
        %2319 = vmatprep.subr.mxu0 0.0
        %2320 = vmatpush1.msra.mxu0 0.0
        %2321 = vmatprep.subr.mxu0 0.0
        %2322 = vmatpush1.msra.mxu0 0.0
        %2323 = vmatprep.subr.mxu0 0.0
        %2324 = vmatpush1.msra.mxu0 0.0
        %2325 = vmatprep.subr.mxu0 0.0
        %2326 = vmatpush1.msra.mxu0 0.0
        %2327 = vmatprep.subr.mxu0 0.0
        %2328 = vmatpush1.msra.mxu0 0.0
        %2329 = vmatprep.subr.mxu0 0.0
        %2330 = vmatpush1.msra.mxu0 0.0
        %2331 = vmatprep.subr.mxu0 0.0
        %2332 = vmatpush1.msra.mxu0 0.0
        %2333 = vmatprep.subr.mxu0 0.0
        %2334 = vmatpush1.msra.mxu0 0.0
        %2335 = vmatprep.subr.mxu0 0.0
        %2336 = vmatpush1.msra.mxu0 0.0
        %2337 = vmatprep.subr.mxu0 0.0
        %2338 = vmatpush1.msra.mxu0 0.0
        %2339 = vmatprep.subr.mxu0 0.0
        %2340 = vmatpush1.msra.mxu0 0.0
        %2341 = vmatprep.mubr.f32.mxu0 0.0
        %v2342 = vand.u32 %v1941, 4294901760
        %2343 = vmatmul.mubr.f32.gmra.mrb[0].mxu0 %v2342
        %v2344 = vpop.f32.mrb[0].mxu0
        %v2345 = vadd.f32 %v2068, %v2344
        %v2346 = vpop.f32.mrb[0].mxu0
        %v2347 = vadd.f32 %v2070, %v2346
        %2348 = vmatprep.mubr.f32.mxu0 0.0
        %v2349 = vand.u32 %v1944, 4294901760
        %2350 = vmatmul.mubr.f32.gmra.mrb[0].mxu0 %v2349
        %v2351 = vpop.f32.mrb[0].mxu0
        %v2352 = vadd.f32 %v2079, %v2351
        %v2353 = vpop.f32.mrb[0].mxu0
        %v2354 = vadd.f32 %v2081, %v2353
        %2355 = vmatprep.mubr.f32.mxu0 0.0
        %v2356 = vand.u32 %v1947, 4294901760
        %2357 = vmatmul.mubr.f32.gmra.mrb[0].mxu0 %v2356
        %v2358 = vpop.f32.mrb[0].mxu0
        %v2359 = vadd.f32 %v2090, %v2358
        %v2360 = vpop.f32.mrb[0].mxu0
        %v2361 = vadd.f32 %v2092, %v2360
        %2362 = vmatprep.mubr.f32.mxu0 0.0
        %v2363 = vand.u32 %v1950, 4294901760
        %2364 = vmatmul.mubr.f32.gmra.mrb[0].mxu0 %v2363
        %v2365 = vpop.f32.mrb[0].mxu0
        %v2366 = vadd.f32 %v2101, %v2365
        %v2367 = vpop.f32.mrb[0].mxu0
        %v2368 = vadd.f32 %v2103, %v2367
        %2369 = vmatprep.mubr.f32.mxu0 0.0
        %v2370 = vand.u32 %v1953, 4294901760
        %2371 = vmatmul.mubr.f32.gmra.mrb[0].mxu0 %v2370
        %v2372 = vpop.f32.mrb[0].mxu0
        %v2373 = vadd.f32 %v2112, %v2372
        %v2374 = vpop.f32.mrb[0].mxu0
        %v2375 = vadd.f32 %v2114, %v2374
        %2376 = vmatprep.mubr.f32.mxu0 0.0
        %v2377 = vand.u32 %v1956, 4294901760
        %2378 = vmatmul.mubr.f32.gmra.mrb[0].mxu0 %v2377
        %v2379 = vpop.f32.mrb[0].mxu0
        %v2380 = vadd.f32 %v2123, %v2379
        %v2381 = vpop.f32.mrb[0].mxu0
        %v2382 = vadd.f32 %v2125, %v2381
        %2383 = vmatprep.mubr.f32.mxu0 0.0
        %v2384 = vand.u32 %v1959, 4294901760
        %2385 = vmatmul.mubr.f32.gmra.mrb[0].mxu0 %v2384
        %v2386 = vpop.f32.mrb[0].mxu0
        %v2387 = vadd.f32 %v2134, %v2386
        %v2388 = vpop.f32.mrb[0].mxu0
        %v2389 = vadd.f32 %v2136, %v2388
        %2390 = vmatprep.mubr.f32.mxu0 0.0
        %v2391 = vand.u32 %v1962, 4294901760
        %2392 = vmatmul.mubr.f32.gmra.mrb[0].mxu0 %v2391
        %v2393 = vpop.f32.mrb[0].mxu0
        %v2394 = vadd.f32 %v2145, %v2393
        %v2395 = vpop.f32.mrb[0].mxu0
        %v2396 = vadd.f32 %v2147, %v2395
        %2397 = vmatprep.mubr.f32.mxu0 0.0
        %v2398 = vand.u32 %v1965, 4294901760
        %2399 = vmatmul.mubr.f32.gmra.mrb[0].mxu0 %v2398
        %v2400 = vpop.f32.mrb[0].mxu0
        %v2401 = vadd.f32 %v2156, %v2400
        %v2402 = vpop.f32.mrb[0].mxu0
        %v2403 = vadd.f32 %v2158, %v2402
        %2404 = vmatprep.mubr.f32.mxu0 0.0
        %v2405 = vand.u32 %v1968, 4294901760
        %2406 = vmatmul.mubr.f32.gmra.mrb[0].mxu0 %v2405
        %v2407 = vpop.f32.mrb[0].mxu0
        %v2408 = vadd.f32 %v2167, %v2407
        %v2409 = vpop.f32.mrb[0].mxu0
        %v2410 = vadd.f32 %v2169, %v2409
        %2411 = vmatprep.mubr.f32.mxu0 0.0
        %v2412 = vand.u32 %v1971, 4294901760
        %2413 = vmatmul.mubr.f32.gmra.mrb[0].mxu0 %v2412
        %v2414 = vpop.f32.mrb[0].mxu0
        %v2415 = vadd.f32 %v2178, %v2414
        %v2416 = vpop.f32.mrb[0].mxu0
        %v2417 = vadd.f32 %v2180, %v2416
        %2418 = vmatprep.mubr.f32.mxu0 0.0
        %v2419 = vand.u32 %v1974, 4294901760
        %2420 = vmatmul.mubr.f32.gmra.mrb[0].mxu0 %v2419
        %v2421 = vpop.f32.mrb[0].mxu0
        %v2422 = vadd.f32 %v2189, %v2421
        %v2423 = vpop.f32.mrb[0].mxu0
        %v2424 = vadd.f32 %v2191, %v2423
        %2425 = vmatprep.mubr.f32.mxu0 0.0
        %v2426 = vand.u32 %v1977, 4294901760
        %2427 = vmatmul.mubr.f32.gmra.mrb[0].mxu0 %v2426
        %v2428 = vpop.f32.mrb[0].mxu0
        %v2429 = vadd.f32 %v2200, %v2428
        %v2430 = vpop.f32.mrb[0].mxu0
        %v2431 = vadd.f32 %v2202, %v2430
        %2432 = vmatprep.mubr.f32.mxu0 0.0
        %v2433 = vand.u32 %v1980, 4294901760
        %2434 = vmatmul.mubr.f32.gmra.mrb[0].mxu0 %v2433
        %v2435 = vpop.f32.mrb[0].mxu0
        %v2436 = vadd.f32 %v2211, %v2435
        %v2437 = vpop.f32.mrb[0].mxu0
        %v2438 = vadd.f32 %v2213, %v2437
        %2439 = vmatprep.mubr.f32.mxu0 0.0
        %v2440 = vand.u32 %v1983, 4294901760
        %2441 = vmatmul.mubr.f32.gmra.mrb[0].mxu0 %v2440
        %v2442 = vpop.f32.mrb[0].mxu0
        %v2443 = vadd.f32 %v2222, %v2442
        %v2444 = vpop.f32.mrb[0].mxu0
        %v2445 = vadd.f32 %v2224, %v2444
        %2446 = vmatprep.mubr.f32.mxu0 0.0
        %v2447 = vand.u32 %v1986, 4294901760
        %2448 = vmatmul.mubr.f32.gmra.mrb[0].mxu0 %v2447
        %v2449 = vpop.f32.mrb[0].mxu0
        %v2450 = vadd.f32 %v2233, %v2449
        %v2451 = vpop.f32.mrb[0].mxu0
        %v2452 = vadd.f32 %v2235, %v2451
        %2453 = vdwg.mxu0
        %v2454 = vand.u32 %v526, 4294901760
        %v2455 = vsub.f32 %v526, %v2454
        %2456 = vmatprep.subr.mxu0 %v2455
        %v2457 = vand.u32 %v525, 4294901760
        %v2458 = vsub.f32 %v525, %v2457
        %2459 = vmatpush1.msra.mxu0 %v2458
        %v2460 = vand.u32 %v528, 4294901760
        %v2461 = vsub.f32 %v528, %v2460
        %2462 = vmatprep.subr.mxu0 %v2461
        %v2463 = vand.u32 %v527, 4294901760
        %v2464 = vsub.f32 %v527, %v2463
        %2465 = vmatpush1.msra.mxu0 %v2464
        %v2466 = vand.u32 %v530, 4294901760
        %v2467 = vsub.f32 %v530, %v2466
        %2468 = vmatprep.subr.mxu0 %v2467
        %v2469 = vand.u32 %v529, 4294901760
        %v2470 = vsub.f32 %v529, %v2469
        %2471 = vmatpush1.msra.mxu0 %v2470
        %v2472 = vand.u32 %v532, 4294901760
        %v2473 = vsub.f32 %v532, %v2472
        %2474 = vmatprep.subr.mxu0 %v2473
        %v2475 = vand.u32 %v531, 4294901760
        %v2476 = vsub.f32 %v531, %v2475
        %2477 = vmatpush1.msra.mxu0 %v2476
        %2478 = vmatprep.subr.mxu0 0.0
        %2479 = vmatpush1.msra.mxu0 0.0
        %2480 = vmatprep.subr.mxu0 0.0
        %2481 = vmatpush1.msra.mxu0 0.0
        %2482 = vmatprep.subr.mxu0 0.0
        %2483 = vmatpush1.msra.mxu0 0.0
        %2484 = vmatprep.subr.mxu0 0.0
        %2485 = vmatpush1.msra.mxu0 0.0
        %2486 = vmatprep.subr.mxu0 0.0
        %2487 = vmatpush1.msra.mxu0 0.0
        %2488 = vmatprep.subr.mxu0 0.0
        %2489 = vmatpush1.msra.mxu0 0.0
        %2490 = vmatprep.subr.mxu0 0.0
        %2491 = vmatpush1.msra.mxu0 0.0
        %2492 = vmatprep.subr.mxu0 0.0
        %2493 = vmatpush1.msra.mxu0 0.0
        %2494 = vmatprep.subr.mxu0 0.0
        %2495 = vmatpush1.msra.mxu0 0.0
        %2496 = vmatprep.subr.mxu0 0.0
        %2497 = vmatpush1.msra.mxu0 0.0
        %2498 = vmatprep.subr.mxu0 0.0
        %2499 = vmatpush1.msra.mxu0 0.0
        %2500 = vmatprep.subr.mxu0 0.0
        %2501 = vmatpush1.msra.mxu0 0.0
        %2502 = vmatprep.subr.mxu0 0.0
        %2503 = vmatpush1.msra.mxu0 0.0
        %2504 = vmatprep.subr.mxu0 0.0
        %2505 = vmatpush1.msra.mxu0 0.0
        %2506 = vmatprep.subr.mxu0 0.0
        %2507 = vmatpush1.msra.mxu0 0.0
        %2508 = vmatprep.subr.mxu0 0.0
        %2509 = vmatpush1.msra.mxu0 0.0
        %2510 = vmatprep.subr.mxu0 0.0
        %2511 = vmatpush1.msra.mxu0 0.0
        %2512 = vmatprep.subr.mxu0 0.0
        %2513 = vmatpush1.msra.mxu0 0.0
        %2514 = vmatprep.subr.mxu0 0.0
        %2515 = vmatpush1.msra.mxu0 0.0
        %2516 = vmatprep.subr.mxu0 0.0
        %2517 = vmatpush1.msra.mxu0 0.0
        %2518 = vmatprep.subr.mxu0 0.0
        %2519 = vmatpush1.msra.mxu0 0.0
        %2520 = vmatprep.subr.mxu0 0.0
        %2521 = vmatpush1.msra.mxu0 0.0
        %2522 = vmatprep.subr.mxu0 0.0
        %2523 = vmatpush1.msra.mxu0 0.0
        %2524 = vmatprep.subr.mxu0 0.0
        %2525 = vmatpush1.msra.mxu0 0.0
        %2526 = vmatprep.subr.mxu0 0.0
        %2527 = vmatpush1.msra.mxu0 0.0
        %2528 = vmatprep.subr.mxu0 0.0
        %2529 = vmatpush1.msra.mxu0 0.0
        %2530 = vmatprep.subr.mxu0 0.0
        %2531 = vmatpush1.msra.mxu0 0.0
        %2532 = vmatprep.subr.mxu0 0.0
        %2533 = vmatpush1.msra.mxu0 0.0
        %2534 = vmatprep.mubr.f32.mxu0 0.0
        %v2535 = vand.u32 %v1941, 4294901760
        %v2536 = vsub.f32 %v1941, %v2535
        %2537 = vmatmul.mubr.f32.gmra.mrb[0].mxu0 %v2536
        %v2538 = vpop.f32.mrb[0].mxu0
        %v2539 = vadd.f32 %v2345, %v2538
        %v2540 = vpop.f32.mrb[0].mxu0
        %v2541 = vadd.f32 %v2347, %v2540
        %2542 = vmatprep.mubr.f32.mxu0 0.0
        %v2543 = vand.u32 %v1944, 4294901760
        %v2544 = vsub.f32 %v1944, %v2543
        %2545 = vmatmul.mubr.f32.gmra.mrb[0].mxu0 %v2544
        %v2546 = vpop.f32.mrb[0].mxu0
        %v2547 = vadd.f32 %v2352, %v2546
        %v2548 = vpop.f32.mrb[0].mxu0
        %v2549 = vadd.f32 %v2354, %v2548
        %2550 = vmatprep.mubr.f32.mxu0 0.0
        %v2551 = vand.u32 %v1947, 4294901760
        %v2552 = vsub.f32 %v1947, %v2551
        %2553 = vmatmul.mubr.f32.gmra.mrb[0].mxu0 %v2552
        %v2554 = vpop.f32.mrb[0].mxu0
        %v2555 = vadd.f32 %v2359, %v2554
        %v2556 = vpop.f32.mrb[0].mxu0
        %v2557 = vadd.f32 %v2361, %v2556
        %2558 = vmatprep.mubr.f32.mxu0 0.0
        %v2559 = vand.u32 %v1950, 4294901760
        %v2560 = vsub.f32 %v1950, %v2559
        %2561 = vmatmul.mubr.f32.gmra.mrb[0].mxu0 %v2560
        %v2562 = vpop.f32.mrb[0].mxu0
        %v2563 = vadd.f32 %v2366, %v2562
        %v2564 = vpop.f32.mrb[0].mxu0
        %v2565 = vadd.f32 %v2368, %v2564
        %2566 = vmatprep.mubr.f32.mxu0 0.0
        %v2567 = vand.u32 %v1953, 4294901760
        %v2568 = vsub.f32 %v1953, %v2567
        %2569 = vmatmul.mubr.f32.gmra.mrb[0].mxu0 %v2568
        %v2570 = vpop.f32.mrb[0].mxu0
        %v2571 = vadd.f32 %v2373, %v2570
        %v2572 = vpop.f32.mrb[0].mxu0
        %v2573 = vadd.f32 %v2375, %v2572
        %2574 = vmatprep.mubr.f32.mxu0 0.0
        %v2575 = vand.u32 %v1956, 4294901760
        %v2576 = vsub.f32 %v1956, %v2575
        %2577 = vmatmul.mubr.f32.gmra.mrb[0].mxu0 %v2576
        %v2578 = vpop.f32.mrb[0].mxu0
        %v2579 = vadd.f32 %v2380, %v2578
        %v2580 = vpop.f32.mrb[0].mxu0
        %v2581 = vadd.f32 %v2382, %v2580
        %2582 = vmatprep.mubr.f32.mxu0 0.0
        %v2583 = vand.u32 %v1959, 4294901760
        %v2584 = vsub.f32 %v1959, %v2583
        %2585 = vmatmul.mubr.f32.gmra.mrb[0].mxu0 %v2584
        %v2586 = vpop.f32.mrb[0].mxu0
        %v2587 = vadd.f32 %v2387, %v2586
        %v2588 = vpop.f32.mrb[0].mxu0
        %v2589 = vadd.f32 %v2389, %v2588
        %2590 = vmatprep.mubr.f32.mxu0 0.0
        %v2591 = vand.u32 %v1962, 4294901760
        %v2592 = vsub.f32 %v1962, %v2591
        %2593 = vmatmul.mubr.f32.gmra.mrb[0].mxu0 %v2592
        %v2594 = vpop.f32.mrb[0].mxu0
        %v2595 = vadd.f32 %v2394, %v2594
        %v2596 = vpop.f32.mrb[0].mxu0
        %v2597 = vadd.f32 %v2396, %v2596
        %2598 = vmatprep.mubr.f32.mxu0 0.0
        %v2599 = vand.u32 %v1965, 4294901760
        %v2600 = vsub.f32 %v1965, %v2599
        %2601 = vmatmul.mubr.f32.gmra.mrb[0].mxu0 %v2600
        %v2602 = vpop.f32.mrb[0].mxu0
        %v2603 = vadd.f32 %v2401, %v2602
        %v2604 = vpop.f32.mrb[0].mxu0
        %v2605 = vadd.f32 %v2403, %v2604
        %2606 = vmatprep.mubr.f32.mxu0 0.0
        %v2607 = vand.u32 %v1968, 4294901760
        %v2608 = vsub.f32 %v1968, %v2607
        %2609 = vmatmul.mubr.f32.gmra.mrb[0].mxu0 %v2608
        %v2610 = vpop.f32.mrb[0].mxu0
        %v2611 = vadd.f32 %v2408, %v2610
        %v2612 = vpop.f32.mrb[0].mxu0
        %v2613 = vadd.f32 %v2410, %v2612
        %2614 = vmatprep.mubr.f32.mxu0 0.0
        %v2615 = vand.u32 %v1971, 4294901760
        %v2616 = vsub.f32 %v1971, %v2615
        %2617 = vmatmul.mubr.f32.gmra.mrb[0].mxu0 %v2616
        %v2618 = vpop.f32.mrb[0].mxu0
        %v2619 = vadd.f32 %v2415, %v2618
        %v2620 = vpop.f32.mrb[0].mxu0
        %v2621 = vadd.f32 %v2417, %v2620
        %2622 = vmatprep.mubr.f32.mxu0 0.0
        %v2623 = vand.u32 %v1974, 4294901760
        %v2624 = vsub.f32 %v1974, %v2623
        %2625 = vmatmul.mubr.f32.gmra.mrb[0].mxu0 %v2624
        %v2626 = vpop.f32.mrb[0].mxu0
        %v2627 = vadd.f32 %v2422, %v2626
        %v2628 = vpop.f32.mrb[0].mxu0
        %v2629 = vadd.f32 %v2424, %v2628
        %2630 = vmatprep.mubr.f32.mxu0 0.0
        %v2631 = vand.u32 %v1977, 4294901760
        %v2632 = vsub.f32 %v1977, %v2631
        %2633 = vmatmul.mubr.f32.gmra.mrb[0].mxu0 %v2632
        %v2634 = vpop.f32.mrb[0].mxu0
        %v2635 = vadd.f32 %v2429, %v2634
        %v2636 = vpop.f32.mrb[0].mxu0
        %v2637 = vadd.f32 %v2431, %v2636
        %2638 = vmatprep.mubr.f32.mxu0 0.0
        %v2639 = vand.u32 %v1980, 4294901760
        %v2640 = vsub.f32 %v1980, %v2639
        %2641 = vmatmul.mubr.f32.gmra.mrb[0].mxu0 %v2640
        %v2642 = vpop.f32.mrb[0].mxu0
        %v2643 = vadd.f32 %v2436, %v2642
        %v2644 = vpop.f32.mrb[0].mxu0
        %v2645 = vadd.f32 %v2438, %v2644
        %2646 = vmatprep.mubr.f32.mxu0 0.0
        %v2647 = vand.u32 %v1983, 4294901760
        %v2648 = vsub.f32 %v1983, %v2647
        %2649 = vmatmul.mubr.f32.gmra.mrb[0].mxu0 %v2648
        %v2650 = vpop.f32.mrb[0].mxu0
        %v2651 = vadd.f32 %v2443, %v2650
        %v2652 = vpop.f32.mrb[0].mxu0
        %v2653 = vadd.f32 %v2445, %v2652
        %2654 = vmatprep.mubr.f32.mxu0 0.0
        %v2655 = vand.u32 %v1986, 4294901760
        %v2656 = vsub.f32 %v1986, %v2655
        %2657 = vmatmul.mubr.f32.gmra.mrb[0].mxu0 %v2656
        %v2658 = vpop.f32.mrb[0].mxu0
        %v2659 = vadd.f32 %v2450, %v2658
        %v2660 = vpop.f32.mrb[0].mxu0
        %v2661 = vadd.f32 %v2452, %v2660
        %2662 = vdwg.mxu0
        %v2663 = vand.u32 %v526, 4294901760
        %2664 = vmatprep.subr.mxu0 %v2663
        %v2665 = vand.u32 %v525, 4294901760
        %2666 = vmatpush1.msra.mxu0 %v2665
        %v2667 = vand.u32 %v528, 4294901760
        %2668 = vmatprep.subr.mxu0 %v2667
        %v2669 = vand.u32 %v527, 4294901760
        %2670 = vmatpush1.msra.mxu0 %v2669
        %v2671 = vand.u32 %v530, 4294901760
        %2672 = vmatprep.subr.mxu0 %v2671
        %v2673 = vand.u32 %v529, 4294901760
        %2674 = vmatpush1.msra.mxu0 %v2673
        %v2675 = vand.u32 %v532, 4294901760
        %2676 = vmatprep.subr.mxu0 %v2675
        %v2677 = vand.u32 %v531, 4294901760
        %2678 = vmatpush1.msra.mxu0 %v2677
        %2679 = vmatprep.subr.mxu0 0.0
        %2680 = vmatpush1.msra.mxu0 0.0
        %2681 = vmatprep.subr.mxu0 0.0
        %2682 = vmatpush1.msra.mxu0 0.0
        %2683 = vmatprep.subr.mxu0 0.0
        %2684 = vmatpush1.msra.mxu0 0.0
        %2685 = vmatprep.subr.mxu0 0.0
        %2686 = vmatpush1.msra.mxu0 0.0
        %2687 = vmatprep.subr.mxu0 0.0
        %2688 = vmatpush1.msra.mxu0 0.0
        %2689 = vmatprep.subr.mxu0 0.0
        %2690 = vmatpush1.msra.mxu0 0.0
        %2691 = vmatprep.subr.mxu0 0.0
        %2692 = vmatpush1.msra.mxu0 0.0
        %2693 = vmatprep.subr.mxu0 0.0
        %2694 = vmatpush1.msra.mxu0 0.0
        %2695 = vmatprep.subr.mxu0 0.0
        %2696 = vmatpush1.msra.mxu0 0.0
        %2697 = vmatprep.subr.mxu0 0.0
        %2698 = vmatpush1.msra.mxu0 0.0
        %2699 = vmatprep.subr.mxu0 0.0
        %2700 = vmatpush1.msra.mxu0 0.0
        %2701 = vmatprep.subr.mxu0 0.0
        %2702 = vmatpush1.msra.mxu0 0.0
        %2703 = vmatprep.subr.mxu0 0.0
        %2704 = vmatpush1.msra.mxu0 0.0
        %2705 = vmatprep.subr.mxu0 0.0
        %2706 = vmatpush1.msra.mxu0 0.0
        %2707 = vmatprep.subr.mxu0 0.0
        %2708 = vmatpush1.msra.mxu0 0.0
        %2709 = vmatprep.subr.mxu0 0.0
        %2710 = vmatpush1.msra.mxu0 0.0
        %2711 = vmatprep.subr.mxu0 0.0
        %2712 = vmatpush1.msra.mxu0 0.0
        %2713 = vmatprep.subr.mxu0 0.0
        %2714 = vmatpush1.msra.mxu0 0.0
        %2715 = vmatprep.subr.mxu0 0.0
        %2716 = vmatpush1.msra.mxu0 0.0
        %2717 = vmatprep.subr.mxu0 0.0
        %2718 = vmatpush1.msra.mxu0 0.0
        %2719 = vmatprep.subr.mxu0 0.0
        %2720 = vmatpush1.msra.mxu0 0.0
        %2721 = vmatprep.subr.mxu0 0.0
        %2722 = vmatpush1.msra.mxu0 0.0
        %2723 = vmatprep.subr.mxu0 0.0
        %2724 = vmatpush1.msra.mxu0 0.0
        %2725 = vmatprep.subr.mxu0 0.0
        %2726 = vmatpush1.msra.mxu0 0.0
        %2727 = vmatprep.subr.mxu0 0.0
        %2728 = vmatpush1.msra.mxu0 0.0
        %2729 = vmatprep.subr.mxu0 0.0
        %2730 = vmatpush1.msra.mxu0 0.0
        %2731 = vmatprep.subr.mxu0 0.0
        %2732 = vmatpush1.msra.mxu0 0.0
        %2733 = vmatprep.subr.mxu0 0.0
        %2734 = vmatpush1.msra.mxu0 0.0
        %2735 = vmatprep.mubr.f32.mxu0 0.0
        %v2736 = vand.u32 %v1941, 4294901760
        %v2737 = vsub.f32 %v1941, %v2736
        %v2738 = vand.u32 %v2737, 4294901760
        %2739 = vmatmul.mubr.f32.gmra.mrb[0].mxu0 %v2738
        %v2740 = vpop.f32.mrb[0].mxu0
        %v2741 = vadd.f32 %v2539, %v2740
        %v2742 = vpop.f32.mrb[0].mxu0
        %v2743 = vadd.f32 %v2541, %v2742
        %2744 = vmatprep.mubr.f32.mxu0 0.0
        %v2745 = vand.u32 %v1944, 4294901760
        %v2746 = vsub.f32 %v1944, %v2745
        %v2747 = vand.u32 %v2746, 4294901760
        %2748 = vmatmul.mubr.f32.gmra.mrb[0].mxu0 %v2747
        %v2749 = vpop.f32.mrb[0].mxu0
        %v2750 = vadd.f32 %v2547, %v2749
        %v2751 = vpop.f32.mrb[0].mxu0
        %v2752 = vadd.f32 %v2549, %v2751
        %2753 = vmatprep.mubr.f32.mxu0 0.0
        %v2754 = vand.u32 %v1947, 4294901760
        %v2755 = vsub.f32 %v1947, %v2754
        %v2756 = vand.u32 %v2755, 4294901760
        %2757 = vmatmul.mubr.f32.gmra.mrb[0].mxu0 %v2756
        %v2758 = vpop.f32.mrb[0].mxu0
        %v2759 = vadd.f32 %v2555, %v2758
        %v2760 = vpop.f32.mrb[0].mxu0
        %v2761 = vadd.f32 %v2557, %v2760
        %2762 = vmatprep.mubr.f32.mxu0 0.0
        %v2763 = vand.u32 %v1950, 4294901760
        %v2764 = vsub.f32 %v1950, %v2763
        %v2765 = vand.u32 %v2764, 4294901760
        %2766 = vmatmul.mubr.f32.gmra.mrb[0].mxu0 %v2765
        %v2767 = vpop.f32.mrb[0].mxu0
        %v2768 = vadd.f32 %v2563, %v2767
        %v2769 = vpop.f32.mrb[0].mxu0
        %v2770 = vadd.f32 %v2565, %v2769
        %2771 = vmatprep.mubr.f32.mxu0 0.0
        %v2772 = vand.u32 %v1953, 4294901760
        %v2773 = vsub.f32 %v1953, %v2772
        %v2774 = vand.u32 %v2773, 4294901760
        %2775 = vmatmul.mubr.f32.gmra.mrb[0].mxu0 %v2774
        %v2776 = vpop.f32.mrb[0].mxu0
        %v2777 = vadd.f32 %v2571, %v2776
        %v2778 = vpop.f32.mrb[0].mxu0
        %v2779 = vadd.f32 %v2573, %v2778
        %2780 = vmatprep.mubr.f32.mxu0 0.0
        %v2781 = vand.u32 %v1956, 4294901760
        %v2782 = vsub.f32 %v1956, %v2781
        %v2783 = vand.u32 %v2782, 4294901760
        %2784 = vmatmul.mubr.f32.gmra.mrb[0].mxu0 %v2783
        %v2785 = vpop.f32.mrb[0].mxu0
        %v2786 = vadd.f32 %v2579, %v2785
        %v2787 = vpop.f32.mrb[0].mxu0
        %v2788 = vadd.f32 %v2581, %v2787
        %2789 = vmatprep.mubr.f32.mxu0 0.0
        %v2790 = vand.u32 %v1959, 4294901760
        %v2791 = vsub.f32 %v1959, %v2790
        %v2792 = vand.u32 %v2791, 4294901760
        %2793 = vmatmul.mubr.f32.gmra.mrb[0].mxu0 %v2792
        %v2794 = vpop.f32.mrb[0].mxu0
        %v2795 = vadd.f32 %v2587, %v2794
        %v2796 = vpop.f32.mrb[0].mxu0
        %v2797 = vadd.f32 %v2589, %v2796
        %2798 = vmatprep.mubr.f32.mxu0 0.0
        %v2799 = vand.u32 %v1962, 4294901760
        %v2800 = vsub.f32 %v1962, %v2799
        %v2801 = vand.u32 %v2800, 4294901760
        %2802 = vmatmul.mubr.f32.gmra.mrb[0].mxu0 %v2801
        %v2803 = vpop.f32.mrb[0].mxu0
        %v2804 = vadd.f32 %v2595, %v2803
        %v2805 = vpop.f32.mrb[0].mxu0
        %v2806 = vadd.f32 %v2597, %v2805
        %2807 = vmatprep.mubr.f32.mxu0 0.0
        %v2808 = vand.u32 %v1965, 4294901760
        %v2809 = vsub.f32 %v1965, %v2808
        %v2810 = vand.u32 %v2809, 4294901760
        %2811 = vmatmul.mubr.f32.gmra.mrb[0].mxu0 %v2810
        %v2812 = vpop.f32.mrb[0].mxu0
        %v2813 = vadd.f32 %v2603, %v2812
        %v2814 = vpop.f32.mrb[0].mxu0
        %v2815 = vadd.f32 %v2605, %v2814
        %2816 = vmatprep.mubr.f32.mxu0 0.0
        %v2817 = vand.u32 %v1968, 4294901760
        %v2818 = vsub.f32 %v1968, %v2817
        %v2819 = vand.u32 %v2818, 4294901760
        %2820 = vmatmul.mubr.f32.gmra.mrb[0].mxu0 %v2819
        %v2821 = vpop.f32.mrb[0].mxu0
        %v2822 = vadd.f32 %v2611, %v2821
        %v2823 = vpop.f32.mrb[0].mxu0
        %v2824 = vadd.f32 %v2613, %v2823
        %2825 = vmatprep.mubr.f32.mxu0 0.0
        %v2826 = vand.u32 %v1971, 4294901760
        %v2827 = vsub.f32 %v1971, %v2826
        %v2828 = vand.u32 %v2827, 4294901760
        %2829 = vmatmul.mubr.f32.gmra.mrb[0].mxu0 %v2828
        %v2830 = vpop.f32.mrb[0].mxu0
        %v2831 = vadd.f32 %v2619, %v2830
        %v2832 = vpop.f32.mrb[0].mxu0
        %v2833 = vadd.f32 %v2621, %v2832
        %2834 = vmatprep.mubr.f32.mxu0 0.0
        %v2835 = vand.u32 %v1974, 4294901760
        %v2836 = vsub.f32 %v1974, %v2835
        %v2837 = vand.u32 %v2836, 4294901760
        %2838 = vmatmul.mubr.f32.gmra.mrb[0].mxu0 %v2837
        %v2839 = vpop.f32.mrb[0].mxu0
        %v2840 = vadd.f32 %v2627, %v2839
        %v2841 = vpop.f32.mrb[0].mxu0
        %v2842 = vadd.f32 %v2629, %v2841
        %2843 = vmatprep.mubr.f32.mxu0 0.0
        %v2844 = vand.u32 %v1977, 4294901760
        %v2845 = vsub.f32 %v1977, %v2844
        %v2846 = vand.u32 %v2845, 4294901760
        %2847 = vmatmul.mubr.f32.gmra.mrb[0].mxu0 %v2846
        %v2848 = vpop.f32.mrb[0].mxu0
        %v2849 = vadd.f32 %v2635, %v2848
        %v2850 = vpop.f32.mrb[0].mxu0
        %v2851 = vadd.f32 %v2637, %v2850
        %2852 = vmatprep.mubr.f32.mxu0 0.0
        %v2853 = vand.u32 %v1980, 4294901760
        %v2854 = vsub.f32 %v1980, %v2853
        %v2855 = vand.u32 %v2854, 4294901760
        %2856 = vmatmul.mubr.f32.gmra.mrb[0].mxu0 %v2855
        %v2857 = vpop.f32.mrb[0].mxu0
        %v2858 = vadd.f32 %v2643, %v2857
        %v2859 = vpop.f32.mrb[0].mxu0
        %v2860 = vadd.f32 %v2645, %v2859
        %2861 = vmatprep.mubr.f32.mxu0 0.0
        %v2862 = vand.u32 %v1983, 4294901760
        %v2863 = vsub.f32 %v1983, %v2862
        %v2864 = vand.u32 %v2863, 4294901760
        %2865 = vmatmul.mubr.f32.gmra.mrb[0].mxu0 %v2864
        %v2866 = vpop.f32.mrb[0].mxu0
        %v2867 = vadd.f32 %v2651, %v2866
        %v2868 = vpop.f32.mrb[0].mxu0
        %v2869 = vadd.f32 %v2653, %v2868
        %2870 = vmatprep.mubr.f32.mxu0 0.0
        %v2871 = vand.u32 %v1986, 4294901760
        %v2872 = vsub.f32 %v1986, %v2871
        %v2873 = vand.u32 %v2872, 4294901760
        %2874 = vmatmul.mubr.f32.gmra.mrb[0].mxu0 %v2873
        %v2875 = vpop.f32.mrb[0].mxu0
        %v2876 = vadd.f32 %v2659, %v2875
        %v2877 = vpop.f32.mrb[0].mxu0
        %v2878 = vadd.f32 %v2661, %v2877
        %2879 = vdwg.mxu0
        %v2880 = vand.u32 %v526, 4294901760
        %v2881 = vsub.f32 %v526, %v2880
        %v2882 = vand.u32 %v2881, 4294901760
        %2883 = vmatprep.subr.mxu0 %v2882
        %v2884 = vand.u32 %v525, 4294901760
        %v2885 = vsub.f32 %v525, %v2884
        %v2886 = vand.u32 %v2885, 4294901760
        %2887 = vmatpush1.msra.mxu0 %v2886
        %v2888 = vand.u32 %v528, 4294901760
        %v2889 = vsub.f32 %v528, %v2888
        %v2890 = vand.u32 %v2889, 4294901760
        %2891 = vmatprep.subr.mxu0 %v2890
        %v2892 = vand.u32 %v527, 4294901760
        %v2893 = vsub.f32 %v527, %v2892
        %v2894 = vand.u32 %v2893, 4294901760
        %2895 = vmatpush1.msra.mxu0 %v2894
        %v2896 = vand.u32 %v530, 4294901760
        %v2897 = vsub.f32 %v530, %v2896
        %v2898 = vand.u32 %v2897, 4294901760
        %2899 = vmatprep.subr.mxu0 %v2898
        %v2900 = vand.u32 %v529, 4294901760
        %v2901 = vsub.f32 %v529, %v2900
        %v2902 = vand.u32 %v2901, 4294901760
        %2903 = vmatpush1.msra.mxu0 %v2902
        %v2904 = vand.u32 %v532, 4294901760
        %v2905 = vsub.f32 %v532, %v2904
        %v2906 = vand.u32 %v2905, 4294901760
        %2907 = vmatprep.subr.mxu0 %v2906
        %v2908 = vand.u32 %v531, 4294901760
        %v2909 = vsub.f32 %v531, %v2908
        %v2910 = vand.u32 %v2909, 4294901760
        %2911 = vmatpush1.msra.mxu0 %v2910
        %2912 = vmatprep.subr.mxu0 0.0
        %2913 = vmatpush1.msra.mxu0 0.0
        %2914 = vmatprep.subr.mxu0 0.0
        %2915 = vmatpush1.msra.mxu0 0.0
        %2916 = vmatprep.subr.mxu0 0.0
        %2917 = vmatpush1.msra.mxu0 0.0
        %2918 = vmatprep.subr.mxu0 0.0
        %2919 = vmatpush1.msra.mxu0 0.0
        %2920 = vmatprep.subr.mxu0 0.0
        %2921 = vmatpush1.msra.mxu0 0.0
        %2922 = vmatprep.subr.mxu0 0.0
        %2923 = vmatpush1.msra.mxu0 0.0
        %2924 = vmatprep.subr.mxu0 0.0
        %2925 = vmatpush1.msra.mxu0 0.0
        %2926 = vmatprep.subr.mxu0 0.0
        %2927 = vmatpush1.msra.mxu0 0.0
        %2928 = vmatprep.subr.mxu0 0.0
        %2929 = vmatpush1.msra.mxu0 0.0
        %2930 = vmatprep.subr.mxu0 0.0
        %2931 = vmatpush1.msra.mxu0 0.0
        %2932 = vmatprep.subr.mxu0 0.0
        %2933 = vmatpush1.msra.mxu0 0.0
        %2934 = vmatprep.subr.mxu0 0.0
        %2935 = vmatpush1.msra.mxu0 0.0
        %2936 = vmatprep.subr.mxu0 0.0
        %2937 = vmatpush1.msra.mxu0 0.0
        %2938 = vmatprep.subr.mxu0 0.0
        %2939 = vmatpush1.msra.mxu0 0.0
        %2940 = vmatprep.subr.mxu0 0.0
        %2941 = vmatpush1.msra.mxu0 0.0
        %2942 = vmatprep.subr.mxu0 0.0
        %2943 = vmatpush1.msra.mxu0 0.0
        %2944 = vmatprep.subr.mxu0 0.0
        %2945 = vmatpush1.msra.mxu0 0.0
        %2946 = vmatprep.subr.mxu0 0.0
        %2947 = vmatpush1.msra.mxu0 0.0
        %2948 = vmatprep.subr.mxu0 0.0
        %2949 = vmatpush1.msra.mxu0 0.0
        %2950 = vmatprep.subr.mxu0 0.0
        %2951 = vmatpush1.msra.mxu0 0.0
        %2952 = vmatprep.subr.mxu0 0.0
        %2953 = vmatpush1.msra.mxu0 0.0
        %2954 = vmatprep.subr.mxu0 0.0
        %2955 = vmatpush1.msra.mxu0 0.0
        %2956 = vmatprep.subr.mxu0 0.0
        %2957 = vmatpush1.msra.mxu0 0.0
        %2958 = vmatprep.subr.mxu0 0.0
        %2959 = vmatpush1.msra.mxu0 0.0
        %2960 = vmatprep.subr.mxu0 0.0
        %2961 = vmatpush1.msra.mxu0 0.0
        %2962 = vmatprep.subr.mxu0 0.0
        %2963 = vmatpush1.msra.mxu0 0.0
        %2964 = vmatprep.subr.mxu0 0.0
        %2965 = vmatpush1.msra.mxu0 0.0
        %2966 = vmatprep.subr.mxu0 0.0
        %2967 = vmatpush1.msra.mxu0 0.0
        %2968 = vmatprep.mubr.f32.mxu0 0.0
        %v2969 = vand.u32 %v1941, 4294901760
        %2970 = vmatmul.mubr.f32.gmra.mrb[0].mxu0 %v2969
        %v2971 = vpop.f32.mrb[0].mxu0
        %v2972 = vadd.f32 %v2741, %v2971
        %v2973 = vpop.f32.mrb[0].mxu0
        %v2974 = vadd.f32 %v2743, %v2973
        %2975 = vmatprep.mubr.f32.mxu0 0.0
        %v2976 = vand.u32 %v1944, 4294901760
        %2977 = vmatmul.mubr.f32.gmra.mrb[0].mxu0 %v2976
        %v2978 = vpop.f32.mrb[0].mxu0
        %v2979 = vadd.f32 %v2750, %v2978
        %v2980 = vpop.f32.mrb[0].mxu0
        %v2981 = vadd.f32 %v2752, %v2980
        %2982 = vmatprep.mubr.f32.mxu0 0.0
        %v2983 = vand.u32 %v1947, 4294901760
        %2984 = vmatmul.mubr.f32.gmra.mrb[0].mxu0 %v2983
        %v2985 = vpop.f32.mrb[0].mxu0
        %v2986 = vadd.f32 %v2759, %v2985
        %v2987 = vpop.f32.mrb[0].mxu0
        %v2988 = vadd.f32 %v2761, %v2987
        %2989 = vmatprep.mubr.f32.mxu0 0.0
        %v2990 = vand.u32 %v1950, 4294901760
        %2991 = vmatmul.mubr.f32.gmra.mrb[0].mxu0 %v2990
        %v2992 = vpop.f32.mrb[0].mxu0
        %v2993 = vadd.f32 %v2768, %v2992
        %v2994 = vpop.f32.mrb[0].mxu0
        %v2995 = vadd.f32 %v2770, %v2994
        %2996 = vmatprep.mubr.f32.mxu0 0.0
        %v2997 = vand.u32 %v1953, 4294901760
        %2998 = vmatmul.mubr.f32.gmra.mrb[0].mxu0 %v2997
        %v2999 = vpop.f32.mrb[0].mxu0
        %v3000 = vadd.f32 %v2777, %v2999
        %v3001 = vpop.f32.mrb[0].mxu0
        %v3002 = vadd.f32 %v2779, %v3001
        %3003 = vmatprep.mubr.f32.mxu0 0.0
        %v3004 = vand.u32 %v1956, 4294901760
        %3005 = vmatmul.mubr.f32.gmra.mrb[0].mxu0 %v3004
        %v3006 = vpop.f32.mrb[0].mxu0
        %v3007 = vadd.f32 %v2786, %v3006
        %v3008 = vpop.f32.mrb[0].mxu0
        %v3009 = vadd.f32 %v2788, %v3008
        %3010 = vmatprep.mubr.f32.mxu0 0.0
        %v3011 = vand.u32 %v1959, 4294901760
        %3012 = vmatmul.mubr.f32.gmra.mrb[0].mxu0 %v3011
        %v3013 = vpop.f32.mrb[0].mxu0
        %v3014 = vadd.f32 %v2795, %v3013
        %v3015 = vpop.f32.mrb[0].mxu0
        %v3016 = vadd.f32 %v2797, %v3015
        %3017 = vmatprep.mubr.f32.mxu0 0.0
        %v3018 = vand.u32 %v1962, 4294901760
        %3019 = vmatmul.mubr.f32.gmra.mrb[0].mxu0 %v3018
        %v3020 = vpop.f32.mrb[0].mxu0
        %v3021 = vadd.f32 %v2804, %v3020
        %v3022 = vpop.f32.mrb[0].mxu0
        %v3023 = vadd.f32 %v2806, %v3022
        %3024 = vmatprep.mubr.f32.mxu0 0.0
        %v3025 = vand.u32 %v1965, 4294901760
        %3026 = vmatmul.mubr.f32.gmra.mrb[0].mxu0 %v3025
        %v3027 = vpop.f32.mrb[0].mxu0
        %v3028 = vadd.f32 %v2813, %v3027
        %v3029 = vpop.f32.mrb[0].mxu0
        %v3030 = vadd.f32 %v2815, %v3029
        %3031 = vmatprep.mubr.f32.mxu0 0.0
        %v3032 = vand.u32 %v1968, 4294901760
        %3033 = vmatmul.mubr.f32.gmra.mrb[0].mxu0 %v3032
        %v3034 = vpop.f32.mrb[0].mxu0
        %v3035 = vadd.f32 %v2822, %v3034
        %v3036 = vpop.f32.mrb[0].mxu0
        %v3037 = vadd.f32 %v2824, %v3036
        %3038 = vmatprep.mubr.f32.mxu0 0.0
        %v3039 = vand.u32 %v1971, 4294901760
        %3040 = vmatmul.mubr.f32.gmra.mrb[0].mxu0 %v3039
        %v3041 = vpop.f32.mrb[0].mxu0
        %v3042 = vadd.f32 %v2831, %v3041
        %v3043 = vpop.f32.mrb[0].mxu0
        %v3044 = vadd.f32 %v2833, %v3043
        %3045 = vmatprep.mubr.f32.mxu0 0.0
        %v3046 = vand.u32 %v1974, 4294901760
        %3047 = vmatmul.mubr.f32.gmra.mrb[0].mxu0 %v3046
        %v3048 = vpop.f32.mrb[0].mxu0
        %v3049 = vadd.f32 %v2840, %v3048
        %v3050 = vpop.f32.mrb[0].mxu0
        %v3051 = vadd.f32 %v2842, %v3050
        %3052 = vmatprep.mubr.f32.mxu0 0.0
        %v3053 = vand.u32 %v1977, 4294901760
        %3054 = vmatmul.mubr.f32.gmra.mrb[0].mxu0 %v3053
        %v3055 = vpop.f32.mrb[0].mxu0
        %v3056 = vadd.f32 %v2849, %v3055
        %v3057 = vpop.f32.mrb[0].mxu0
        %v3058 = vadd.f32 %v2851, %v3057
        %3059 = vmatprep.mubr.f32.mxu0 0.0
        %v3060 = vand.u32 %v1980, 4294901760
        %3061 = vmatmul.mubr.f32.gmra.mrb[0].mxu0 %v3060
        %v3062 = vpop.f32.mrb[0].mxu0
        %v3063 = vadd.f32 %v2858, %v3062
        %v3064 = vpop.f32.mrb[0].mxu0
        %v3065 = vadd.f32 %v2860, %v3064
        %3066 = vmatprep.mubr.f32.mxu0 0.0
        %v3067 = vand.u32 %v1983, 4294901760
        %3068 = vmatmul.mubr.f32.gmra.mrb[0].mxu0 %v3067
        %v3069 = vpop.f32.mrb[0].mxu0
        %v3070 = vadd.f32 %v2867, %v3069
        %v3071 = vpop.f32.mrb[0].mxu0
        %v3072 = vadd.f32 %v2869, %v3071
        %3073 = vmatprep.mubr.f32.mxu0 0.0
        %v3074 = vand.u32 %v1986, 4294901760
        %3075 = vmatmul.mubr.f32.gmra.mrb[0].mxu0 %v3074
        %v3076 = vpop.f32.mrb[0].mxu0
        %v3077 = vadd.f32 %v2876, %v3076
        %v3078 = vpop.f32.mrb[0].mxu0
        %v3079 = vadd.f32 %v2878, %v3078
        %3080 = vdwg.mxu0
        %v3081 = vand.u32 %v526, 4294901760
        %3082 = vmatprep.subr.mxu0 %v3081
        %v3083 = vand.u32 %v525, 4294901760
        %3084 = vmatpush1.msra.mxu0 %v3083
        %v3085 = vand.u32 %v528, 4294901760
        %3086 = vmatprep.subr.mxu0 %v3085
        %v3087 = vand.u32 %v527, 4294901760
        %3088 = vmatpush1.msra.mxu0 %v3087
        %v3089 = vand.u32 %v530, 4294901760
        %3090 = vmatprep.subr.mxu0 %v3089
        %v3091 = vand.u32 %v529, 4294901760
        %3092 = vmatpush1.msra.mxu0 %v3091
        %v3093 = vand.u32 %v532, 4294901760
        %3094 = vmatprep.subr.mxu0 %v3093
        %v3095 = vand.u32 %v531, 4294901760
        %3096 = vmatpush1.msra.mxu0 %v3095
        %3097 = vmatprep.subr.mxu0 0.0
        %3098 = vmatpush1.msra.mxu0 0.0
        %3099 = vmatprep.subr.mxu0 0.0
        %3100 = vmatpush1.msra.mxu0 0.0
        %3101 = vmatprep.subr.mxu0 0.0
        %3102 = vmatpush1.msra.mxu0 0.0
        %3103 = vmatprep.subr.mxu0 0.0
        %3104 = vmatpush1.msra.mxu0 0.0
        %3105 = vmatprep.subr.mxu0 0.0
        %3106 = vmatpush1.msra.mxu0 0.0
        %3107 = vmatprep.subr.mxu0 0.0
        %3108 = vmatpush1.msra.mxu0 0.0
        %3109 = vmatprep.subr.mxu0 0.0
        %3110 = vmatpush1.msra.mxu0 0.0
        %3111 = vmatprep.subr.mxu0 0.0
        %3112 = vmatpush1.msra.mxu0 0.0
        %3113 = vmatprep.subr.mxu0 0.0
        %3114 = vmatpush1.msra.mxu0 0.0
        %3115 = vmatprep.subr.mxu0 0.0
        %3116 = vmatpush1.msra.mxu0 0.0
        %3117 = vmatprep.subr.mxu0 0.0
        %3118 = vmatpush1.msra.mxu0 0.0
        %3119 = vmatprep.subr.mxu0 0.0
        %3120 = vmatpush1.msra.mxu0 0.0
        %3121 = vmatprep.subr.mxu0 0.0
        %3122 = vmatpush1.msra.mxu0 0.0
        %3123 = vmatprep.subr.mxu0 0.0
        %3124 = vmatpush1.msra.mxu0 0.0
        %3125 = vmatprep.subr.mxu0 0.0
        %3126 = vmatpush1.msra.mxu0 0.0
        %3127 = vmatprep.subr.mxu0 0.0
        %3128 = vmatpush1.msra.mxu0 0.0
        %3129 = vmatprep.subr.mxu0 0.0
        %3130 = vmatpush1.msra.mxu0 0.0
        %3131 = vmatprep.subr.mxu0 0.0
        %3132 = vmatpush1.msra.mxu0 0.0
        %3133 = vmatprep.subr.mxu0 0.0
        %3134 = vmatpush1.msra.mxu0 0.0
        %3135 = vmatprep.subr.mxu0 0.0
        %3136 = vmatpush1.msra.mxu0 0.0
        %3137 = vmatprep.subr.mxu0 0.0
        %3138 = vmatpush1.msra.mxu0 0.0
        %3139 = vmatprep.subr.mxu0 0.0
        %3140 = vmatpush1.msra.mxu0 0.0
        %3141 = vmatprep.subr.mxu0 0.0
        %3142 = vmatpush1.msra.mxu0 0.0
        %3143 = vmatprep.subr.mxu0 0.0
        %3144 = vmatpush1.msra.mxu0 0.0
        %3145 = vmatprep.subr.mxu0 0.0
        %3146 = vmatpush1.msra.mxu0 0.0
        %3147 = vmatprep.subr.mxu0 0.0
        %3148 = vmatpush1.msra.mxu0 0.0
        %3149 = vmatprep.subr.mxu0 0.0
        %3150 = vmatpush1.msra.mxu0 0.0
        %3151 = vmatprep.subr.mxu0 0.0
        %3152 = vmatpush1.msra.mxu0 0.0
        %3153 = vmatprep.mubr.f32.mxu0 0.0
        %v3154 = vand.u32 %v1941, 4294901760
        %3155 = vmatmul.mubr.f32.gmra.mrb[0].mxu0 %v3154
        %v3156 = vpop.f32.mrb[0].mxu0
        %v3157 = vadd.f32 %v2972, %v3156
        %v3158 = vpop.f32.mrb[0].mxu0
        %v3159 = vadd.f32 %v2974, %v3158
        %3160 = vmatprep.mubr.f32.mxu0 0.0
        %v3161 = vand.u32 %v1944, 4294901760
        %3162 = vmatmul.mubr.f32.gmra.mrb[0].mxu0 %v3161
        %v3163 = vpop.f32.mrb[0].mxu0
        %v3164 = vadd.f32 %v2979, %v3163
        %v3165 = vpop.f32.mrb[0].mxu0
        %v3166 = vadd.f32 %v2981, %v3165
        %3167 = vmatprep.mubr.f32.mxu0 0.0
        %v3168 = vand.u32 %v1947, 4294901760
        %3169 = vmatmul.mubr.f32.gmra.mrb[0].mxu0 %v3168
        %v3170 = vpop.f32.mrb[0].mxu0
        %v3171 = vadd.f32 %v2986, %v3170
        %v3172 = vpop.f32.mrb[0].mxu0
        %v3173 = vadd.f32 %v2988, %v3172
        %3174 = vmatprep.mubr.f32.mxu0 0.0
        %v3175 = vand.u32 %v1950, 4294901760
        %3176 = vmatmul.mubr.f32.gmra.mrb[0].mxu0 %v3175
        %v3177 = vpop.f32.mrb[0].mxu0
        %v3178 = vadd.f32 %v2993, %v3177
        %v3179 = vpop.f32.mrb[0].mxu0
        %v3180 = vadd.f32 %v2995, %v3179
        %3181 = vmatprep.mubr.f32.mxu0 0.0
        %v3182 = vand.u32 %v1953, 4294901760
        %3183 = vmatmul.mubr.f32.gmra.mrb[0].mxu0 %v3182
        %v3184 = vpop.f32.mrb[0].mxu0
        %v3185 = vadd.f32 %v3000, %v3184
        %v3186 = vpop.f32.mrb[0].mxu0
        %v3187 = vadd.f32 %v3002, %v3186
        %3188 = vmatprep.mubr.f32.mxu0 0.0
        %v3189 = vand.u32 %v1956, 4294901760
        %3190 = vmatmul.mubr.f32.gmra.mrb[0].mxu0 %v3189
        %v3191 = vpop.f32.mrb[0].mxu0
        %v3192 = vadd.f32 %v3007, %v3191
        %v3193 = vpop.f32.mrb[0].mxu0
        %v3194 = vadd.f32 %v3009, %v3193
        %3195 = vmatprep.mubr.f32.mxu0 0.0
        %v3196 = vand.u32 %v1959, 4294901760
        %3197 = vmatmul.mubr.f32.gmra.mrb[0].mxu0 %v3196
        %v3198 = vpop.f32.mrb[0].mxu0
        %v3199 = vadd.f32 %v3014, %v3198
        %v3200 = vpop.f32.mrb[0].mxu0
        %v3201 = vadd.f32 %v3016, %v3200
        %3202 = vmatprep.mubr.f32.mxu0 0.0
        %v3203 = vand.u32 %v1962, 4294901760
        %3204 = vmatmul.mubr.f32.gmra.mrb[0].mxu0 %v3203
        %v3205 = vpop.f32.mrb[0].mxu0
        %v3206 = vadd.f32 %v3021, %v3205
        %v3207 = vpop.f32.mrb[0].mxu0
        %v3208 = vadd.f32 %v3023, %v3207
        %3209 = vmatprep.mubr.f32.mxu0 0.0
        %v3210 = vand.u32 %v1965, 4294901760
        %3211 = vmatmul.mubr.f32.gmra.mrb[0].mxu0 %v3210
        %v3212 = vpop.f32.mrb[0].mxu0
        %v3213 = vadd.f32 %v3028, %v3212
        %v3214 = vpop.f32.mrb[0].mxu0
        %v3215 = vadd.f32 %v3030, %v3214
        %3216 = vmatprep.mubr.f32.mxu0 0.0
        %v3217 = vand.u32 %v1968, 4294901760
        %3218 = vmatmul.mubr.f32.gmra.mrb[0].mxu0 %v3217
        %v3219 = vpop.f32.mrb[0].mxu0
        %v3220 = vadd.f32 %v3035, %v3219
        %v3221 = vpop.f32.mrb[0].mxu0
        %v3222 = vadd.f32 %v3037, %v3221
        %3223 = vmatprep.mubr.f32.mxu0 0.0
        %v3224 = vand.u32 %v1971, 4294901760
        %3225 = vmatmul.mubr.f32.gmra.mrb[0].mxu0 %v3224
        %v3226 = vpop.f32.mrb[0].mxu0
        %v3227 = vadd.f32 %v3042, %v3226
        %v3228 = vpop.f32.mrb[0].mxu0
        %v3229 = vadd.f32 %v3044, %v3228
        %3230 = vmatprep.mubr.f32.mxu0 0.0
        %v3231 = vand.u32 %v1974, 4294901760
        %3232 = vmatmul.mubr.f32.gmra.mrb[0].mxu0 %v3231
        %v3233 = vpop.f32.mrb[0].mxu0
        %v3234 = vadd.f32 %v3049, %v3233
        %v3235 = vpop.f32.mrb[0].mxu0
        %v3236 = vadd.f32 %v3051, %v3235
        %3237 = vmatprep.mubr.f32.mxu0 0.0
        %v3238 = vand.u32 %v1977, 4294901760
        %3239 = vmatmul.mubr.f32.gmra.mrb[0].mxu0 %v3238
        %v3240 = vpop.f32.mrb[0].mxu0
        %v3241 = vadd.f32 %v3056, %v3240
        %v3242 = vpop.f32.mrb[0].mxu0
        %v3243 = vadd.f32 %v3058, %v3242
        %3244 = vmatprep.mubr.f32.mxu0 0.0
        %v3245 = vand.u32 %v1980, 4294901760
        %3246 = vmatmul.mubr.f32.gmra.mrb[0].mxu0 %v3245
        %v3247 = vpop.f32.mrb[0].mxu0
        %v3248 = vadd.f32 %v3063, %v3247
        %v3249 = vpop.f32.mrb[0].mxu0
        %v3250 = vadd.f32 %v3065, %v3249
        %3251 = vmatprep.mubr.f32.mxu0 0.0
        %v3252 = vand.u32 %v1983, 4294901760
        %3253 = vmatmul.mubr.f32.gmra.mrb[0].mxu0 %v3252
        %v3254 = vpop.f32.mrb[0].mxu0
        %v3255 = vadd.f32 %v3070, %v3254
        %v3256 = vpop.f32.mrb[0].mxu0
        %v3257 = vadd.f32 %v3072, %v3256
        %3258 = vmatprep.mubr.f32.mxu0 0.0
        %v3259 = vand.u32 %v1986, 4294901760
        %3260 = vmatmul.mubr.f32.gmra.mrb[0].mxu0 %v3259
        %v3261 = vpop.f32.mrb[0].mxu0
        %v3262 = vadd.f32 %v3077, %v3261
        %v3263 = vpop.f32.mrb[0].mxu0
        %v3264 = vadd.f32 %v3079, %v3263
        %3265 = vdwg.mxu0
        %v3266 = vadd.f32 %v1908, %v3157
        %v3267 = vadd.f32 %v1909, %v3159
        %v3268 = vadd.f32 %v1910, %v3164
        %v3269 = vadd.f32 %v1911, %v3166
        %v3270 = vadd.f32 %v1912, %v3171
        %v3271 = vadd.f32 %v1913, %v3173
        %v3272 = vadd.f32 %v1914, %v3178
        %v3273 = vadd.f32 %v1915, %v3180
        %v3274 = vadd.f32 %v1916, %v3185
        %v3275 = vadd.f32 %v1917, %v3187
        %v3276 = vadd.f32 %v1918, %v3192
        %v3277 = vadd.f32 %v1919, %v3194
        %v3278 = vadd.f32 %v1920, %v3199
        %v3279 = vadd.f32 %v1921, %v3201
        %v3280 = vadd.f32 %v1922, %v3206
        %v3281 = vadd.f32 %v1923, %v3208
        %v3282 = vadd.f32 %v1924, %v3213
        %v3283 = vadd.f32 %v1925, %v3215
        %v3284 = vadd.f32 %v1926, %v3220
        %v3285 = vadd.f32 %v1927, %v3222
        %v3286 = vadd.f32 %v1928, %v3227
        %v3287 = vadd.f32 %v1929, %v3229
        %v3288 = vadd.f32 %v1930, %v3234
        %v3289 = vadd.f32 %v1931, %v3236
        %v3290 = vadd.f32 %v1932, %v3241
        %v3291 = vadd.f32 %v1933, %v3243
        %v3292 = vadd.f32 %v1934, %v3248
        %v3293 = vadd.f32 %v1935, %v3250
        %v3294 = vadd.f32 %v1936, %v3255
        %v3295 = vadd.f32 %v1937, %v3257
        %v3296 = vadd.f32 %v1938, %v3262
        %v3297 = vadd.f32 %v1939, %v3264
        %v3299 = vsel %vm581, %v565, 0
        %v3302 = vsel %vm581, %v566, 0
        %v3305 = vsel %vm581, %v567, 0
        %v3308 = vsel %vm581, %v568, 0
        %v3311 = vsel %vm581, %v569, 0
        %v3314 = vsel %vm581, %v570, 0
        %v3317 = vsel %vm581, %v571, 0
        %v3320 = vsel %vm581, %v572, 0
        %v3322 = vand.u32 %v518, 4294901760
        %3323 = vmatprep.subr.mxu0 %v3322
        %v3324 = vand.u32 %v517, 4294901760
        %3325 = vmatpush1.msra.mxu0 %v3324
        %v3326 = vand.u32 %v520, 4294901760
        %3327 = vmatprep.subr.mxu0 %v3326
        %v3328 = vand.u32 %v519, 4294901760
        %3329 = vmatpush1.msra.mxu0 %v3328
        %v3330 = vand.u32 %v522, 4294901760
        %3331 = vmatprep.subr.mxu0 %v3330
        %v3332 = vand.u32 %v521, 4294901760
        %3333 = vmatpush1.msra.mxu0 %v3332
        %v3334 = vand.u32 %v524, 4294901760
        %3335 = vmatprep.subr.mxu0 %v3334
        %v3336 = vand.u32 %v523, 4294901760
        %3337 = vmatpush1.msra.mxu0 %v3336
        %3338 = vmatprep.subr.mxu0 0.0
        %3339 = vmatpush1.msra.mxu0 0.0
        %3340 = vmatprep.subr.mxu0 0.0
        %3341 = vmatpush1.msra.mxu0 0.0
        %3342 = vmatprep.subr.mxu0 0.0
        %3343 = vmatpush1.msra.mxu0 0.0
        %3344 = vmatprep.subr.mxu0 0.0
        %3345 = vmatpush1.msra.mxu0 0.0
        %3346 = vmatprep.subr.mxu0 0.0
        %3347 = vmatpush1.msra.mxu0 0.0
        %3348 = vmatprep.subr.mxu0 0.0
        %3349 = vmatpush1.msra.mxu0 0.0
        %3350 = vmatprep.subr.mxu0 0.0
        %3351 = vmatpush1.msra.mxu0 0.0
        %3352 = vmatprep.subr.mxu0 0.0
        %3353 = vmatpush1.msra.mxu0 0.0
        %3354 = vmatprep.subr.mxu0 0.0
        %3355 = vmatpush1.msra.mxu0 0.0
        %3356 = vmatprep.subr.mxu0 0.0
        %3357 = vmatpush1.msra.mxu0 0.0
        %3358 = vmatprep.subr.mxu0 0.0
        %3359 = vmatpush1.msra.mxu0 0.0
        %3360 = vmatprep.subr.mxu0 0.0
        %3361 = vmatpush1.msra.mxu0 0.0
        %3362 = vmatprep.subr.mxu0 0.0
        %3363 = vmatpush1.msra.mxu0 0.0
        %3364 = vmatprep.subr.mxu0 0.0
        %3365 = vmatpush1.msra.mxu0 0.0
        %3366 = vmatprep.subr.mxu0 0.0
        %3367 = vmatpush1.msra.mxu0 0.0
        %3368 = vmatprep.subr.mxu0 0.0
        %3369 = vmatpush1.msra.mxu0 0.0
        %3370 = vmatprep.subr.mxu0 0.0
        %3371 = vmatpush1.msra.mxu0 0.0
        %3372 = vmatprep.subr.mxu0 0.0
        %3373 = vmatpush1.msra.mxu0 0.0
        %3374 = vmatprep.subr.mxu0 0.0
        %3375 = vmatpush1.msra.mxu0 0.0
        %3376 = vmatprep.subr.mxu0 0.0
        %3377 = vmatpush1.msra.mxu0 0.0
        %3378 = vmatprep.subr.mxu0 0.0
        %3379 = vmatpush1.msra.mxu0 0.0
        %3380 = vmatprep.subr.mxu0 0.0
        %3381 = vmatpush1.msra.mxu0 0.0
        %3382 = vmatprep.subr.mxu0 0.0
        %3383 = vmatpush1.msra.mxu0 0.0
        %3384 = vmatprep.subr.mxu0 0.0
        %3385 = vmatpush1.msra.mxu0 0.0
        %3386 = vmatprep.subr.mxu0 0.0
        %3387 = vmatpush1.msra.mxu0 0.0
        %3388 = vmatprep.subr.mxu0 0.0
        %3389 = vmatpush1.msra.mxu0 0.0
        %3390 = vmatprep.subr.mxu0 0.0
        %3391 = vmatpush1.msra.mxu0 0.0
        %3392 = vmatprep.subr.mxu0 0.0
        %3393 = vmatpush1.msra.mxu0 0.0
        %3394 = vmatprep.mubr.f32.mxu0 0.0
        %v3395 = vand.u32 %v3299, 4294901760
        %v3396 = vsub.f32 %v3299, %v3395
        %v3397 = vand.u32 %v3396, 4294901760
        %v3398 = vsub.f32 %v3396, %v3397
        %v3399 = vand.u32 %v3398, 4294901760
        %3400 = vmatmul.mubr.f32.gmra.mrb[0].mxu0 %v3399
        %v3401 = vpop.f32.mrb[0].mxu0
        %v3402 = vadd.f32 0.0, %v3401
        %v3403 = vpop.f32.mrb[0].mxu0
        %v3404 = vadd.f32 0.0, %v3403
        %3405 = vmatprep.mubr.f32.mxu0 0.0
        %v3406 = vand.u32 %v3302, 4294901760
        %v3407 = vsub.f32 %v3302, %v3406
        %v3408 = vand.u32 %v3407, 4294901760
        %v3409 = vsub.f32 %v3407, %v3408
        %v3410 = vand.u32 %v3409, 4294901760
        %3411 = vmatmul.mubr.f32.gmra.mrb[0].mxu0 %v3410
        %v3412 = vpop.f32.mrb[0].mxu0
        %v3413 = vadd.f32 0.0, %v3412
        %v3414 = vpop.f32.mrb[0].mxu0
        %v3415 = vadd.f32 0.0, %v3414
        %3416 = vmatprep.mubr.f32.mxu0 0.0
        %v3417 = vand.u32 %v3305, 4294901760
        %v3418 = vsub.f32 %v3305, %v3417
        %v3419 = vand.u32 %v3418, 4294901760
        %v3420 = vsub.f32 %v3418, %v3419
        %v3421 = vand.u32 %v3420, 4294901760
        %3422 = vmatmul.mubr.f32.gmra.mrb[0].mxu0 %v3421
        %v3423 = vpop.f32.mrb[0].mxu0
        %v3424 = vadd.f32 0.0, %v3423
        %v3425 = vpop.f32.mrb[0].mxu0
        %v3426 = vadd.f32 0.0, %v3425
        %3427 = vmatprep.mubr.f32.mxu0 0.0
        %v3428 = vand.u32 %v3308, 4294901760
        %v3429 = vsub.f32 %v3308, %v3428
        %v3430 = vand.u32 %v3429, 4294901760
        %v3431 = vsub.f32 %v3429, %v3430
        %v3432 = vand.u32 %v3431, 4294901760
        %3433 = vmatmul.mubr.f32.gmra.mrb[0].mxu0 %v3432
        %v3434 = vpop.f32.mrb[0].mxu0
        %v3435 = vadd.f32 0.0, %v3434
        %v3436 = vpop.f32.mrb[0].mxu0
        %v3437 = vadd.f32 0.0, %v3436
        %3438 = vmatprep.mubr.f32.mxu0 0.0
        %v3439 = vand.u32 %v3311, 4294901760
        %v3440 = vsub.f32 %v3311, %v3439
        %v3441 = vand.u32 %v3440, 4294901760
        %v3442 = vsub.f32 %v3440, %v3441
        %v3443 = vand.u32 %v3442, 4294901760
        %3444 = vmatmul.mubr.f32.gmra.mrb[0].mxu0 %v3443
        %v3445 = vpop.f32.mrb[0].mxu0
        %v3446 = vadd.f32 0.0, %v3445
        %v3447 = vpop.f32.mrb[0].mxu0
        %v3448 = vadd.f32 0.0, %v3447
        %3449 = vmatprep.mubr.f32.mxu0 0.0
        %v3450 = vand.u32 %v3314, 4294901760
        %v3451 = vsub.f32 %v3314, %v3450
        %v3452 = vand.u32 %v3451, 4294901760
        %v3453 = vsub.f32 %v3451, %v3452
        %v3454 = vand.u32 %v3453, 4294901760
        %3455 = vmatmul.mubr.f32.gmra.mrb[0].mxu0 %v3454
        %v3456 = vpop.f32.mrb[0].mxu0
        %v3457 = vadd.f32 0.0, %v3456
        %v3458 = vpop.f32.mrb[0].mxu0
        %v3459 = vadd.f32 0.0, %v3458
        %3460 = vmatprep.mubr.f32.mxu0 0.0
        %v3461 = vand.u32 %v3317, 4294901760
        %v3462 = vsub.f32 %v3317, %v3461
        %v3463 = vand.u32 %v3462, 4294901760
        %v3464 = vsub.f32 %v3462, %v3463
        %v3465 = vand.u32 %v3464, 4294901760
        %3466 = vmatmul.mubr.f32.gmra.mrb[0].mxu0 %v3465
        %v3467 = vpop.f32.mrb[0].mxu0
        %v3468 = vadd.f32 0.0, %v3467
        %v3469 = vpop.f32.mrb[0].mxu0
        %v3470 = vadd.f32 0.0, %v3469
        %3471 = vmatprep.mubr.f32.mxu0 0.0
        %v3472 = vand.u32 %v3320, 4294901760
        %v3473 = vsub.f32 %v3320, %v3472
        %v3474 = vand.u32 %v3473, 4294901760
        %v3475 = vsub.f32 %v3473, %v3474
        %v3476 = vand.u32 %v3475, 4294901760
        %3477 = vmatmul.mubr.f32.gmra.mrb[0].mxu0 %v3476
        %v3478 = vpop.f32.mrb[0].mxu0
        %v3479 = vadd.f32 0.0, %v3478
        %v3480 = vpop.f32.mrb[0].mxu0
        %v3481 = vadd.f32 0.0, %v3480
        %3482 = vdwg.mxu0
        %v3483 = vand.u32 %v518, 4294901760
        %v3484 = vsub.f32 %v518, %v3483
        %v3485 = vand.u32 %v3484, 4294901760
        %v3486 = vsub.f32 %v3484, %v3485
        %v3487 = vand.u32 %v3486, 4294901760
        %3488 = vmatprep.subr.mxu0 %v3487
        %v3489 = vand.u32 %v517, 4294901760
        %v3490 = vsub.f32 %v517, %v3489
        %v3491 = vand.u32 %v3490, 4294901760
        %v3492 = vsub.f32 %v3490, %v3491
        %v3493 = vand.u32 %v3492, 4294901760
        %3494 = vmatpush1.msra.mxu0 %v3493
        %v3495 = vand.u32 %v520, 4294901760
        %v3496 = vsub.f32 %v520, %v3495
        %v3497 = vand.u32 %v3496, 4294901760
        %v3498 = vsub.f32 %v3496, %v3497
        %v3499 = vand.u32 %v3498, 4294901760
        %3500 = vmatprep.subr.mxu0 %v3499
        %v3501 = vand.u32 %v519, 4294901760
        %v3502 = vsub.f32 %v519, %v3501
        %v3503 = vand.u32 %v3502, 4294901760
        %v3504 = vsub.f32 %v3502, %v3503
        %v3505 = vand.u32 %v3504, 4294901760
        %3506 = vmatpush1.msra.mxu0 %v3505
        %v3507 = vand.u32 %v522, 4294901760
        %v3508 = vsub.f32 %v522, %v3507
        %v3509 = vand.u32 %v3508, 4294901760
        %v3510 = vsub.f32 %v3508, %v3509
        %v3511 = vand.u32 %v3510, 4294901760
        %3512 = vmatprep.subr.mxu0 %v3511
        %v3513 = vand.u32 %v521, 4294901760
        %v3514 = vsub.f32 %v521, %v3513
        %v3515 = vand.u32 %v3514, 4294901760
        %v3516 = vsub.f32 %v3514, %v3515
        %v3517 = vand.u32 %v3516, 4294901760
        %3518 = vmatpush1.msra.mxu0 %v3517
        %v3519 = vand.u32 %v524, 4294901760
        %v3520 = vsub.f32 %v524, %v3519
        %v3521 = vand.u32 %v3520, 4294901760
        %v3522 = vsub.f32 %v3520, %v3521
        %v3523 = vand.u32 %v3522, 4294901760
        %3524 = vmatprep.subr.mxu0 %v3523
        %v3525 = vand.u32 %v523, 4294901760
        %v3526 = vsub.f32 %v523, %v3525
        %v3527 = vand.u32 %v3526, 4294901760
        %v3528 = vsub.f32 %v3526, %v3527
        %v3529 = vand.u32 %v3528, 4294901760
        %3530 = vmatpush1.msra.mxu0 %v3529
        %3531 = vmatprep.subr.mxu0 0.0
        %3532 = vmatpush1.msra.mxu0 0.0
        %3533 = vmatprep.subr.mxu0 0.0
        %3534 = vmatpush1.msra.mxu0 0.0
        %3535 = vmatprep.subr.mxu0 0.0
        %3536 = vmatpush1.msra.mxu0 0.0
        %3537 = vmatprep.subr.mxu0 0.0
        %3538 = vmatpush1.msra.mxu0 0.0
        %3539 = vmatprep.subr.mxu0 0.0
        %3540 = vmatpush1.msra.mxu0 0.0
        %3541 = vmatprep.subr.mxu0 0.0
        %3542 = vmatpush1.msra.mxu0 0.0
        %3543 = vmatprep.subr.mxu0 0.0
        %3544 = vmatpush1.msra.mxu0 0.0
        %3545 = vmatprep.subr.mxu0 0.0
        %3546 = vmatpush1.msra.mxu0 0.0
        %3547 = vmatprep.subr.mxu0 0.0
        %3548 = vmatpush1.msra.mxu0 0.0
        %3549 = vmatprep.subr.mxu0 0.0
        %3550 = vmatpush1.msra.mxu0 0.0
        %3551 = vmatprep.subr.mxu0 0.0
        %3552 = vmatpush1.msra.mxu0 0.0
        %3553 = vmatprep.subr.mxu0 0.0
        %3554 = vmatpush1.msra.mxu0 0.0
        %3555 = vmatprep.subr.mxu0 0.0
        %3556 = vmatpush1.msra.mxu0 0.0
        %3557 = vmatprep.subr.mxu0 0.0
        %3558 = vmatpush1.msra.mxu0 0.0
        %3559 = vmatprep.subr.mxu0 0.0
        %3560 = vmatpush1.msra.mxu0 0.0
        %3561 = vmatprep.subr.mxu0 0.0
        %3562 = vmatpush1.msra.mxu0 0.0
        %3563 = vmatprep.subr.mxu0 0.0
        %3564 = vmatpush1.msra.mxu0 0.0
        %3565 = vmatprep.subr.mxu0 0.0
        %3566 = vmatpush1.msra.mxu0 0.0
        %3567 = vmatprep.subr.mxu0 0.0
        %3568 = vmatpush1.msra.mxu0 0.0
        %3569 = vmatprep.subr.mxu0 0.0
        %3570 = vmatpush1.msra.mxu0 0.0
        %3571 = vmatprep.subr.mxu0 0.0
        %3572 = vmatpush1.msra.mxu0 0.0
        %3573 = vmatprep.subr.mxu0 0.0
        %3574 = vmatpush1.msra.mxu0 0.0
        %3575 = vmatprep.subr.mxu0 0.0
        %3576 = vmatpush1.msra.mxu0 0.0
        %3577 = vmatprep.subr.mxu0 0.0
        %3578 = vmatpush1.msra.mxu0 0.0
        %3579 = vmatprep.subr.mxu0 0.0
        %3580 = vmatpush1.msra.mxu0 0.0
        %3581 = vmatprep.subr.mxu0 0.0
        %3582 = vmatpush1.msra.mxu0 0.0
        %3583 = vmatprep.subr.mxu0 0.0
        %3584 = vmatpush1.msra.mxu0 0.0
        %3585 = vmatprep.subr.mxu0 0.0
        %3586 = vmatpush1.msra.mxu0 0.0
        %3587 = vmatprep.mubr.f32.mxu0 0.0
        %v3588 = vand.u32 %v3299, 4294901760
        %3589 = vmatmul.mubr.f32.gmra.mrb[0].mxu0 %v3588
        %v3590 = vpop.f32.mrb[0].mxu0
        %v3591 = vadd.f32 %v3402, %v3590
        %v3592 = vpop.f32.mrb[0].mxu0
        %v3593 = vadd.f32 %v3404, %v3592
        %3594 = vmatprep.mubr.f32.mxu0 0.0
        %v3595 = vand.u32 %v3302, 4294901760
        %3596 = vmatmul.mubr.f32.gmra.mrb[0].mxu0 %v3595
        %v3597 = vpop.f32.mrb[0].mxu0
        %v3598 = vadd.f32 %v3413, %v3597
        %v3599 = vpop.f32.mrb[0].mxu0
        %v3600 = vadd.f32 %v3415, %v3599
        %3601 = vmatprep.mubr.f32.mxu0 0.0
        %v3602 = vand.u32 %v3305, 4294901760
        %3603 = vmatmul.mubr.f32.gmra.mrb[0].mxu0 %v3602
        %v3604 = vpop.f32.mrb[0].mxu0
        %v3605 = vadd.f32 %v3424, %v3604
        %v3606 = vpop.f32.mrb[0].mxu0
        %v3607 = vadd.f32 %v3426, %v3606
        %3608 = vmatprep.mubr.f32.mxu0 0.0
        %v3609 = vand.u32 %v3308, 4294901760
        %3610 = vmatmul.mubr.f32.gmra.mrb[0].mxu0 %v3609
        %v3611 = vpop.f32.mrb[0].mxu0
        %v3612 = vadd.f32 %v3435, %v3611
        %v3613 = vpop.f32.mrb[0].mxu0
        %v3614 = vadd.f32 %v3437, %v3613
        %3615 = vmatprep.mubr.f32.mxu0 0.0
        %v3616 = vand.u32 %v3311, 4294901760
        %3617 = vmatmul.mubr.f32.gmra.mrb[0].mxu0 %v3616
        %v3618 = vpop.f32.mrb[0].mxu0
        %v3619 = vadd.f32 %v3446, %v3618
        %v3620 = vpop.f32.mrb[0].mxu0
        %v3621 = vadd.f32 %v3448, %v3620
        %3622 = vmatprep.mubr.f32.mxu0 0.0
        %v3623 = vand.u32 %v3314, 4294901760
        %3624 = vmatmul.mubr.f32.gmra.mrb[0].mxu0 %v3623
        %v3625 = vpop.f32.mrb[0].mxu0
        %v3626 = vadd.f32 %v3457, %v3625
        %v3627 = vpop.f32.mrb[0].mxu0
        %v3628 = vadd.f32 %v3459, %v3627
        %3629 = vmatprep.mubr.f32.mxu0 0.0
        %v3630 = vand.u32 %v3317, 4294901760
        %3631 = vmatmul.mubr.f32.gmra.mrb[0].mxu0 %v3630
        %v3632 = vpop.f32.mrb[0].mxu0
        %v3633 = vadd.f32 %v3468, %v3632
        %v3634 = vpop.f32.mrb[0].mxu0
        %v3635 = vadd.f32 %v3470, %v3634
        %3636 = vmatprep.mubr.f32.mxu0 0.0
        %v3637 = vand.u32 %v3320, 4294901760
        %3638 = vmatmul.mubr.f32.gmra.mrb[0].mxu0 %v3637
        %v3639 = vpop.f32.mrb[0].mxu0
        %v3640 = vadd.f32 %v3479, %v3639
        %v3641 = vpop.f32.mrb[0].mxu0
        %v3642 = vadd.f32 %v3481, %v3641
        %3643 = vdwg.mxu0
        %v3644 = vand.u32 %v518, 4294901760
        %v3645 = vsub.f32 %v518, %v3644
        %3646 = vmatprep.subr.mxu0 %v3645
        %v3647 = vand.u32 %v517, 4294901760
        %v3648 = vsub.f32 %v517, %v3647
        %3649 = vmatpush1.msra.mxu0 %v3648
        %v3650 = vand.u32 %v520, 4294901760
        %v3651 = vsub.f32 %v520, %v3650
        %3652 = vmatprep.subr.mxu0 %v3651
        %v3653 = vand.u32 %v519, 4294901760
        %v3654 = vsub.f32 %v519, %v3653
        %3655 = vmatpush1.msra.mxu0 %v3654
        %v3656 = vand.u32 %v522, 4294901760
        %v3657 = vsub.f32 %v522, %v3656
        %3658 = vmatprep.subr.mxu0 %v3657
        %v3659 = vand.u32 %v521, 4294901760
        %v3660 = vsub.f32 %v521, %v3659
        %3661 = vmatpush1.msra.mxu0 %v3660
        %v3662 = vand.u32 %v524, 4294901760
        %v3663 = vsub.f32 %v524, %v3662
        %3664 = vmatprep.subr.mxu0 %v3663
        %v3665 = vand.u32 %v523, 4294901760
        %v3666 = vsub.f32 %v523, %v3665
        %3667 = vmatpush1.msra.mxu0 %v3666
        %3668 = vmatprep.subr.mxu0 0.0
        %3669 = vmatpush1.msra.mxu0 0.0
        %3670 = vmatprep.subr.mxu0 0.0
        %3671 = vmatpush1.msra.mxu0 0.0
        %3672 = vmatprep.subr.mxu0 0.0
        %3673 = vmatpush1.msra.mxu0 0.0
        %3674 = vmatprep.subr.mxu0 0.0
        %3675 = vmatpush1.msra.mxu0 0.0
        %3676 = vmatprep.subr.mxu0 0.0
        %3677 = vmatpush1.msra.mxu0 0.0
        %3678 = vmatprep.subr.mxu0 0.0
        %3679 = vmatpush1.msra.mxu0 0.0
        %3680 = vmatprep.subr.mxu0 0.0
        %3681 = vmatpush1.msra.mxu0 0.0
        %3682 = vmatprep.subr.mxu0 0.0
        %3683 = vmatpush1.msra.mxu0 0.0
        %3684 = vmatprep.subr.mxu0 0.0
        %3685 = vmatpush1.msra.mxu0 0.0
        %3686 = vmatprep.subr.mxu0 0.0
        %3687 = vmatpush1.msra.mxu0 0.0
        %3688 = vmatprep.subr.mxu0 0.0
        %3689 = vmatpush1.msra.mxu0 0.0
        %3690 = vmatprep.subr.mxu0 0.0
        %3691 = vmatpush1.msra.mxu0 0.0
        %3692 = vmatprep.subr.mxu0 0.0
        %3693 = vmatpush1.msra.mxu0 0.0
        %3694 = vmatprep.subr.mxu0 0.0
        %3695 = vmatpush1.msra.mxu0 0.0
        %3696 = vmatprep.subr.mxu0 0.0
        %3697 = vmatpush1.msra.mxu0 0.0
        %3698 = vmatprep.subr.mxu0 0.0
        %3699 = vmatpush1.msra.mxu0 0.0
        %3700 = vmatprep.subr.mxu0 0.0
        %3701 = vmatpush1.msra.mxu0 0.0
        %3702 = vmatprep.subr.mxu0 0.0
        %3703 = vmatpush1.msra.mxu0 0.0
        %3704 = vmatprep.subr.mxu0 0.0
        %3705 = vmatpush1.msra.mxu0 0.0
        %3706 = vmatprep.subr.mxu0 0.0
        %3707 = vmatpush1.msra.mxu0 0.0
        %3708 = vmatprep.subr.mxu0 0.0
        %3709 = vmatpush1.msra.mxu0 0.0
        %3710 = vmatprep.subr.mxu0 0.0
        %3711 = vmatpush1.msra.mxu0 0.0
        %3712 = vmatprep.subr.mxu0 0.0
        %3713 = vmatpush1.msra.mxu0 0.0
        %3714 = vmatprep.subr.mxu0 0.0
        %3715 = vmatpush1.msra.mxu0 0.0
        %3716 = vmatprep.subr.mxu0 0.0
        %3717 = vmatpush1.msra.mxu0 0.0
        %3718 = vmatprep.subr.mxu0 0.0
        %3719 = vmatpush1.msra.mxu0 0.0
        %3720 = vmatprep.subr.mxu0 0.0
        %3721 = vmatpush1.msra.mxu0 0.0
        %3722 = vmatprep.subr.mxu0 0.0
        %3723 = vmatpush1.msra.mxu0 0.0
        %3724 = vmatprep.mubr.f32.mxu0 0.0
        %v3725 = vand.u32 %v3299, 4294901760
        %v3726 = vsub.f32 %v3299, %v3725
        %3727 = vmatmul.mubr.f32.gmra.mrb[0].mxu0 %v3726
        %v3728 = vpop.f32.mrb[0].mxu0
        %v3729 = vadd.f32 %v3591, %v3728
        %v3730 = vpop.f32.mrb[0].mxu0
        %v3731 = vadd.f32 %v3593, %v3730
        %3732 = vmatprep.mubr.f32.mxu0 0.0
        %v3733 = vand.u32 %v3302, 4294901760
        %v3734 = vsub.f32 %v3302, %v3733
        %3735 = vmatmul.mubr.f32.gmra.mrb[0].mxu0 %v3734
        %v3736 = vpop.f32.mrb[0].mxu0
        %v3737 = vadd.f32 %v3598, %v3736
        %v3738 = vpop.f32.mrb[0].mxu0
        %v3739 = vadd.f32 %v3600, %v3738
        %3740 = vmatprep.mubr.f32.mxu0 0.0
        %v3741 = vand.u32 %v3305, 4294901760
        %v3742 = vsub.f32 %v3305, %v3741
        %3743 = vmatmul.mubr.f32.gmra.mrb[0].mxu0 %v3742
        %v3744 = vpop.f32.mrb[0].mxu0
        %v3745 = vadd.f32 %v3605, %v3744
        %v3746 = vpop.f32.mrb[0].mxu0
        %v3747 = vadd.f32 %v3607, %v3746
        %3748 = vmatprep.mubr.f32.mxu0 0.0
        %v3749 = vand.u32 %v3308, 4294901760
        %v3750 = vsub.f32 %v3308, %v3749
        %3751 = vmatmul.mubr.f32.gmra.mrb[0].mxu0 %v3750
        %v3752 = vpop.f32.mrb[0].mxu0
        %v3753 = vadd.f32 %v3612, %v3752
        %v3754 = vpop.f32.mrb[0].mxu0
        %v3755 = vadd.f32 %v3614, %v3754
        %3756 = vmatprep.mubr.f32.mxu0 0.0
        %v3757 = vand.u32 %v3311, 4294901760
        %v3758 = vsub.f32 %v3311, %v3757
        %3759 = vmatmul.mubr.f32.gmra.mrb[0].mxu0 %v3758
        %v3760 = vpop.f32.mrb[0].mxu0
        %v3761 = vadd.f32 %v3619, %v3760
        %v3762 = vpop.f32.mrb[0].mxu0
        %v3763 = vadd.f32 %v3621, %v3762
        %3764 = vmatprep.mubr.f32.mxu0 0.0
        %v3765 = vand.u32 %v3314, 4294901760
        %v3766 = vsub.f32 %v3314, %v3765
        %3767 = vmatmul.mubr.f32.gmra.mrb[0].mxu0 %v3766
        %v3768 = vpop.f32.mrb[0].mxu0
        %v3769 = vadd.f32 %v3626, %v3768
        %v3770 = vpop.f32.mrb[0].mxu0
        %v3771 = vadd.f32 %v3628, %v3770
        %3772 = vmatprep.mubr.f32.mxu0 0.0
        %v3773 = vand.u32 %v3317, 4294901760
        %v3774 = vsub.f32 %v3317, %v3773
        %3775 = vmatmul.mubr.f32.gmra.mrb[0].mxu0 %v3774
        %v3776 = vpop.f32.mrb[0].mxu0
        %v3777 = vadd.f32 %v3633, %v3776
        %v3778 = vpop.f32.mrb[0].mxu0
        %v3779 = vadd.f32 %v3635, %v3778
        %3780 = vmatprep.mubr.f32.mxu0 0.0
        %v3781 = vand.u32 %v3320, 4294901760
        %v3782 = vsub.f32 %v3320, %v3781
        %3783 = vmatmul.mubr.f32.gmra.mrb[0].mxu0 %v3782
        %v3784 = vpop.f32.mrb[0].mxu0
        %v3785 = vadd.f32 %v3640, %v3784
        %v3786 = vpop.f32.mrb[0].mxu0
        %v3787 = vadd.f32 %v3642, %v3786
        %3788 = vdwg.mxu0
        %v3789 = vand.u32 %v518, 4294901760
        %3790 = vmatprep.subr.mxu0 %v3789
        %v3791 = vand.u32 %v517, 4294901760
        %3792 = vmatpush1.msra.mxu0 %v3791
        %v3793 = vand.u32 %v520, 4294901760
        %3794 = vmatprep.subr.mxu0 %v3793
        %v3795 = vand.u32 %v519, 4294901760
        %3796 = vmatpush1.msra.mxu0 %v3795
        %v3797 = vand.u32 %v522, 4294901760
        %3798 = vmatprep.subr.mxu0 %v3797
        %v3799 = vand.u32 %v521, 4294901760
        %3800 = vmatpush1.msra.mxu0 %v3799
        %v3801 = vand.u32 %v524, 4294901760
        %3802 = vmatprep.subr.mxu0 %v3801
        %v3803 = vand.u32 %v523, 4294901760
        %3804 = vmatpush1.msra.mxu0 %v3803
        %3805 = vmatprep.subr.mxu0 0.0
        %3806 = vmatpush1.msra.mxu0 0.0
        %3807 = vmatprep.subr.mxu0 0.0
        %3808 = vmatpush1.msra.mxu0 0.0
        %3809 = vmatprep.subr.mxu0 0.0
        %3810 = vmatpush1.msra.mxu0 0.0
        %3811 = vmatprep.subr.mxu0 0.0
        %3812 = vmatpush1.msra.mxu0 0.0
        %3813 = vmatprep.subr.mxu0 0.0
        %3814 = vmatpush1.msra.mxu0 0.0
        %3815 = vmatprep.subr.mxu0 0.0
        %3816 = vmatpush1.msra.mxu0 0.0
        %3817 = vmatprep.subr.mxu0 0.0
        %3818 = vmatpush1.msra.mxu0 0.0
        %3819 = vmatprep.subr.mxu0 0.0
        %3820 = vmatpush1.msra.mxu0 0.0
        %3821 = vmatprep.subr.mxu0 0.0
        %3822 = vmatpush1.msra.mxu0 0.0
        %3823 = vmatprep.subr.mxu0 0.0
        %3824 = vmatpush1.msra.mxu0 0.0
        %3825 = vmatprep.subr.mxu0 0.0
        %3826 = vmatpush1.msra.mxu0 0.0
        %3827 = vmatprep.subr.mxu0 0.0
        %3828 = vmatpush1.msra.mxu0 0.0
        %3829 = vmatprep.subr.mxu0 0.0
        %3830 = vmatpush1.msra.mxu0 0.0
        %3831 = vmatprep.subr.mxu0 0.0
        %3832 = vmatpush1.msra.mxu0 0.0
        %3833 = vmatprep.subr.mxu0 0.0
        %3834 = vmatpush1.msra.mxu0 0.0
        %3835 = vmatprep.subr.mxu0 0.0
        %3836 = vmatpush1.msra.mxu0 0.0
        %3837 = vmatprep.subr.mxu0 0.0
        %3838 = vmatpush1.msra.mxu0 0.0
        %3839 = vmatprep.subr.mxu0 0.0
        %3840 = vmatpush1.msra.mxu0 0.0
        %3841 = vmatprep.subr.mxu0 0.0
        %3842 = vmatpush1.msra.mxu0 0.0
        %3843 = vmatprep.subr.mxu0 0.0
        %3844 = vmatpush1.msra.mxu0 0.0
        %3845 = vmatprep.subr.mxu0 0.0
        %3846 = vmatpush1.msra.mxu0 0.0
        %3847 = vmatprep.subr.mxu0 0.0
        %3848 = vmatpush1.msra.mxu0 0.0
        %3849 = vmatprep.subr.mxu0 0.0
        %3850 = vmatpush1.msra.mxu0 0.0
        %3851 = vmatprep.subr.mxu0 0.0
        %3852 = vmatpush1.msra.mxu0 0.0
        %3853 = vmatprep.subr.mxu0 0.0
        %3854 = vmatpush1.msra.mxu0 0.0
        %3855 = vmatprep.subr.mxu0 0.0
        %3856 = vmatpush1.msra.mxu0 0.0
        %3857 = vmatprep.subr.mxu0 0.0
        %3858 = vmatpush1.msra.mxu0 0.0
        %3859 = vmatprep.subr.mxu0 0.0
        %3860 = vmatpush1.msra.mxu0 0.0
        %3861 = vmatprep.mubr.f32.mxu0 0.0
        %v3862 = vand.u32 %v3299, 4294901760
        %v3863 = vsub.f32 %v3299, %v3862
        %v3864 = vand.u32 %v3863, 4294901760
        %3865 = vmatmul.mubr.f32.gmra.mrb[0].mxu0 %v3864
        %v3866 = vpop.f32.mrb[0].mxu0
        %v3867 = vadd.f32 %v3729, %v3866
        %v3868 = vpop.f32.mrb[0].mxu0
        %v3869 = vadd.f32 %v3731, %v3868
        %3870 = vmatprep.mubr.f32.mxu0 0.0
        %v3871 = vand.u32 %v3302, 4294901760
        %v3872 = vsub.f32 %v3302, %v3871
        %v3873 = vand.u32 %v3872, 4294901760
        %3874 = vmatmul.mubr.f32.gmra.mrb[0].mxu0 %v3873
        %v3875 = vpop.f32.mrb[0].mxu0
        %v3876 = vadd.f32 %v3737, %v3875
        %v3877 = vpop.f32.mrb[0].mxu0
        %v3878 = vadd.f32 %v3739, %v3877
        %3879 = vmatprep.mubr.f32.mxu0 0.0
        %v3880 = vand.u32 %v3305, 4294901760
        %v3881 = vsub.f32 %v3305, %v3880
        %v3882 = vand.u32 %v3881, 4294901760
        %3883 = vmatmul.mubr.f32.gmra.mrb[0].mxu0 %v3882
        %v3884 = vpop.f32.mrb[0].mxu0
        %v3885 = vadd.f32 %v3745, %v3884
        %v3886 = vpop.f32.mrb[0].mxu0
        %v3887 = vadd.f32 %v3747, %v3886
        %3888 = vmatprep.mubr.f32.mxu0 0.0
        %v3889 = vand.u32 %v3308, 4294901760
        %v3890 = vsub.f32 %v3308, %v3889
        %v3891 = vand.u32 %v3890, 4294901760
        %3892 = vmatmul.mubr.f32.gmra.mrb[0].mxu0 %v3891
        %v3893 = vpop.f32.mrb[0].mxu0
        %v3894 = vadd.f32 %v3753, %v3893
        %v3895 = vpop.f32.mrb[0].mxu0
        %v3896 = vadd.f32 %v3755, %v3895
        %3897 = vmatprep.mubr.f32.mxu0 0.0
        %v3898 = vand.u32 %v3311, 4294901760
        %v3899 = vsub.f32 %v3311, %v3898
        %v3900 = vand.u32 %v3899, 4294901760
        %3901 = vmatmul.mubr.f32.gmra.mrb[0].mxu0 %v3900
        %v3902 = vpop.f32.mrb[0].mxu0
        %v3903 = vadd.f32 %v3761, %v3902
        %v3904 = vpop.f32.mrb[0].mxu0
        %v3905 = vadd.f32 %v3763, %v3904
        %3906 = vmatprep.mubr.f32.mxu0 0.0
        %v3907 = vand.u32 %v3314, 4294901760
        %v3908 = vsub.f32 %v3314, %v3907
        %v3909 = vand.u32 %v3908, 4294901760
        %3910 = vmatmul.mubr.f32.gmra.mrb[0].mxu0 %v3909
        %v3911 = vpop.f32.mrb[0].mxu0
        %v3912 = vadd.f32 %v3769, %v3911
        %v3913 = vpop.f32.mrb[0].mxu0
        %v3914 = vadd.f32 %v3771, %v3913
        %3915 = vmatprep.mubr.f32.mxu0 0.0
        %v3916 = vand.u32 %v3317, 4294901760
        %v3917 = vsub.f32 %v3317, %v3916
        %v3918 = vand.u32 %v3917, 4294901760
        %3919 = vmatmul.mubr.f32.gmra.mrb[0].mxu0 %v3918
        %v3920 = vpop.f32.mrb[0].mxu0
        %v3921 = vadd.f32 %v3777, %v3920
        %v3922 = vpop.f32.mrb[0].mxu0
        %v3923 = vadd.f32 %v3779, %v3922
        %3924 = vmatprep.mubr.f32.mxu0 0.0
        %v3925 = vand.u32 %v3320, 4294901760
        %v3926 = vsub.f32 %v3320, %v3925
        %v3927 = vand.u32 %v3926, 4294901760
        %3928 = vmatmul.mubr.f32.gmra.mrb[0].mxu0 %v3927
        %v3929 = vpop.f32.mrb[0].mxu0
        %v3930 = vadd.f32 %v3785, %v3929
        %v3931 = vpop.f32.mrb[0].mxu0
        %v3932 = vadd.f32 %v3787, %v3931
        %3933 = vdwg.mxu0
        %v3934 = vand.u32 %v518, 4294901760
        %v3935 = vsub.f32 %v518, %v3934
        %v3936 = vand.u32 %v3935, 4294901760
        %3937 = vmatprep.subr.mxu0 %v3936
        %v3938 = vand.u32 %v517, 4294901760
        %v3939 = vsub.f32 %v517, %v3938
        %v3940 = vand.u32 %v3939, 4294901760
        %3941 = vmatpush1.msra.mxu0 %v3940
        %v3942 = vand.u32 %v520, 4294901760
        %v3943 = vsub.f32 %v520, %v3942
        %v3944 = vand.u32 %v3943, 4294901760
        %3945 = vmatprep.subr.mxu0 %v3944
        %v3946 = vand.u32 %v519, 4294901760
        %v3947 = vsub.f32 %v519, %v3946
        %v3948 = vand.u32 %v3947, 4294901760
        %3949 = vmatpush1.msra.mxu0 %v3948
        %v3950 = vand.u32 %v522, 4294901760
        %v3951 = vsub.f32 %v522, %v3950
        %v3952 = vand.u32 %v3951, 4294901760
        %3953 = vmatprep.subr.mxu0 %v3952
        %v3954 = vand.u32 %v521, 4294901760
        %v3955 = vsub.f32 %v521, %v3954
        %v3956 = vand.u32 %v3955, 4294901760
        %3957 = vmatpush1.msra.mxu0 %v3956
        %v3958 = vand.u32 %v524, 4294901760
        %v3959 = vsub.f32 %v524, %v3958
        %v3960 = vand.u32 %v3959, 4294901760
        %3961 = vmatprep.subr.mxu0 %v3960
        %v3962 = vand.u32 %v523, 4294901760
        %v3963 = vsub.f32 %v523, %v3962
        %v3964 = vand.u32 %v3963, 4294901760
        %3965 = vmatpush1.msra.mxu0 %v3964
        %3966 = vmatprep.subr.mxu0 0.0
        %3967 = vmatpush1.msra.mxu0 0.0
        %3968 = vmatprep.subr.mxu0 0.0
        %3969 = vmatpush1.msra.mxu0 0.0
        %3970 = vmatprep.subr.mxu0 0.0
        %3971 = vmatpush1.msra.mxu0 0.0
        %3972 = vmatprep.subr.mxu0 0.0
        %3973 = vmatpush1.msra.mxu0 0.0
        %3974 = vmatprep.subr.mxu0 0.0
        %3975 = vmatpush1.msra.mxu0 0.0
        %3976 = vmatprep.subr.mxu0 0.0
        %3977 = vmatpush1.msra.mxu0 0.0
        %3978 = vmatprep.subr.mxu0 0.0
        %3979 = vmatpush1.msra.mxu0 0.0
        %3980 = vmatprep.subr.mxu0 0.0
        %3981 = vmatpush1.msra.mxu0 0.0
        %3982 = vmatprep.subr.mxu0 0.0
        %3983 = vmatpush1.msra.mxu0 0.0
        %3984 = vmatprep.subr.mxu0 0.0
        %3985 = vmatpush1.msra.mxu0 0.0
        %3986 = vmatprep.subr.mxu0 0.0
        %3987 = vmatpush1.msra.mxu0 0.0
        %3988 = vmatprep.subr.mxu0 0.0
        %3989 = vmatpush1.msra.mxu0 0.0
        %3990 = vmatprep.subr.mxu0 0.0
        %3991 = vmatpush1.msra.mxu0 0.0
        %3992 = vmatprep.subr.mxu0 0.0
        %3993 = vmatpush1.msra.mxu0 0.0
        %3994 = vmatprep.subr.mxu0 0.0
        %3995 = vmatpush1.msra.mxu0 0.0
        %3996 = vmatprep.subr.mxu0 0.0
        %3997 = vmatpush1.msra.mxu0 0.0
        %3998 = vmatprep.subr.mxu0 0.0
        %3999 = vmatpush1.msra.mxu0 0.0
        %4000 = vmatprep.subr.mxu0 0.0
        %4001 = vmatpush1.msra.mxu0 0.0
        %4002 = vmatprep.subr.mxu0 0.0
        %4003 = vmatpush1.msra.mxu0 0.0
        %4004 = vmatprep.subr.mxu0 0.0
        %4005 = vmatpush1.msra.mxu0 0.0
        %4006 = vmatprep.subr.mxu0 0.0
        %4007 = vmatpush1.msra.mxu0 0.0
        %4008 = vmatprep.subr.mxu0 0.0
        %4009 = vmatpush1.msra.mxu0 0.0
        %4010 = vmatprep.subr.mxu0 0.0
        %4011 = vmatpush1.msra.mxu0 0.0
        %4012 = vmatprep.subr.mxu0 0.0
        %4013 = vmatpush1.msra.mxu0 0.0
        %4014 = vmatprep.subr.mxu0 0.0
        %4015 = vmatpush1.msra.mxu0 0.0
        %4016 = vmatprep.subr.mxu0 0.0
        %4017 = vmatpush1.msra.mxu0 0.0
        %4018 = vmatprep.subr.mxu0 0.0
        %4019 = vmatpush1.msra.mxu0 0.0
        %4020 = vmatprep.subr.mxu0 0.0
        %4021 = vmatpush1.msra.mxu0 0.0
        %4022 = vmatprep.mubr.f32.mxu0 0.0
        %v4023 = vand.u32 %v3299, 4294901760
        %4024 = vmatmul.mubr.f32.gmra.mrb[0].mxu0 %v4023
        %v4025 = vpop.f32.mrb[0].mxu0
        %v4026 = vadd.f32 %v3867, %v4025
        %v4027 = vpop.f32.mrb[0].mxu0
        %v4028 = vadd.f32 %v3869, %v4027
        %4029 = vmatprep.mubr.f32.mxu0 0.0
        %v4030 = vand.u32 %v3302, 4294901760
        %4031 = vmatmul.mubr.f32.gmra.mrb[0].mxu0 %v4030
        %v4032 = vpop.f32.mrb[0].mxu0
        %v4033 = vadd.f32 %v3876, %v4032
        %v4034 = vpop.f32.mrb[0].mxu0
        %v4035 = vadd.f32 %v3878, %v4034
        %4036 = vmatprep.mubr.f32.mxu0 0.0
        %v4037 = vand.u32 %v3305, 4294901760
        %4038 = vmatmul.mubr.f32.gmra.mrb[0].mxu0 %v4037
        %v4039 = vpop.f32.mrb[0].mxu0
        %v4040 = vadd.f32 %v3885, %v4039
        %v4041 = vpop.f32.mrb[0].mxu0
        %v4042 = vadd.f32 %v3887, %v4041
        %4043 = vmatprep.mubr.f32.mxu0 0.0
        %v4044 = vand.u32 %v3308, 4294901760
        %4045 = vmatmul.mubr.f32.gmra.mrb[0].mxu0 %v4044
        %v4046 = vpop.f32.mrb[0].mxu0
        %v4047 = vadd.f32 %v3894, %v4046
        %v4048 = vpop.f32.mrb[0].mxu0
        %v4049 = vadd.f32 %v3896, %v4048
        %4050 = vmatprep.mubr.f32.mxu0 0.0
        %v4051 = vand.u32 %v3311, 4294901760
        %4052 = vmatmul.mubr.f32.gmra.mrb[0].mxu0 %v4051
        %v4053 = vpop.f32.mrb[0].mxu0
        %v4054 = vadd.f32 %v3903, %v4053
        %v4055 = vpop.f32.mrb[0].mxu0
        %v4056 = vadd.f32 %v3905, %v4055
        %4057 = vmatprep.mubr.f32.mxu0 0.0
        %v4058 = vand.u32 %v3314, 4294901760
        %4059 = vmatmul.mubr.f32.gmra.mrb[0].mxu0 %v4058
        %v4060 = vpop.f32.mrb[0].mxu0
        %v4061 = vadd.f32 %v3912, %v4060
        %v4062 = vpop.f32.mrb[0].mxu0
        %v4063 = vadd.f32 %v3914, %v4062
        %4064 = vmatprep.mubr.f32.mxu0 0.0
        %v4065 = vand.u32 %v3317, 4294901760
        %4066 = vmatmul.mubr.f32.gmra.mrb[0].mxu0 %v4065
        %v4067 = vpop.f32.mrb[0].mxu0
        %v4068 = vadd.f32 %v3921, %v4067
        %v4069 = vpop.f32.mrb[0].mxu0
        %v4070 = vadd.f32 %v3923, %v4069
        %4071 = vmatprep.mubr.f32.mxu0 0.0
        %v4072 = vand.u32 %v3320, 4294901760
        %4073 = vmatmul.mubr.f32.gmra.mrb[0].mxu0 %v4072
        %v4074 = vpop.f32.mrb[0].mxu0
        %v4075 = vadd.f32 %v3930, %v4074
        %v4076 = vpop.f32.mrb[0].mxu0
        %v4077 = vadd.f32 %v3932, %v4076
        %4078 = vdwg.mxu0
        %v4079 = vand.u32 %v518, 4294901760
        %4080 = vmatprep.subr.mxu0 %v4079
        %v4081 = vand.u32 %v517, 4294901760
        %4082 = vmatpush1.msra.mxu0 %v4081
        %v4083 = vand.u32 %v520, 4294901760
        %4084 = vmatprep.subr.mxu0 %v4083
        %v4085 = vand.u32 %v519, 4294901760
        %4086 = vmatpush1.msra.mxu0 %v4085
        %v4087 = vand.u32 %v522, 4294901760
        %4088 = vmatprep.subr.mxu0 %v4087
        %v4089 = vand.u32 %v521, 4294901760
        %4090 = vmatpush1.msra.mxu0 %v4089
        %v4091 = vand.u32 %v524, 4294901760
        %4092 = vmatprep.subr.mxu0 %v4091
        %v4093 = vand.u32 %v523, 4294901760
        %4094 = vmatpush1.msra.mxu0 %v4093
        %4095 = vmatprep.subr.mxu0 0.0
        %4096 = vmatpush1.msra.mxu0 0.0
        %4097 = vmatprep.subr.mxu0 0.0
        %4098 = vmatpush1.msra.mxu0 0.0
        %4099 = vmatprep.subr.mxu0 0.0
        %4100 = vmatpush1.msra.mxu0 0.0
        %4101 = vmatprep.subr.mxu0 0.0
        %4102 = vmatpush1.msra.mxu0 0.0
        %4103 = vmatprep.subr.mxu0 0.0
        %4104 = vmatpush1.msra.mxu0 0.0
        %4105 = vmatprep.subr.mxu0 0.0
        %4106 = vmatpush1.msra.mxu0 0.0
        %4107 = vmatprep.subr.mxu0 0.0
        %4108 = vmatpush1.msra.mxu0 0.0
        %4109 = vmatprep.subr.mxu0 0.0
        %4110 = vmatpush1.msra.mxu0 0.0
        %4111 = vmatprep.subr.mxu0 0.0
        %4112 = vmatpush1.msra.mxu0 0.0
        %4113 = vmatprep.subr.mxu0 0.0
        %4114 = vmatpush1.msra.mxu0 0.0
        %4115 = vmatprep.subr.mxu0 0.0
        %4116 = vmatpush1.msra.mxu0 0.0
        %4117 = vmatprep.subr.mxu0 0.0
        %4118 = vmatpush1.msra.mxu0 0.0
        %4119 = vmatprep.subr.mxu0 0.0
        %4120 = vmatpush1.msra.mxu0 0.0
        %4121 = vmatprep.subr.mxu0 0.0
        %4122 = vmatpush1.msra.mxu0 0.0
        %4123 = vmatprep.subr.mxu0 0.0
        %4124 = vmatpush1.msra.mxu0 0.0
        %4125 = vmatprep.subr.mxu0 0.0
        %4126 = vmatpush1.msra.mxu0 0.0
        %4127 = vmatprep.subr.mxu0 0.0
        %4128 = vmatpush1.msra.mxu0 0.0
        %4129 = vmatprep.subr.mxu0 0.0
        %4130 = vmatpush1.msra.mxu0 0.0
        %4131 = vmatprep.subr.mxu0 0.0
        %4132 = vmatpush1.msra.mxu0 0.0
        %4133 = vmatprep.subr.mxu0 0.0
        %4134 = vmatpush1.msra.mxu0 0.0
        %4135 = vmatprep.subr.mxu0 0.0
        %4136 = vmatpush1.msra.mxu0 0.0
        %4137 = vmatprep.subr.mxu0 0.0
        %4138 = vmatpush1.msra.mxu0 0.0
        %4139 = vmatprep.subr.mxu0 0.0
        %4140 = vmatpush1.msra.mxu0 0.0
        %4141 = vmatprep.subr.mxu0 0.0
        %4142 = vmatpush1.msra.mxu0 0.0
        %4143 = vmatprep.subr.mxu0 0.0
        %4144 = vmatpush1.msra.mxu0 0.0
        %4145 = vmatprep.subr.mxu0 0.0
        %4146 = vmatpush1.msra.mxu0 0.0
        %4147 = vmatprep.subr.mxu0 0.0
        %4148 = vmatpush1.msra.mxu0 0.0
        %4149 = vmatprep.subr.mxu0 0.0
        %4150 = vmatpush1.msra.mxu0 0.0
        %4151 = vmatprep.mubr.f32.mxu0 0.0
        %v4152 = vand.u32 %v3299, 4294901760
        %4153 = vmatmul.mubr.f32.gmra.mrb[0].mxu0 %v4152
        %v4154 = vpop.f32.mrb[0].mxu0
        %v4155 = vadd.f32 %v4026, %v4154
        %v4156 = vpop.f32.mrb[0].mxu0
        %v4157 = vadd.f32 %v4028, %v4156
        %4158 = vmatprep.mubr.f32.mxu0 0.0
        %v4159 = vand.u32 %v3302, 4294901760
        %4160 = vmatmul.mubr.f32.gmra.mrb[0].mxu0 %v4159
        %v4161 = vpop.f32.mrb[0].mxu0
        %v4162 = vadd.f32 %v4033, %v4161
        %v4163 = vpop.f32.mrb[0].mxu0
        %v4164 = vadd.f32 %v4035, %v4163
        %4165 = vmatprep.mubr.f32.mxu0 0.0
        %v4166 = vand.u32 %v3305, 4294901760
        %4167 = vmatmul.mubr.f32.gmra.mrb[0].mxu0 %v4166
        %v4168 = vpop.f32.mrb[0].mxu0
        %v4169 = vadd.f32 %v4040, %v4168
        %v4170 = vpop.f32.mrb[0].mxu0
        %v4171 = vadd.f32 %v4042, %v4170
        %4172 = vmatprep.mubr.f32.mxu0 0.0
        %v4173 = vand.u32 %v3308, 4294901760
        %4174 = vmatmul.mubr.f32.gmra.mrb[0].mxu0 %v4173
        %v4175 = vpop.f32.mrb[0].mxu0
        %v4176 = vadd.f32 %v4047, %v4175
        %v4177 = vpop.f32.mrb[0].mxu0
        %v4178 = vadd.f32 %v4049, %v4177
        %4179 = vmatprep.mubr.f32.mxu0 0.0
        %v4180 = vand.u32 %v3311, 4294901760
        %4181 = vmatmul.mubr.f32.gmra.mrb[0].mxu0 %v4180
        %v4182 = vpop.f32.mrb[0].mxu0
        %v4183 = vadd.f32 %v4054, %v4182
        %v4184 = vpop.f32.mrb[0].mxu0
        %v4185 = vadd.f32 %v4056, %v4184
        %4186 = vmatprep.mubr.f32.mxu0 0.0
        %v4187 = vand.u32 %v3314, 4294901760
        %4188 = vmatmul.mubr.f32.gmra.mrb[0].mxu0 %v4187
        %v4189 = vpop.f32.mrb[0].mxu0
        %v4190 = vadd.f32 %v4061, %v4189
        %v4191 = vpop.f32.mrb[0].mxu0
        %v4192 = vadd.f32 %v4063, %v4191
        %4193 = vmatprep.mubr.f32.mxu0 0.0
        %v4194 = vand.u32 %v3317, 4294901760
        %4195 = vmatmul.mubr.f32.gmra.mrb[0].mxu0 %v4194
        %v4196 = vpop.f32.mrb[0].mxu0
        %v4197 = vadd.f32 %v4068, %v4196
        %v4198 = vpop.f32.mrb[0].mxu0
        %v4199 = vadd.f32 %v4070, %v4198
        %4200 = vmatprep.mubr.f32.mxu0 0.0
        %v4201 = vand.u32 %v3320, 4294901760
        %4202 = vmatmul.mubr.f32.gmra.mrb[0].mxu0 %v4201
        %v4203 = vpop.f32.mrb[0].mxu0
        %v4204 = vadd.f32 %v4075, %v4203
        %v4205 = vpop.f32.mrb[0].mxu0
        %v4206 = vadd.f32 %v4077, %v4205
        %4207 = vdwg.mxu0
        %v4208 = vadd.f32 %v501, %v4155
        %v4209 = vadd.f32 %v502, %v4157
        %v4210 = vadd.f32 %v503, %v4162
        %v4211 = vadd.f32 %v504, %v4164
        %v4212 = vadd.f32 %v505, %v4169
        %v4213 = vadd.f32 %v506, %v4171
        %v4214 = vadd.f32 %v507, %v4176
        %v4215 = vadd.f32 %v508, %v4178
        %v4216 = vadd.f32 %v509, %v4183
        %v4217 = vadd.f32 %v510, %v4185
        %v4218 = vadd.f32 %v511, %v4190
        %v4219 = vadd.f32 %v512, %v4192
        %v4220 = vadd.f32 %v513, %v4197
        %v4221 = vadd.f32 %v514, %v4199
        %v4222 = vadd.f32 %v515, %v4204
        %v4223 = vadd.f32 %v516, %v4206
        %v4225 = vsel %vm581, %v573, 0
        %v4228 = vsel %vm581, %v574, 0
        %v4231 = vsel %vm581, %v575, 0
        %v4234 = vsel %vm581, %v576, 0
        %v4237 = vsel %vm581, %v577, 0
        %v4240 = vsel %vm581, %v578, 0
        %v4243 = vsel %vm581, %v579, 0
        %v4246 = vsel %vm581, %v580, 0
        %v4248 = vand.u32 %v526, 4294901760
        %4249 = vmatprep.subr.mxu0 %v4248
        %v4250 = vand.u32 %v525, 4294901760
        %4251 = vmatpush1.msra.mxu0 %v4250
        %v4252 = vand.u32 %v528, 4294901760
        %4253 = vmatprep.subr.mxu0 %v4252
        %v4254 = vand.u32 %v527, 4294901760
        %4255 = vmatpush1.msra.mxu0 %v4254
        %v4256 = vand.u32 %v530, 4294901760
        %4257 = vmatprep.subr.mxu0 %v4256
        %v4258 = vand.u32 %v529, 4294901760
        %4259 = vmatpush1.msra.mxu0 %v4258
        %v4260 = vand.u32 %v532, 4294901760
        %4261 = vmatprep.subr.mxu0 %v4260
        %v4262 = vand.u32 %v531, 4294901760
        %4263 = vmatpush1.msra.mxu0 %v4262
        %4264 = vmatprep.subr.mxu0 0.0
        %4265 = vmatpush1.msra.mxu0 0.0
        %4266 = vmatprep.subr.mxu0 0.0
        %4267 = vmatpush1.msra.mxu0 0.0
        %4268 = vmatprep.subr.mxu0 0.0
        %4269 = vmatpush1.msra.mxu0 0.0
        %4270 = vmatprep.subr.mxu0 0.0
        %4271 = vmatpush1.msra.mxu0 0.0
        %4272 = vmatprep.subr.mxu0 0.0
        %4273 = vmatpush1.msra.mxu0 0.0
        %4274 = vmatprep.subr.mxu0 0.0
        %4275 = vmatpush1.msra.mxu0 0.0
        %4276 = vmatprep.subr.mxu0 0.0
        %4277 = vmatpush1.msra.mxu0 0.0
        %4278 = vmatprep.subr.mxu0 0.0
        %4279 = vmatpush1.msra.mxu0 0.0
        %4280 = vmatprep.subr.mxu0 0.0
        %4281 = vmatpush1.msra.mxu0 0.0
        %4282 = vmatprep.subr.mxu0 0.0
        %4283 = vmatpush1.msra.mxu0 0.0
        %4284 = vmatprep.subr.mxu0 0.0
        %4285 = vmatpush1.msra.mxu0 0.0
        %4286 = vmatprep.subr.mxu0 0.0
        %4287 = vmatpush1.msra.mxu0 0.0
        %4288 = vmatprep.subr.mxu0 0.0
        %4289 = vmatpush1.msra.mxu0 0.0
        %4290 = vmatprep.subr.mxu0 0.0
        %4291 = vmatpush1.msra.mxu0 0.0
        %4292 = vmatprep.subr.mxu0 0.0
        %4293 = vmatpush1.msra.mxu0 0.0
        %4294 = vmatprep.subr.mxu0 0.0
        %4295 = vmatpush1.msra.mxu0 0.0
        %4296 = vmatprep.subr.mxu0 0.0
        %4297 = vmatpush1.msra.mxu0 0.0
        %4298 = vmatprep.subr.mxu0 0.0
        %4299 = vmatpush1.msra.mxu0 0.0
        %4300 = vmatprep.subr.mxu0 0.0
        %4301 = vmatpush1.msra.mxu0 0.0
        %4302 = vmatprep.subr.mxu0 0.0
        %4303 = vmatpush1.msra.mxu0 0.0
        %4304 = vmatprep.subr.mxu0 0.0
        %4305 = vmatpush1.msra.mxu0 0.0
        %4306 = vmatprep.subr.mxu0 0.0
        %4307 = vmatpush1.msra.mxu0 0.0
        %4308 = vmatprep.subr.mxu0 0.0
        %4309 = vmatpush1.msra.mxu0 0.0
        %4310 = vmatprep.subr.mxu0 0.0
        %4311 = vmatpush1.msra.mxu0 0.0
        %4312 = vmatprep.subr.mxu0 0.0
        %4313 = vmatpush1.msra.mxu0 0.0
        %4314 = vmatprep.subr.mxu0 0.0
        %4315 = vmatpush1.msra.mxu0 0.0
        %4316 = vmatprep.subr.mxu0 0.0
        %4317 = vmatpush1.msra.mxu0 0.0
        %4318 = vmatprep.subr.mxu0 0.0
        %4319 = vmatpush1.msra.mxu0 0.0
        %4320 = vmatprep.mubr.f32.mxu0 0.0
        %v4321 = vand.u32 %v4225, 4294901760
        %v4322 = vsub.f32 %v4225, %v4321
        %v4323 = vand.u32 %v4322, 4294901760
        %v4324 = vsub.f32 %v4322, %v4323
        %v4325 = vand.u32 %v4324, 4294901760
        %4326 = vmatmul.mubr.f32.gmra.mrb[0].mxu0 %v4325
        %v4327 = vpop.f32.mrb[0].mxu0
        %v4328 = vadd.f32 0.0, %v4327
        %v4329 = vpop.f32.mrb[0].mxu0
        %v4330 = vadd.f32 0.0, %v4329
        %4331 = vmatprep.mubr.f32.mxu0 0.0
        %v4332 = vand.u32 %v4228, 4294901760
        %v4333 = vsub.f32 %v4228, %v4332
        %v4334 = vand.u32 %v4333, 4294901760
        %v4335 = vsub.f32 %v4333, %v4334
        %v4336 = vand.u32 %v4335, 4294901760
        %4337 = vmatmul.mubr.f32.gmra.mrb[0].mxu0 %v4336
        %v4338 = vpop.f32.mrb[0].mxu0
        %v4339 = vadd.f32 0.0, %v4338
        %v4340 = vpop.f32.mrb[0].mxu0
        %v4341 = vadd.f32 0.0, %v4340
        %4342 = vmatprep.mubr.f32.mxu0 0.0
        %v4343 = vand.u32 %v4231, 4294901760
        %v4344 = vsub.f32 %v4231, %v4343
        %v4345 = vand.u32 %v4344, 4294901760
        %v4346 = vsub.f32 %v4344, %v4345
        %v4347 = vand.u32 %v4346, 4294901760
        %4348 = vmatmul.mubr.f32.gmra.mrb[0].mxu0 %v4347
        %v4349 = vpop.f32.mrb[0].mxu0
        %v4350 = vadd.f32 0.0, %v4349
        %v4351 = vpop.f32.mrb[0].mxu0
        %v4352 = vadd.f32 0.0, %v4351
        %4353 = vmatprep.mubr.f32.mxu0 0.0
        %v4354 = vand.u32 %v4234, 4294901760
        %v4355 = vsub.f32 %v4234, %v4354
        %v4356 = vand.u32 %v4355, 4294901760
        %v4357 = vsub.f32 %v4355, %v4356
        %v4358 = vand.u32 %v4357, 4294901760
        %4359 = vmatmul.mubr.f32.gmra.mrb[0].mxu0 %v4358
        %v4360 = vpop.f32.mrb[0].mxu0
        %v4361 = vadd.f32 0.0, %v4360
        %v4362 = vpop.f32.mrb[0].mxu0
        %v4363 = vadd.f32 0.0, %v4362
        %4364 = vmatprep.mubr.f32.mxu0 0.0
        %v4365 = vand.u32 %v4237, 4294901760
        %v4366 = vsub.f32 %v4237, %v4365
        %v4367 = vand.u32 %v4366, 4294901760
        %v4368 = vsub.f32 %v4366, %v4367
        %v4369 = vand.u32 %v4368, 4294901760
        %4370 = vmatmul.mubr.f32.gmra.mrb[0].mxu0 %v4369
        %v4371 = vpop.f32.mrb[0].mxu0
        %v4372 = vadd.f32 0.0, %v4371
        %v4373 = vpop.f32.mrb[0].mxu0
        %v4374 = vadd.f32 0.0, %v4373
        %4375 = vmatprep.mubr.f32.mxu0 0.0
        %v4376 = vand.u32 %v4240, 4294901760
        %v4377 = vsub.f32 %v4240, %v4376
        %v4378 = vand.u32 %v4377, 4294901760
        %v4379 = vsub.f32 %v4377, %v4378
        %v4380 = vand.u32 %v4379, 4294901760
        %4381 = vmatmul.mubr.f32.gmra.mrb[0].mxu0 %v4380
        %v4382 = vpop.f32.mrb[0].mxu0
        %v4383 = vadd.f32 0.0, %v4382
        %v4384 = vpop.f32.mrb[0].mxu0
        %v4385 = vadd.f32 0.0, %v4384
        %4386 = vmatprep.mubr.f32.mxu0 0.0
        %v4387 = vand.u32 %v4243, 4294901760
        %v4388 = vsub.f32 %v4243, %v4387
        %v4389 = vand.u32 %v4388, 4294901760
        %v4390 = vsub.f32 %v4388, %v4389
        %v4391 = vand.u32 %v4390, 4294901760
        %4392 = vmatmul.mubr.f32.gmra.mrb[0].mxu0 %v4391
        %v4393 = vpop.f32.mrb[0].mxu0
        %v4394 = vadd.f32 0.0, %v4393
        %v4395 = vpop.f32.mrb[0].mxu0
        %v4396 = vadd.f32 0.0, %v4395
        %4397 = vmatprep.mubr.f32.mxu0 0.0
        %v4398 = vand.u32 %v4246, 4294901760
        %v4399 = vsub.f32 %v4246, %v4398
        %v4400 = vand.u32 %v4399, 4294901760
        %v4401 = vsub.f32 %v4399, %v4400
        %v4402 = vand.u32 %v4401, 4294901760
        %4403 = vmatmul.mubr.f32.gmra.mrb[0].mxu0 %v4402
        %v4404 = vpop.f32.mrb[0].mxu0
        %v4405 = vadd.f32 0.0, %v4404
        %v4406 = vpop.f32.mrb[0].mxu0
        %v4407 = vadd.f32 0.0, %v4406
        %4408 = vdwg.mxu0
        %v4409 = vand.u32 %v526, 4294901760
        %v4410 = vsub.f32 %v526, %v4409
        %v4411 = vand.u32 %v4410, 4294901760
        %v4412 = vsub.f32 %v4410, %v4411
        %v4413 = vand.u32 %v4412, 4294901760
        %4414 = vmatprep.subr.mxu0 %v4413
        %v4415 = vand.u32 %v525, 4294901760
        %v4416 = vsub.f32 %v525, %v4415
        %v4417 = vand.u32 %v4416, 4294901760
        %v4418 = vsub.f32 %v4416, %v4417
        %v4419 = vand.u32 %v4418, 4294901760
        %4420 = vmatpush1.msra.mxu0 %v4419
        %v4421 = vand.u32 %v528, 4294901760
        %v4422 = vsub.f32 %v528, %v4421
        %v4423 = vand.u32 %v4422, 4294901760
        %v4424 = vsub.f32 %v4422, %v4423
        %v4425 = vand.u32 %v4424, 4294901760
        %4426 = vmatprep.subr.mxu0 %v4425
        %v4427 = vand.u32 %v527, 4294901760
        %v4428 = vsub.f32 %v527, %v4427
        %v4429 = vand.u32 %v4428, 4294901760
        %v4430 = vsub.f32 %v4428, %v4429
        %v4431 = vand.u32 %v4430, 4294901760
        %4432 = vmatpush1.msra.mxu0 %v4431
        %v4433 = vand.u32 %v530, 4294901760
        %v4434 = vsub.f32 %v530, %v4433
        %v4435 = vand.u32 %v4434, 4294901760
        %v4436 = vsub.f32 %v4434, %v4435
        %v4437 = vand.u32 %v4436, 4294901760
        %4438 = vmatprep.subr.mxu0 %v4437
        %v4439 = vand.u32 %v529, 4294901760
        %v4440 = vsub.f32 %v529, %v4439
        %v4441 = vand.u32 %v4440, 4294901760
        %v4442 = vsub.f32 %v4440, %v4441
        %v4443 = vand.u32 %v4442, 4294901760
        %4444 = vmatpush1.msra.mxu0 %v4443
        %v4445 = vand.u32 %v532, 4294901760
        %v4446 = vsub.f32 %v532, %v4445
        %v4447 = vand.u32 %v4446, 4294901760
        %v4448 = vsub.f32 %v4446, %v4447
        %v4449 = vand.u32 %v4448, 4294901760
        %4450 = vmatprep.subr.mxu0 %v4449
        %v4451 = vand.u32 %v531, 4294901760
        %v4452 = vsub.f32 %v531, %v4451
        %v4453 = vand.u32 %v4452, 4294901760
        %v4454 = vsub.f32 %v4452, %v4453
        %v4455 = vand.u32 %v4454, 4294901760
        %4456 = vmatpush1.msra.mxu0 %v4455
        %4457 = vmatprep.subr.mxu0 0.0
        %4458 = vmatpush1.msra.mxu0 0.0
        %4459 = vmatprep.subr.mxu0 0.0
        %4460 = vmatpush1.msra.mxu0 0.0
        %4461 = vmatprep.subr.mxu0 0.0
        %4462 = vmatpush1.msra.mxu0 0.0
        %4463 = vmatprep.subr.mxu0 0.0
        %4464 = vmatpush1.msra.mxu0 0.0
        %4465 = vmatprep.subr.mxu0 0.0
        %4466 = vmatpush1.msra.mxu0 0.0
        %4467 = vmatprep.subr.mxu0 0.0
        %4468 = vmatpush1.msra.mxu0 0.0
        %4469 = vmatprep.subr.mxu0 0.0
        %4470 = vmatpush1.msra.mxu0 0.0
        %4471 = vmatprep.subr.mxu0 0.0
        %4472 = vmatpush1.msra.mxu0 0.0
        %4473 = vmatprep.subr.mxu0 0.0
        %4474 = vmatpush1.msra.mxu0 0.0
        %4475 = vmatprep.subr.mxu0 0.0
        %4476 = vmatpush1.msra.mxu0 0.0
        %4477 = vmatprep.subr.mxu0 0.0
        %4478 = vmatpush1.msra.mxu0 0.0
        %4479 = vmatprep.subr.mxu0 0.0
        %4480 = vmatpush1.msra.mxu0 0.0
        %4481 = vmatprep.subr.mxu0 0.0
        %4482 = vmatpush1.msra.mxu0 0.0
        %4483 = vmatprep.subr.mxu0 0.0
        %4484 = vmatpush1.msra.mxu0 0.0
        %4485 = vmatprep.subr.mxu0 0.0
        %4486 = vmatpush1.msra.mxu0 0.0
        %4487 = vmatprep.subr.mxu0 0.0
        %4488 = vmatpush1.msra.mxu0 0.0
        %4489 = vmatprep.subr.mxu0 0.0
        %4490 = vmatpush1.msra.mxu0 0.0
        %4491 = vmatprep.subr.mxu0 0.0
        %4492 = vmatpush1.msra.mxu0 0.0
        %4493 = vmatprep.subr.mxu0 0.0
        %4494 = vmatpush1.msra.mxu0 0.0
        %4495 = vmatprep.subr.mxu0 0.0
        %4496 = vmatpush1.msra.mxu0 0.0
        %4497 = vmatprep.subr.mxu0 0.0
        %4498 = vmatpush1.msra.mxu0 0.0
        %4499 = vmatprep.subr.mxu0 0.0
        %4500 = vmatpush1.msra.mxu0 0.0
        %4501 = vmatprep.subr.mxu0 0.0
        %4502 = vmatpush1.msra.mxu0 0.0
        %4503 = vmatprep.subr.mxu0 0.0
        %4504 = vmatpush1.msra.mxu0 0.0
        %4505 = vmatprep.subr.mxu0 0.0
        %4506 = vmatpush1.msra.mxu0 0.0
        %4507 = vmatprep.subr.mxu0 0.0
        %4508 = vmatpush1.msra.mxu0 0.0
        %4509 = vmatprep.subr.mxu0 0.0
        %4510 = vmatpush1.msra.mxu0 0.0
        %4511 = vmatprep.subr.mxu0 0.0
        %4512 = vmatpush1.msra.mxu0 0.0
        %4513 = vmatprep.mubr.f32.mxu0 0.0
        %v4514 = vand.u32 %v4225, 4294901760
        %4515 = vmatmul.mubr.f32.gmra.mrb[0].mxu0 %v4514
        %v4516 = vpop.f32.mrb[0].mxu0
        %v4517 = vadd.f32 %v4328, %v4516
        %v4518 = vpop.f32.mrb[0].mxu0
        %v4519 = vadd.f32 %v4330, %v4518
        %4520 = vmatprep.mubr.f32.mxu0 0.0
        %v4521 = vand.u32 %v4228, 4294901760
        %4522 = vmatmul.mubr.f32.gmra.mrb[0].mxu0 %v4521
        %v4523 = vpop.f32.mrb[0].mxu0
        %v4524 = vadd.f32 %v4339, %v4523
        %v4525 = vpop.f32.mrb[0].mxu0
        %v4526 = vadd.f32 %v4341, %v4525
        %4527 = vmatprep.mubr.f32.mxu0 0.0
        %v4528 = vand.u32 %v4231, 4294901760
        %4529 = vmatmul.mubr.f32.gmra.mrb[0].mxu0 %v4528
        %v4530 = vpop.f32.mrb[0].mxu0
        %v4531 = vadd.f32 %v4350, %v4530
        %v4532 = vpop.f32.mrb[0].mxu0
        %v4533 = vadd.f32 %v4352, %v4532
        %4534 = vmatprep.mubr.f32.mxu0 0.0
        %v4535 = vand.u32 %v4234, 4294901760
        %4536 = vmatmul.mubr.f32.gmra.mrb[0].mxu0 %v4535
        %v4537 = vpop.f32.mrb[0].mxu0
        %v4538 = vadd.f32 %v4361, %v4537
        %v4539 = vpop.f32.mrb[0].mxu0
        %v4540 = vadd.f32 %v4363, %v4539
        %4541 = vmatprep.mubr.f32.mxu0 0.0
        %v4542 = vand.u32 %v4237, 4294901760
        %4543 = vmatmul.mubr.f32.gmra.mrb[0].mxu0 %v4542
        %v4544 = vpop.f32.mrb[0].mxu0
        %v4545 = vadd.f32 %v4372, %v4544
        %v4546 = vpop.f32.mrb[0].mxu0
        %v4547 = vadd.f32 %v4374, %v4546
        %4548 = vmatprep.mubr.f32.mxu0 0.0
        %v4549 = vand.u32 %v4240, 4294901760
        %4550 = vmatmul.mubr.f32.gmra.mrb[0].mxu0 %v4549
        %v4551 = vpop.f32.mrb[0].mxu0
        %v4552 = vadd.f32 %v4383, %v4551
        %v4553 = vpop.f32.mrb[0].mxu0
        %v4554 = vadd.f32 %v4385, %v4553
        %4555 = vmatprep.mubr.f32.mxu0 0.0
        %v4556 = vand.u32 %v4243, 4294901760
        %4557 = vmatmul.mubr.f32.gmra.mrb[0].mxu0 %v4556
        %v4558 = vpop.f32.mrb[0].mxu0
        %v4559 = vadd.f32 %v4394, %v4558
        %v4560 = vpop.f32.mrb[0].mxu0
        %v4561 = vadd.f32 %v4396, %v4560
        %4562 = vmatprep.mubr.f32.mxu0 0.0
        %v4563 = vand.u32 %v4246, 4294901760
        %4564 = vmatmul.mubr.f32.gmra.mrb[0].mxu0 %v4563
        %v4565 = vpop.f32.mrb[0].mxu0
        %v4566 = vadd.f32 %v4405, %v4565
        %v4567 = vpop.f32.mrb[0].mxu0
        %v4568 = vadd.f32 %v4407, %v4567
        %4569 = vdwg.mxu0
        %v4570 = vand.u32 %v526, 4294901760
        %v4571 = vsub.f32 %v526, %v4570
        %4572 = vmatprep.subr.mxu0 %v4571
        %v4573 = vand.u32 %v525, 4294901760
        %v4574 = vsub.f32 %v525, %v4573
        %4575 = vmatpush1.msra.mxu0 %v4574
        %v4576 = vand.u32 %v528, 4294901760
        %v4577 = vsub.f32 %v528, %v4576
        %4578 = vmatprep.subr.mxu0 %v4577
        %v4579 = vand.u32 %v527, 4294901760
        %v4580 = vsub.f32 %v527, %v4579
        %4581 = vmatpush1.msra.mxu0 %v4580
        %v4582 = vand.u32 %v530, 4294901760
        %v4583 = vsub.f32 %v530, %v4582
        %4584 = vmatprep.subr.mxu0 %v4583
        %v4585 = vand.u32 %v529, 4294901760
        %v4586 = vsub.f32 %v529, %v4585
        %4587 = vmatpush1.msra.mxu0 %v4586
        %v4588 = vand.u32 %v532, 4294901760
        %v4589 = vsub.f32 %v532, %v4588
        %4590 = vmatprep.subr.mxu0 %v4589
        %v4591 = vand.u32 %v531, 4294901760
        %v4592 = vsub.f32 %v531, %v4591
        %4593 = vmatpush1.msra.mxu0 %v4592
        %4594 = vmatprep.subr.mxu0 0.0
        %4595 = vmatpush1.msra.mxu0 0.0
        %4596 = vmatprep.subr.mxu0 0.0
        %4597 = vmatpush1.msra.mxu0 0.0
        %4598 = vmatprep.subr.mxu0 0.0
        %4599 = vmatpush1.msra.mxu0 0.0
        %4600 = vmatprep.subr.mxu0 0.0
        %4601 = vmatpush1.msra.mxu0 0.0
        %4602 = vmatprep.subr.mxu0 0.0
        %4603 = vmatpush1.msra.mxu0 0.0
        %4604 = vmatprep.subr.mxu0 0.0
        %4605 = vmatpush1.msra.mxu0 0.0
        %4606 = vmatprep.subr.mxu0 0.0
        %4607 = vmatpush1.msra.mxu0 0.0
        %4608 = vmatprep.subr.mxu0 0.0
        %4609 = vmatpush1.msra.mxu0 0.0
        %4610 = vmatprep.subr.mxu0 0.0
        %4611 = vmatpush1.msra.mxu0 0.0
        %4612 = vmatprep.subr.mxu0 0.0
        %4613 = vmatpush1.msra.mxu0 0.0
        %4614 = vmatprep.subr.mxu0 0.0
        %4615 = vmatpush1.msra.mxu0 0.0
        %4616 = vmatprep.subr.mxu0 0.0
        %4617 = vmatpush1.msra.mxu0 0.0
        %4618 = vmatprep.subr.mxu0 0.0
        %4619 = vmatpush1.msra.mxu0 0.0
        %4620 = vmatprep.subr.mxu0 0.0
        %4621 = vmatpush1.msra.mxu0 0.0
        %4622 = vmatprep.subr.mxu0 0.0
        %4623 = vmatpush1.msra.mxu0 0.0
        %4624 = vmatprep.subr.mxu0 0.0
        %4625 = vmatpush1.msra.mxu0 0.0
        %4626 = vmatprep.subr.mxu0 0.0
        %4627 = vmatpush1.msra.mxu0 0.0
        %4628 = vmatprep.subr.mxu0 0.0
        %4629 = vmatpush1.msra.mxu0 0.0
        %4630 = vmatprep.subr.mxu0 0.0
        %4631 = vmatpush1.msra.mxu0 0.0
        %4632 = vmatprep.subr.mxu0 0.0
        %4633 = vmatpush1.msra.mxu0 0.0
        %4634 = vmatprep.subr.mxu0 0.0
        %4635 = vmatpush1.msra.mxu0 0.0
        %4636 = vmatprep.subr.mxu0 0.0
        %4637 = vmatpush1.msra.mxu0 0.0
        %4638 = vmatprep.subr.mxu0 0.0
        %4639 = vmatpush1.msra.mxu0 0.0
        %4640 = vmatprep.subr.mxu0 0.0
        %4641 = vmatpush1.msra.mxu0 0.0
        %4642 = vmatprep.subr.mxu0 0.0
        %4643 = vmatpush1.msra.mxu0 0.0
        %4644 = vmatprep.subr.mxu0 0.0
        %4645 = vmatpush1.msra.mxu0 0.0
        %4646 = vmatprep.subr.mxu0 0.0
        %4647 = vmatpush1.msra.mxu0 0.0
        %4648 = vmatprep.subr.mxu0 0.0
        %4649 = vmatpush1.msra.mxu0 0.0
        %4650 = vmatprep.mubr.f32.mxu0 0.0
        %v4651 = vand.u32 %v4225, 4294901760
        %v4652 = vsub.f32 %v4225, %v4651
        %4653 = vmatmul.mubr.f32.gmra.mrb[0].mxu0 %v4652
        %v4654 = vpop.f32.mrb[0].mxu0
        %v4655 = vadd.f32 %v4517, %v4654
        %v4656 = vpop.f32.mrb[0].mxu0
        %v4657 = vadd.f32 %v4519, %v4656
        %4658 = vmatprep.mubr.f32.mxu0 0.0
        %v4659 = vand.u32 %v4228, 4294901760
        %v4660 = vsub.f32 %v4228, %v4659
        %4661 = vmatmul.mubr.f32.gmra.mrb[0].mxu0 %v4660
        %v4662 = vpop.f32.mrb[0].mxu0
        %v4663 = vadd.f32 %v4524, %v4662
        %v4664 = vpop.f32.mrb[0].mxu0
        %v4665 = vadd.f32 %v4526, %v4664
        %4666 = vmatprep.mubr.f32.mxu0 0.0
        %v4667 = vand.u32 %v4231, 4294901760
        %v4668 = vsub.f32 %v4231, %v4667
        %4669 = vmatmul.mubr.f32.gmra.mrb[0].mxu0 %v4668
        %v4670 = vpop.f32.mrb[0].mxu0
        %v4671 = vadd.f32 %v4531, %v4670
        %v4672 = vpop.f32.mrb[0].mxu0
        %v4673 = vadd.f32 %v4533, %v4672
        %4674 = vmatprep.mubr.f32.mxu0 0.0
        %v4675 = vand.u32 %v4234, 4294901760
        %v4676 = vsub.f32 %v4234, %v4675
        %4677 = vmatmul.mubr.f32.gmra.mrb[0].mxu0 %v4676
        %v4678 = vpop.f32.mrb[0].mxu0
        %v4679 = vadd.f32 %v4538, %v4678
        %v4680 = vpop.f32.mrb[0].mxu0
        %v4681 = vadd.f32 %v4540, %v4680
        %4682 = vmatprep.mubr.f32.mxu0 0.0
        %v4683 = vand.u32 %v4237, 4294901760
        %v4684 = vsub.f32 %v4237, %v4683
        %4685 = vmatmul.mubr.f32.gmra.mrb[0].mxu0 %v4684
        %v4686 = vpop.f32.mrb[0].mxu0
        %v4687 = vadd.f32 %v4545, %v4686
        %v4688 = vpop.f32.mrb[0].mxu0
        %v4689 = vadd.f32 %v4547, %v4688
        %4690 = vmatprep.mubr.f32.mxu0 0.0
        %v4691 = vand.u32 %v4240, 4294901760
        %v4692 = vsub.f32 %v4240, %v4691
        %4693 = vmatmul.mubr.f32.gmra.mrb[0].mxu0 %v4692
        %v4694 = vpop.f32.mrb[0].mxu0
        %v4695 = vadd.f32 %v4552, %v4694
        %v4696 = vpop.f32.mrb[0].mxu0
        %v4697 = vadd.f32 %v4554, %v4696
        %4698 = vmatprep.mubr.f32.mxu0 0.0
        %v4699 = vand.u32 %v4243, 4294901760
        %v4700 = vsub.f32 %v4243, %v4699
        %4701 = vmatmul.mubr.f32.gmra.mrb[0].mxu0 %v4700
        %v4702 = vpop.f32.mrb[0].mxu0
        %v4703 = vadd.f32 %v4559, %v4702
        %v4704 = vpop.f32.mrb[0].mxu0
        %v4705 = vadd.f32 %v4561, %v4704
        %4706 = vmatprep.mubr.f32.mxu0 0.0
        %v4707 = vand.u32 %v4246, 4294901760
        %v4708 = vsub.f32 %v4246, %v4707
        %4709 = vmatmul.mubr.f32.gmra.mrb[0].mxu0 %v4708
        %v4710 = vpop.f32.mrb[0].mxu0
        %v4711 = vadd.f32 %v4566, %v4710
        %v4712 = vpop.f32.mrb[0].mxu0
        %v4713 = vadd.f32 %v4568, %v4712
        %4714 = vdwg.mxu0
        %v4715 = vand.u32 %v526, 4294901760
        %4716 = vmatprep.subr.mxu0 %v4715
        %v4717 = vand.u32 %v525, 4294901760
        %4718 = vmatpush1.msra.mxu0 %v4717
        %v4719 = vand.u32 %v528, 4294901760
        %4720 = vmatprep.subr.mxu0 %v4719
        %v4721 = vand.u32 %v527, 4294901760
        %4722 = vmatpush1.msra.mxu0 %v4721
        %v4723 = vand.u32 %v530, 4294901760
        %4724 = vmatprep.subr.mxu0 %v4723
        %v4725 = vand.u32 %v529, 4294901760
        %4726 = vmatpush1.msra.mxu0 %v4725
        %v4727 = vand.u32 %v532, 4294901760
        %4728 = vmatprep.subr.mxu0 %v4727
        %v4729 = vand.u32 %v531, 4294901760
        %4730 = vmatpush1.msra.mxu0 %v4729
        %4731 = vmatprep.subr.mxu0 0.0
        %4732 = vmatpush1.msra.mxu0 0.0
        %4733 = vmatprep.subr.mxu0 0.0
        %4734 = vmatpush1.msra.mxu0 0.0
        %4735 = vmatprep.subr.mxu0 0.0
        %4736 = vmatpush1.msra.mxu0 0.0
        %4737 = vmatprep.subr.mxu0 0.0
        %4738 = vmatpush1.msra.mxu0 0.0
        %4739 = vmatprep.subr.mxu0 0.0
        %4740 = vmatpush1.msra.mxu0 0.0
        %4741 = vmatprep.subr.mxu0 0.0
        %4742 = vmatpush1.msra.mxu0 0.0
        %4743 = vmatprep.subr.mxu0 0.0
        %4744 = vmatpush1.msra.mxu0 0.0
        %4745 = vmatprep.subr.mxu0 0.0
        %4746 = vmatpush1.msra.mxu0 0.0
        %4747 = vmatprep.subr.mxu0 0.0
        %4748 = vmatpush1.msra.mxu0 0.0
        %4749 = vmatprep.subr.mxu0 0.0
        %4750 = vmatpush1.msra.mxu0 0.0
        %4751 = vmatprep.subr.mxu0 0.0
        %4752 = vmatpush1.msra.mxu0 0.0
        %4753 = vmatprep.subr.mxu0 0.0
        %4754 = vmatpush1.msra.mxu0 0.0
        %4755 = vmatprep.subr.mxu0 0.0
        %4756 = vmatpush1.msra.mxu0 0.0
        %4757 = vmatprep.subr.mxu0 0.0
        %4758 = vmatpush1.msra.mxu0 0.0
        %4759 = vmatprep.subr.mxu0 0.0
        %4760 = vmatpush1.msra.mxu0 0.0
        %4761 = vmatprep.subr.mxu0 0.0
        %4762 = vmatpush1.msra.mxu0 0.0
        %4763 = vmatprep.subr.mxu0 0.0
        %4764 = vmatpush1.msra.mxu0 0.0
        %4765 = vmatprep.subr.mxu0 0.0
        %4766 = vmatpush1.msra.mxu0 0.0
        %4767 = vmatprep.subr.mxu0 0.0
        %4768 = vmatpush1.msra.mxu0 0.0
        %4769 = vmatprep.subr.mxu0 0.0
        %4770 = vmatpush1.msra.mxu0 0.0
        %4771 = vmatprep.subr.mxu0 0.0
        %4772 = vmatpush1.msra.mxu0 0.0
        %4773 = vmatprep.subr.mxu0 0.0
        %4774 = vmatpush1.msra.mxu0 0.0
        %4775 = vmatprep.subr.mxu0 0.0
        %4776 = vmatpush1.msra.mxu0 0.0
        %4777 = vmatprep.subr.mxu0 0.0
        %4778 = vmatpush1.msra.mxu0 0.0
        %4779 = vmatprep.subr.mxu0 0.0
        %4780 = vmatpush1.msra.mxu0 0.0
        %4781 = vmatprep.subr.mxu0 0.0
        %4782 = vmatpush1.msra.mxu0 0.0
        %4783 = vmatprep.subr.mxu0 0.0
        %4784 = vmatpush1.msra.mxu0 0.0
        %4785 = vmatprep.subr.mxu0 0.0
        %4786 = vmatpush1.msra.mxu0 0.0
        %4787 = vmatprep.mubr.f32.mxu0 0.0
        %v4788 = vand.u32 %v4225, 4294901760
        %v4789 = vsub.f32 %v4225, %v4788
        %v4790 = vand.u32 %v4789, 4294901760
        %4791 = vmatmul.mubr.f32.gmra.mrb[0].mxu0 %v4790
        %v4792 = vpop.f32.mrb[0].mxu0
        %v4793 = vadd.f32 %v4655, %v4792
        %v4794 = vpop.f32.mrb[0].mxu0
        %v4795 = vadd.f32 %v4657, %v4794
        %4796 = vmatprep.mubr.f32.mxu0 0.0
        %v4797 = vand.u32 %v4228, 4294901760
        %v4798 = vsub.f32 %v4228, %v4797
        %v4799 = vand.u32 %v4798, 4294901760
        %4800 = vmatmul.mubr.f32.gmra.mrb[0].mxu0 %v4799
        %v4801 = vpop.f32.mrb[0].mxu0
        %v4802 = vadd.f32 %v4663, %v4801
        %v4803 = vpop.f32.mrb[0].mxu0
        %v4804 = vadd.f32 %v4665, %v4803
        %4805 = vmatprep.mubr.f32.mxu0 0.0
        %v4806 = vand.u32 %v4231, 4294901760
        %v4807 = vsub.f32 %v4231, %v4806
        %v4808 = vand.u32 %v4807, 4294901760
        %4809 = vmatmul.mubr.f32.gmra.mrb[0].mxu0 %v4808
        %v4810 = vpop.f32.mrb[0].mxu0
        %v4811 = vadd.f32 %v4671, %v4810
        %v4812 = vpop.f32.mrb[0].mxu0
        %v4813 = vadd.f32 %v4673, %v4812
        %4814 = vmatprep.mubr.f32.mxu0 0.0
        %v4815 = vand.u32 %v4234, 4294901760
        %v4816 = vsub.f32 %v4234, %v4815
        %v4817 = vand.u32 %v4816, 4294901760
        %4818 = vmatmul.mubr.f32.gmra.mrb[0].mxu0 %v4817
        %v4819 = vpop.f32.mrb[0].mxu0
        %v4820 = vadd.f32 %v4679, %v4819
        %v4821 = vpop.f32.mrb[0].mxu0
        %v4822 = vadd.f32 %v4681, %v4821
        %4823 = vmatprep.mubr.f32.mxu0 0.0
        %v4824 = vand.u32 %v4237, 4294901760
        %v4825 = vsub.f32 %v4237, %v4824
        %v4826 = vand.u32 %v4825, 4294901760
        %4827 = vmatmul.mubr.f32.gmra.mrb[0].mxu0 %v4826
        %v4828 = vpop.f32.mrb[0].mxu0
        %v4829 = vadd.f32 %v4687, %v4828
        %v4830 = vpop.f32.mrb[0].mxu0
        %v4831 = vadd.f32 %v4689, %v4830
        %4832 = vmatprep.mubr.f32.mxu0 0.0
        %v4833 = vand.u32 %v4240, 4294901760
        %v4834 = vsub.f32 %v4240, %v4833
        %v4835 = vand.u32 %v4834, 4294901760
        %4836 = vmatmul.mubr.f32.gmra.mrb[0].mxu0 %v4835
        %v4837 = vpop.f32.mrb[0].mxu0
        %v4838 = vadd.f32 %v4695, %v4837
        %v4839 = vpop.f32.mrb[0].mxu0
        %v4840 = vadd.f32 %v4697, %v4839
        %4841 = vmatprep.mubr.f32.mxu0 0.0
        %v4842 = vand.u32 %v4243, 4294901760
        %v4843 = vsub.f32 %v4243, %v4842
        %v4844 = vand.u32 %v4843, 4294901760
        %4845 = vmatmul.mubr.f32.gmra.mrb[0].mxu0 %v4844
        %v4846 = vpop.f32.mrb[0].mxu0
        %v4847 = vadd.f32 %v4703, %v4846
        %v4848 = vpop.f32.mrb[0].mxu0
        %v4849 = vadd.f32 %v4705, %v4848
        %4850 = vmatprep.mubr.f32.mxu0 0.0
        %v4851 = vand.u32 %v4246, 4294901760
        %v4852 = vsub.f32 %v4246, %v4851
        %v4853 = vand.u32 %v4852, 4294901760
        %4854 = vmatmul.mubr.f32.gmra.mrb[0].mxu0 %v4853
        %v4855 = vpop.f32.mrb[0].mxu0
        %v4856 = vadd.f32 %v4711, %v4855
        %v4857 = vpop.f32.mrb[0].mxu0
        %v4858 = vadd.f32 %v4713, %v4857
        %4859 = vdwg.mxu0
        %v4860 = vand.u32 %v526, 4294901760
        %v4861 = vsub.f32 %v526, %v4860
        %v4862 = vand.u32 %v4861, 4294901760
        %4863 = vmatprep.subr.mxu0 %v4862
        %v4864 = vand.u32 %v525, 4294901760
        %v4865 = vsub.f32 %v525, %v4864
        %v4866 = vand.u32 %v4865, 4294901760
        %4867 = vmatpush1.msra.mxu0 %v4866
        %v4868 = vand.u32 %v528, 4294901760
        %v4869 = vsub.f32 %v528, %v4868
        %v4870 = vand.u32 %v4869, 4294901760
        %4871 = vmatprep.subr.mxu0 %v4870
        %v4872 = vand.u32 %v527, 4294901760
        %v4873 = vsub.f32 %v527, %v4872
        %v4874 = vand.u32 %v4873, 4294901760
        %4875 = vmatpush1.msra.mxu0 %v4874
        %v4876 = vand.u32 %v530, 4294901760
        %v4877 = vsub.f32 %v530, %v4876
        %v4878 = vand.u32 %v4877, 4294901760
        %4879 = vmatprep.subr.mxu0 %v4878
        %v4880 = vand.u32 %v529, 4294901760
        %v4881 = vsub.f32 %v529, %v4880
        %v4882 = vand.u32 %v4881, 4294901760
        %4883 = vmatpush1.msra.mxu0 %v4882
        %v4884 = vand.u32 %v532, 4294901760
        %v4885 = vsub.f32 %v532, %v4884
        %v4886 = vand.u32 %v4885, 4294901760
        %4887 = vmatprep.subr.mxu0 %v4886
        %v4888 = vand.u32 %v531, 4294901760
        %v4889 = vsub.f32 %v531, %v4888
        %v4890 = vand.u32 %v4889, 4294901760
        %4891 = vmatpush1.msra.mxu0 %v4890
        %4892 = vmatprep.subr.mxu0 0.0
        %4893 = vmatpush1.msra.mxu0 0.0
        %4894 = vmatprep.subr.mxu0 0.0
        %4895 = vmatpush1.msra.mxu0 0.0
        %4896 = vmatprep.subr.mxu0 0.0
        %4897 = vmatpush1.msra.mxu0 0.0
        %4898 = vmatprep.subr.mxu0 0.0
        %4899 = vmatpush1.msra.mxu0 0.0
        %4900 = vmatprep.subr.mxu0 0.0
        %4901 = vmatpush1.msra.mxu0 0.0
        %4902 = vmatprep.subr.mxu0 0.0
        %4903 = vmatpush1.msra.mxu0 0.0
        %4904 = vmatprep.subr.mxu0 0.0
        %4905 = vmatpush1.msra.mxu0 0.0
        %4906 = vmatprep.subr.mxu0 0.0
        %4907 = vmatpush1.msra.mxu0 0.0
        %4908 = vmatprep.subr.mxu0 0.0
        %4909 = vmatpush1.msra.mxu0 0.0
        %4910 = vmatprep.subr.mxu0 0.0
        %4911 = vmatpush1.msra.mxu0 0.0
        %4912 = vmatprep.subr.mxu0 0.0
        %4913 = vmatpush1.msra.mxu0 0.0
        %4914 = vmatprep.subr.mxu0 0.0
        %4915 = vmatpush1.msra.mxu0 0.0
        %4916 = vmatprep.subr.mxu0 0.0
        %4917 = vmatpush1.msra.mxu0 0.0
        %4918 = vmatprep.subr.mxu0 0.0
        %4919 = vmatpush1.msra.mxu0 0.0
        %4920 = vmatprep.subr.mxu0 0.0
        %4921 = vmatpush1.msra.mxu0 0.0
        %4922 = vmatprep.subr.mxu0 0.0
        %4923 = vmatpush1.msra.mxu0 0.0
        %4924 = vmatprep.subr.mxu0 0.0
        %4925 = vmatpush1.msra.mxu0 0.0
        %4926 = vmatprep.subr.mxu0 0.0
        %4927 = vmatpush1.msra.mxu0 0.0
        %4928 = vmatprep.subr.mxu0 0.0
        %4929 = vmatpush1.msra.mxu0 0.0
        %4930 = vmatprep.subr.mxu0 0.0
        %4931 = vmatpush1.msra.mxu0 0.0
        %4932 = vmatprep.subr.mxu0 0.0
        %4933 = vmatpush1.msra.mxu0 0.0
        %4934 = vmatprep.subr.mxu0 0.0
        %4935 = vmatpush1.msra.mxu0 0.0
        %4936 = vmatprep.subr.mxu0 0.0
        %4937 = vmatpush1.msra.mxu0 0.0
        %4938 = vmatprep.subr.mxu0 0.0
        %4939 = vmatpush1.msra.mxu0 0.0
        %4940 = vmatprep.subr.mxu0 0.0
        %4941 = vmatpush1.msra.mxu0 0.0
        %4942 = vmatprep.subr.mxu0 0.0
        %4943 = vmatpush1.msra.mxu0 0.0
        %4944 = vmatprep.subr.mxu0 0.0
        %4945 = vmatpush1.msra.mxu0 0.0
        %4946 = vmatprep.subr.mxu0 0.0
        %4947 = vmatpush1.msra.mxu0 0.0
        %4948 = vmatprep.mubr.f32.mxu0 0.0
        %v4949 = vand.u32 %v4225, 4294901760
        %4950 = vmatmul.mubr.f32.gmra.mrb[0].mxu0 %v4949
        %v4951 = vpop.f32.mrb[0].mxu0
        %v4952 = vadd.f32 %v4793, %v4951
        %v4953 = vpop.f32.mrb[0].mxu0
        %v4954 = vadd.f32 %v4795, %v4953
        %4955 = vmatprep.mubr.f32.mxu0 0.0
        %v4956 = vand.u32 %v4228, 4294901760
        %4957 = vmatmul.mubr.f32.gmra.mrb[0].mxu0 %v4956
        %v4958 = vpop.f32.mrb[0].mxu0
        %v4959 = vadd.f32 %v4802, %v4958
        %v4960 = vpop.f32.mrb[0].mxu0
        %v4961 = vadd.f32 %v4804, %v4960
        %4962 = vmatprep.mubr.f32.mxu0 0.0
        %v4963 = vand.u32 %v4231, 4294901760
        %4964 = vmatmul.mubr.f32.gmra.mrb[0].mxu0 %v4963
        %v4965 = vpop.f32.mrb[0].mxu0
        %v4966 = vadd.f32 %v4811, %v4965
        %v4967 = vpop.f32.mrb[0].mxu0
        %v4968 = vadd.f32 %v4813, %v4967
        %4969 = vmatprep.mubr.f32.mxu0 0.0
        %v4970 = vand.u32 %v4234, 4294901760
        %4971 = vmatmul.mubr.f32.gmra.mrb[0].mxu0 %v4970
        %v4972 = vpop.f32.mrb[0].mxu0
        %v4973 = vadd.f32 %v4820, %v4972
        %v4974 = vpop.f32.mrb[0].mxu0
        %v4975 = vadd.f32 %v4822, %v4974
        %4976 = vmatprep.mubr.f32.mxu0 0.0
        %v4977 = vand.u32 %v4237, 4294901760
        %4978 = vmatmul.mubr.f32.gmra.mrb[0].mxu0 %v4977
        %v4979 = vpop.f32.mrb[0].mxu0
        %v4980 = vadd.f32 %v4829, %v4979
        %v4981 = vpop.f32.mrb[0].mxu0
        %v4982 = vadd.f32 %v4831, %v4981
        %4983 = vmatprep.mubr.f32.mxu0 0.0
        %v4984 = vand.u32 %v4240, 4294901760
        %4985 = vmatmul.mubr.f32.gmra.mrb[0].mxu0 %v4984
        %v4986 = vpop.f32.mrb[0].mxu0
        %v4987 = vadd.f32 %v4838, %v4986
        %v4988 = vpop.f32.mrb[0].mxu0
        %v4989 = vadd.f32 %v4840, %v4988
        %4990 = vmatprep.mubr.f32.mxu0 0.0
        %v4991 = vand.u32 %v4243, 4294901760
        %4992 = vmatmul.mubr.f32.gmra.mrb[0].mxu0 %v4991
        %v4993 = vpop.f32.mrb[0].mxu0
        %v4994 = vadd.f32 %v4847, %v4993
        %v4995 = vpop.f32.mrb[0].mxu0
        %v4996 = vadd.f32 %v4849, %v4995
        %4997 = vmatprep.mubr.f32.mxu0 0.0
        %v4998 = vand.u32 %v4246, 4294901760
        %4999 = vmatmul.mubr.f32.gmra.mrb[0].mxu0 %v4998
        %v5000 = vpop.f32.mrb[0].mxu0
        %v5001 = vadd.f32 %v4856, %v5000
        %v5002 = vpop.f32.mrb[0].mxu0
        %v5003 = vadd.f32 %v4858, %v5002
        %5004 = vdwg.mxu0
        %v5005 = vand.u32 %v526, 4294901760
        %5006 = vmatprep.subr.mxu0 %v5005
        %v5007 = vand.u32 %v525, 4294901760
        %5008 = vmatpush1.msra.mxu0 %v5007
        %v5009 = vand.u32 %v528, 4294901760
        %5010 = vmatprep.subr.mxu0 %v5009
        %v5011 = vand.u32 %v527, 4294901760
        %5012 = vmatpush1.msra.mxu0 %v5011
        %v5013 = vand.u32 %v530, 4294901760
        %5014 = vmatprep.subr.mxu0 %v5013
        %v5015 = vand.u32 %v529, 4294901760
        %5016 = vmatpush1.msra.mxu0 %v5015
        %v5017 = vand.u32 %v532, 4294901760
        %5018 = vmatprep.subr.mxu0 %v5017
        %v5019 = vand.u32 %v531, 4294901760
        %5020 = vmatpush1.msra.mxu0 %v5019
        %5021 = vmatprep.subr.mxu0 0.0
        %5022 = vmatpush1.msra.mxu0 0.0
        %5023 = vmatprep.subr.mxu0 0.0
        %5024 = vmatpush1.msra.mxu0 0.0
        %5025 = vmatprep.subr.mxu0 0.0
        %5026 = vmatpush1.msra.mxu0 0.0
        %5027 = vmatprep.subr.mxu0 0.0
        %5028 = vmatpush1.msra.mxu0 0.0
        %5029 = vmatprep.subr.mxu0 0.0
        %5030 = vmatpush1.msra.mxu0 0.0
        %5031 = vmatprep.subr.mxu0 0.0
        %5032 = vmatpush1.msra.mxu0 0.0
        %5033 = vmatprep.subr.mxu0 0.0
        %5034 = vmatpush1.msra.mxu0 0.0
        %5035 = vmatprep.subr.mxu0 0.0
        %5036 = vmatpush1.msra.mxu0 0.0
        %5037 = vmatprep.subr.mxu0 0.0
        %5038 = vmatpush1.msra.mxu0 0.0
        %5039 = vmatprep.subr.mxu0 0.0
        %5040 = vmatpush1.msra.mxu0 0.0
        %5041 = vmatprep.subr.mxu0 0.0
        %5042 = vmatpush1.msra.mxu0 0.0
        %5043 = vmatprep.subr.mxu0 0.0
        %5044 = vmatpush1.msra.mxu0 0.0
        %5045 = vmatprep.subr.mxu0 0.0
        %5046 = vmatpush1.msra.mxu0 0.0
        %5047 = vmatprep.subr.mxu0 0.0
        %5048 = vmatpush1.msra.mxu0 0.0
        %5049 = vmatprep.subr.mxu0 0.0
        %5050 = vmatpush1.msra.mxu0 0.0
        %5051 = vmatprep.subr.mxu0 0.0
        %5052 = vmatpush1.msra.mxu0 0.0
        %5053 = vmatprep.subr.mxu0 0.0
        %5054 = vmatpush1.msra.mxu0 0.0
        %5055 = vmatprep.subr.mxu0 0.0
        %5056 = vmatpush1.msra.mxu0 0.0
        %5057 = vmatprep.subr.mxu0 0.0
        %5058 = vmatpush1.msra.mxu0 0.0
        %5059 = vmatprep.subr.mxu0 0.0
        %5060 = vmatpush1.msra.mxu0 0.0
        %5061 = vmatprep.subr.mxu0 0.0
        %5062 = vmatpush1.msra.mxu0 0.0
        %5063 = vmatprep.subr.mxu0 0.0
        %5064 = vmatpush1.msra.mxu0 0.0
        %5065 = vmatprep.subr.mxu0 0.0
        %5066 = vmatpush1.msra.mxu0 0.0
        %5067 = vmatprep.subr.mxu0 0.0
        %5068 = vmatpush1.msra.mxu0 0.0
        %5069 = vmatprep.subr.mxu0 0.0
        %5070 = vmatpush1.msra.mxu0 0.0
        %5071 = vmatprep.subr.mxu0 0.0
        %5072 = vmatpush1.msra.mxu0 0.0
        %5073 = vmatprep.subr.mxu0 0.0
        %5074 = vmatpush1.msra.mxu0 0.0
        %5075 = vmatprep.subr.mxu0 0.0
        %5076 = vmatpush1.msra.mxu0 0.0
        %5077 = vmatprep.mubr.f32.mxu0 0.0
        %v5078 = vand.u32 %v4225, 4294901760
        %5079 = vmatmul.mubr.f32.gmra.mrb[0].mxu0 %v5078
        %v5080 = vpop.f32.mrb[0].mxu0
        %v5081 = vadd.f32 %v4952, %v5080
        %v5082 = vpop.f32.mrb[0].mxu0
        %v5083 = vadd.f32 %v4954, %v5082
        %5084 = vmatprep.mubr.f32.mxu0 0.0
        %v5085 = vand.u32 %v4228, 4294901760
        %5086 = vmatmul.mubr.f32.gmra.mrb[0].mxu0 %v5085
        %v5087 = vpop.f32.mrb[0].mxu0
        %v5088 = vadd.f32 %v4959, %v5087
        %v5089 = vpop.f32.mrb[0].mxu0
        %v5090 = vadd.f32 %v4961, %v5089
        %5091 = vmatprep.mubr.f32.mxu0 0.0
        %v5092 = vand.u32 %v4231, 4294901760
        %5093 = vmatmul.mubr.f32.gmra.mrb[0].mxu0 %v5092
        %v5094 = vpop.f32.mrb[0].mxu0
        %v5095 = vadd.f32 %v4966, %v5094
        %v5096 = vpop.f32.mrb[0].mxu0
        %v5097 = vadd.f32 %v4968, %v5096
        %5098 = vmatprep.mubr.f32.mxu0 0.0
        %v5099 = vand.u32 %v4234, 4294901760
        %5100 = vmatmul.mubr.f32.gmra.mrb[0].mxu0 %v5099
        %v5101 = vpop.f32.mrb[0].mxu0
        %v5102 = vadd.f32 %v4973, %v5101
        %v5103 = vpop.f32.mrb[0].mxu0
        %v5104 = vadd.f32 %v4975, %v5103
        %5105 = vmatprep.mubr.f32.mxu0 0.0
        %v5106 = vand.u32 %v4237, 4294901760
        %5107 = vmatmul.mubr.f32.gmra.mrb[0].mxu0 %v5106
        %v5108 = vpop.f32.mrb[0].mxu0
        %v5109 = vadd.f32 %v4980, %v5108
        %v5110 = vpop.f32.mrb[0].mxu0
        %v5111 = vadd.f32 %v4982, %v5110
        %5112 = vmatprep.mubr.f32.mxu0 0.0
        %v5113 = vand.u32 %v4240, 4294901760
        %5114 = vmatmul.mubr.f32.gmra.mrb[0].mxu0 %v5113
        %v5115 = vpop.f32.mrb[0].mxu0
        %v5116 = vadd.f32 %v4987, %v5115
        %v5117 = vpop.f32.mrb[0].mxu0
        %v5118 = vadd.f32 %v4989, %v5117
        %5119 = vmatprep.mubr.f32.mxu0 0.0
        %v5120 = vand.u32 %v4243, 4294901760
        %5121 = vmatmul.mubr.f32.gmra.mrb[0].mxu0 %v5120
        %v5122 = vpop.f32.mrb[0].mxu0
        %v5123 = vadd.f32 %v4994, %v5122
        %v5124 = vpop.f32.mrb[0].mxu0
        %v5125 = vadd.f32 %v4996, %v5124
        %5126 = vmatprep.mubr.f32.mxu0 0.0
        %v5127 = vand.u32 %v4246, 4294901760
        %5128 = vmatmul.mubr.f32.gmra.mrb[0].mxu0 %v5127
        %v5129 = vpop.f32.mrb[0].mxu0
        %v5130 = vadd.f32 %v5001, %v5129
        %v5131 = vpop.f32.mrb[0].mxu0
        %v5132 = vadd.f32 %v5003, %v5131
        %5133 = vdwg.mxu0
        %v5134 = vxor.u32 %v3266, 2147483648
        %v5135 = vxor.u32 %v3267, 2147483648
        %v5136 = vxor.u32 %v3268, 2147483648
        %v5137 = vxor.u32 %v3269, 2147483648
        %v5138 = vxor.u32 %v3270, 2147483648
        %v5139 = vxor.u32 %v3271, 2147483648
        %v5140 = vxor.u32 %v3272, 2147483648
        %v5141 = vxor.u32 %v3273, 2147483648
        %v5142 = vmul.f32 %v5134, 1.442695
        %v5143 = vpow.pop %v5142
        %v5144 = vmul.f32 %v5135, 1.442695
        %v5145 = vpow.pop %v5144
        %v5146 = vmul.f32 %v5136, 1.442695
        %v5147 = vpow.pop %v5146
        %v5148 = vmul.f32 %v5137, 1.442695
        %v5149 = vpow.pop %v5148
        %v5150 = vmul.f32 %v5138, 1.442695
        %v5151 = vpow.pop %v5150
        %v5152 = vmul.f32 %v5139, 1.442695
        %v5153 = vpow.pop %v5152
        %v5154 = vmul.f32 %v5140, 1.442695
        %v5155 = vpow.pop %v5154
        %v5156 = vmul.f32 %v5141, 1.442695
        %v5157 = vpow.pop %v5156
        %v5158 = vadd.f32 %v5143, 1.0
        %v5159 = vadd.f32 %v5145, 1.0
        %v5160 = vadd.f32 %v5147, 1.0
        %v5161 = vadd.f32 %v5149, 1.0
        %v5162 = vadd.f32 %v5151, 1.0
        %v5163 = vadd.f32 %v5153, 1.0
        %v5164 = vadd.f32 %v5155, 1.0
        %v5165 = vadd.f32 %v5157, 1.0
        %v5166 = vrcp.pop %v5158
        %v5167 = vmul.f32 1.0, %v5166
        %v5168 = vrcp.pop %v5159
        %v5169 = vmul.f32 1.0, %v5168
        %v5170 = vrcp.pop %v5160
        %v5171 = vmul.f32 1.0, %v5170
        %v5172 = vrcp.pop %v5161
        %v5173 = vmul.f32 1.0, %v5172
        %v5174 = vrcp.pop %v5162
        %v5175 = vmul.f32 1.0, %v5174
        %v5176 = vrcp.pop %v5163
        %v5177 = vmul.f32 1.0, %v5176
        %v5178 = vrcp.pop %v5164
        %v5179 = vmul.f32 1.0, %v5178
        %v5180 = vrcp.pop %v5165
        %v5181 = vmul.f32 1.0, %v5180
        %v5182 = vxor.u32 %v3274, 2147483648
        %v5183 = vxor.u32 %v3275, 2147483648
        %v5184 = vxor.u32 %v3276, 2147483648
        %v5185 = vxor.u32 %v3277, 2147483648
        %v5186 = vxor.u32 %v3278, 2147483648
        %v5187 = vxor.u32 %v3279, 2147483648
        %v5188 = vxor.u32 %v3280, 2147483648
        %v5189 = vxor.u32 %v3281, 2147483648
        %v5190 = vmul.f32 %v5182, 1.442695
        %v5191 = vpow.pop %v5190
        %v5192 = vmul.f32 %v5183, 1.442695
        %v5193 = vpow.pop %v5192
        %v5194 = vmul.f32 %v5184, 1.442695
        %v5195 = vpow.pop %v5194
        %v5196 = vmul.f32 %v5185, 1.442695
        %v5197 = vpow.pop %v5196
        %v5198 = vmul.f32 %v5186, 1.442695
        %v5199 = vpow.pop %v5198
        %v5200 = vmul.f32 %v5187, 1.442695
        %v5201 = vpow.pop %v5200
        %v5202 = vmul.f32 %v5188, 1.442695
        %v5203 = vpow.pop %v5202
        %v5204 = vmul.f32 %v5189, 1.442695
        %v5205 = vpow.pop %v5204
        %v5206 = vadd.f32 %v5191, 1.0
        %v5207 = vadd.f32 %v5193, 1.0
        %v5208 = vadd.f32 %v5195, 1.0
        %v5209 = vadd.f32 %v5197, 1.0
        %v5210 = vadd.f32 %v5199, 1.0
        %v5211 = vadd.f32 %v5201, 1.0
        %v5212 = vadd.f32 %v5203, 1.0
        %v5213 = vadd.f32 %v5205, 1.0
        %v5214 = vrcp.pop %v5206
        %v5215 = vmul.f32 1.0, %v5214
        %v5216 = vrcp.pop %v5207
        %v5217 = vmul.f32 1.0, %v5216
        %v5218 = vrcp.pop %v5208
        %v5219 = vmul.f32 1.0, %v5218
        %v5220 = vrcp.pop %v5209
        %v5221 = vmul.f32 1.0, %v5220
        %v5222 = vrcp.pop %v5210
        %v5223 = vmul.f32 1.0, %v5222
        %v5224 = vrcp.pop %v5211
        %v5225 = vmul.f32 1.0, %v5224
        %v5226 = vrcp.pop %v5212
        %v5227 = vmul.f32 1.0, %v5226
        %v5228 = vrcp.pop %v5213
        %v5229 = vmul.f32 1.0, %v5228
        %v5230 = vxor.u32 %v3282, 2147483648
        %v5231 = vxor.u32 %v3283, 2147483648
        %v5232 = vxor.u32 %v3284, 2147483648
        %v5233 = vxor.u32 %v3285, 2147483648
        %v5234 = vxor.u32 %v3286, 2147483648
        %v5235 = vxor.u32 %v3287, 2147483648
        %v5236 = vxor.u32 %v3288, 2147483648
        %v5237 = vxor.u32 %v3289, 2147483648
        %v5238 = vmul.f32 %v5230, 1.442695
        %v5239 = vpow.pop %v5238
        %v5240 = vmul.f32 %v5231, 1.442695
        %v5241 = vpow.pop %v5240
        %v5242 = vmul.f32 %v5232, 1.442695
        %v5243 = vpow.pop %v5242
        %v5244 = vmul.f32 %v5233, 1.442695
        %v5245 = vpow.pop %v5244
        %v5246 = vmul.f32 %v5234, 1.442695
        %v5247 = vpow.pop %v5246
        %v5248 = vmul.f32 %v5235, 1.442695
        %v5249 = vpow.pop %v5248
        %v5250 = vmul.f32 %v5236, 1.442695
        %v5251 = vpow.pop %v5250
        %v5252 = vmul.f32 %v5237, 1.442695
        %v5253 = vpow.pop %v5252
        %v5254 = vadd.f32 %v5239, 1.0
        %v5255 = vadd.f32 %v5241, 1.0
        %v5256 = vadd.f32 %v5243, 1.0
        %v5257 = vadd.f32 %v5245, 1.0
        %v5258 = vadd.f32 %v5247, 1.0
        %v5259 = vadd.f32 %v5249, 1.0
        %v5260 = vadd.f32 %v5251, 1.0
        %v5261 = vadd.f32 %v5253, 1.0
        %v5262 = vrcp.pop %v5254
        %v5263 = vmul.f32 1.0, %v5262
        %v5264 = vrcp.pop %v5255
        %v5265 = vmul.f32 1.0, %v5264
        %v5266 = vrcp.pop %v5256
        %v5267 = vmul.f32 1.0, %v5266
        %v5268 = vrcp.pop %v5257
        %v5269 = vmul.f32 1.0, %v5268
        %v5270 = vrcp.pop %v5258
        %v5271 = vmul.f32 1.0, %v5270
        %v5272 = vrcp.pop %v5259
        %v5273 = vmul.f32 1.0, %v5272
        %v5274 = vrcp.pop %v5260
        %v5275 = vmul.f32 1.0, %v5274
        %v5276 = vrcp.pop %v5261
        %v5277 = vmul.f32 1.0, %v5276
        %v5278 = vxor.u32 %v3290, 2147483648
        %v5279 = vxor.u32 %v3291, 2147483648
        %v5280 = vxor.u32 %v3292, 2147483648
        %v5281 = vxor.u32 %v3293, 2147483648
        %v5282 = vxor.u32 %v3294, 2147483648
        %v5283 = vxor.u32 %v3295, 2147483648
        %v5284 = vxor.u32 %v3296, 2147483648
        %v5285 = vxor.u32 %v3297, 2147483648
        %v5286 = vmul.f32 %v5278, 1.442695
        %v5287 = vpow.pop %v5286
        %v5288 = vmul.f32 %v5279, 1.442695
        %v5289 = vpow.pop %v5288
        %v5290 = vmul.f32 %v5280, 1.442695
        %v5291 = vpow.pop %v5290
        %v5292 = vmul.f32 %v5281, 1.442695
        %v5293 = vpow.pop %v5292
        %v5294 = vmul.f32 %v5282, 1.442695
        %v5295 = vpow.pop %v5294
        %v5296 = vmul.f32 %v5283, 1.442695
        %v5297 = vpow.pop %v5296
        %v5298 = vmul.f32 %v5284, 1.442695
        %v5299 = vpow.pop %v5298
        %v5300 = vmul.f32 %v5285, 1.442695
        %v5301 = vpow.pop %v5300
        %v5302 = vadd.f32 %v5287, 1.0
        %v5303 = vadd.f32 %v5289, 1.0
        %v5304 = vadd.f32 %v5291, 1.0
        %v5305 = vadd.f32 %v5293, 1.0
        %v5306 = vadd.f32 %v5295, 1.0
        %v5307 = vadd.f32 %v5297, 1.0
        %v5308 = vadd.f32 %v5299, 1.0
        %v5309 = vadd.f32 %v5301, 1.0
        %v5310 = vrcp.pop %v5302
        %v5311 = vmul.f32 1.0, %v5310
        %v5312 = vrcp.pop %v5303
        %v5313 = vmul.f32 1.0, %v5312
        %v5314 = vrcp.pop %v5304
        %v5315 = vmul.f32 1.0, %v5314
        %v5316 = vrcp.pop %v5305
        %v5317 = vmul.f32 1.0, %v5316
        %v5318 = vrcp.pop %v5306
        %v5319 = vmul.f32 1.0, %v5318
        %v5320 = vrcp.pop %v5307
        %v5321 = vmul.f32 1.0, %v5320
        %v5322 = vrcp.pop %v5308
        %v5323 = vmul.f32 1.0, %v5322
        %v5324 = vrcp.pop %v5309
        %v5325 = vmul.f32 1.0, %v5324
        %v5326 = vld [vmem:[#allocation5] sm:$0xff]
        %v5327 = vld [vmem:[#allocation5 + $0x8] sm:$0xff]
        %v5328 = vld [vmem:[#allocation5 + $0x10] sm:$0xff]
        %v5329 = vld [vmem:[#allocation5 + $0x18] sm:$0xff]
        %v5330 = vld [vmem:[#allocation5 + $0x20] sm:$0xff]
        %v5331 = vld [vmem:[#allocation5 + $0x28] sm:$0xff]
        %v5332 = vld [vmem:[#allocation5 + $0x30] sm:$0xff]
        %v5333 = vld [vmem:[#allocation5 + $0x38] sm:$0xff]
        %v5334 = vadd.f32 %v5109, %v5326
        %v5335 = vadd.f32 %v5111, %v5327
        %v5336 = vadd.f32 %v5116, %v5328
        %v5337 = vadd.f32 %v5118, %v5329
        %v5338 = vadd.f32 %v5123, %v5330
        %v5339 = vadd.f32 %v5125, %v5331
        %v5340 = vadd.f32 %v5130, %v5332
        %v5341 = vadd.f32 %v5132, %v5333
        %v5342 = vmul.f32 %v5215, %v5334
        %v5343 = vmul.f32 %v5217, %v5335
        %v5344 = vmul.f32 %v5219, %v5336
        %v5345 = vmul.f32 %v5221, %v5337
        %v5346 = vmul.f32 %v5223, %v5338
        %v5347 = vmul.f32 %v5225, %v5339
        %v5348 = vmul.f32 %v5227, %v5340
        %v5349 = vmul.f32 %v5229, %v5341
        %v5350 = vadd.f32 %v4216, %v5342
        %v5351 = vadd.f32 %v4217, %v5343
        %v5352 = vadd.f32 %v4218, %v5344
        %v5353 = vadd.f32 %v4219, %v5345
        %v5354 = vadd.f32 %v4220, %v5346
        %v5355 = vadd.f32 %v4221, %v5347
        %v5356 = vadd.f32 %v4222, %v5348
        %v5357 = vadd.f32 %v4223, %v5349
        %v5358 = vtanh.pop %v5350
        %v5359 = vtanh.pop %v5351
        %v5360 = vtanh.pop %v5352
        %v5361 = vtanh.pop %v5353
        %v5362 = vtanh.pop %v5354
        %v5363 = vtanh.pop %v5355
        %v5364 = vtanh.pop %v5356
        %v5365 = vtanh.pop %v5357
        %v5366 = vmul.f32 %v5167, %v4208
        %v5367 = vmul.f32 %v5169, %v4209
        %v5368 = vmul.f32 %v5171, %v4210
        %v5369 = vmul.f32 %v5173, %v4211
        %v5370 = vmul.f32 %v5175, %v4212
        %v5371 = vmul.f32 %v5177, %v4213
        %v5372 = vmul.f32 %v5179, %v4214
        %v5373 = vmul.f32 %v5181, %v4215
        %v5374 = vadd.f32 %v5366, %v5081
        %v5375 = vadd.f32 %v5367, %v5083
        %v5376 = vadd.f32 %v5368, %v5088
        %v5377 = vadd.f32 %v5369, %v5090
        %v5378 = vadd.f32 %v5370, %v5095
        %v5379 = vadd.f32 %v5371, %v5097
        %v5380 = vadd.f32 %v5372, %v5102
        %v5381 = vadd.f32 %v5373, %v5104
        %v5382 = vtanh.pop %v5374
        %v5383 = vtanh.pop %v5375
        %v5384 = vtanh.pop %v5376
        %v5385 = vtanh.pop %v5377
        %v5386 = vtanh.pop %v5378
        %v5387 = vtanh.pop %v5379
        %v5388 = vtanh.pop %v5380
        %v5389 = vtanh.pop %v5381
        %v5390 = vmul.f32 %v5263, %v5382
        %v5391 = vmul.f32 %v5265, %v5383
        %v5392 = vmul.f32 %v5267, %v5384
        %v5393 = vmul.f32 %v5269, %v5385
        %v5394 = vmul.f32 %v5271, %v5386
        %v5395 = vmul.f32 %v5273, %v5387
        %v5396 = vmul.f32 %v5275, %v5388
        %v5397 = vmul.f32 %v5277, %v5389
        %v5398 = vsub.f32 1.0, %v5263
        %v5399 = vsub.f32 1.0, %v5265
        %v5400 = vsub.f32 1.0, %v5267
        %v5401 = vsub.f32 1.0, %v5269
        %v5402 = vsub.f32 1.0, %v5271
        %v5403 = vsub.f32 1.0, %v5273
        %v5404 = vsub.f32 1.0, %v5275
        %v5405 = vsub.f32 1.0, %v5277
        %v5406 = vmul.f32 %v5398, %v517
        %v5407 = vmul.f32 %v5399, %v518
        %v5408 = vmul.f32 %v5400, %v519
        %v5409 = vmul.f32 %v5401, %v520
        %v5410 = vmul.f32 %v5402, %v521
        %v5411 = vmul.f32 %v5403, %v522
        %v5412 = vmul.f32 %v5404, %v523
        %v5413 = vmul.f32 %v5405, %v524
        %v5414 = vadd.f32 %v5390, %v5406
        %v5415 = vadd.f32 %v5391, %v5407
        %v5416 = vadd.f32 %v5392, %v5408
        %v5417 = vadd.f32 %v5393, %v5409
        %v5418 = vadd.f32 %v5394, %v5410
        %v5419 = vadd.f32 %v5395, %v5411
        %v5420 = vadd.f32 %v5396, %v5412
        %v5421 = vadd.f32 %v5397, %v5413
        %5422 = vst [vmem:[%s439] sm:$0xff] %v5414
        %5423 = vst [vmem:[%s439 + $0x8] sm:$0xff] %v5415
        %5424 = vst [vmem:[%s439 + $0x10] sm:$0xff] %v5416
        %5425 = vst [vmem:[%s439 + $0x18] sm:$0xff] %v5417
        %5426 = vst [vmem:[%s439 + $0x20] sm:$0xff] %v5418
        %5427 = vst [vmem:[%s439 + $0x28] sm:$0xff] %v5419
        %5428 = vst [vmem:[%s439 + $0x30] sm:$0xff] %v5420
        %5429 = vst [vmem:[%s439 + $0x38] sm:$0xff] %v5421
        %v5430 = vmul.f32 %v5311, %v5358
        %v5431 = vmul.f32 %v5313, %v5359
        %v5432 = vmul.f32 %v5315, %v5360
        %v5433 = vmul.f32 %v5317, %v5361
        %v5434 = vmul.f32 %v5319, %v5362
        %v5435 = vmul.f32 %v5321, %v5363
        %v5436 = vmul.f32 %v5323, %v5364
        %v5437 = vmul.f32 %v5325, %v5365
        %v5438 = vsub.f32 1.0, %v5311
        %v5439 = vsub.f32 1.0, %v5313
        %v5440 = vsub.f32 1.0, %v5315
        %v5441 = vsub.f32 1.0, %v5317
        %v5442 = vsub.f32 1.0, %v5319
        %v5443 = vsub.f32 1.0, %v5321
        %v5444 = vsub.f32 1.0, %v5323
        %v5445 = vsub.f32 1.0, %v5325
        %v5446 = vmul.f32 %v5438, %v525
        %v5447 = vmul.f32 %v5439, %v526
        %v5448 = vmul.f32 %v5440, %v527
        %v5449 = vmul.f32 %v5441, %v528
        %v5450 = vmul.f32 %v5442, %v529
        %v5451 = vmul.f32 %v5443, %v530
        %v5452 = vmul.f32 %v5444, %v531
        %v5453 = vmul.f32 %v5445, %v532
        %v5454 = vadd.f32 %v5430, %v5446
        %v5455 = vadd.f32 %v5431, %v5447
        %v5456 = vadd.f32 %v5432, %v5448
        %v5457 = vadd.f32 %v5433, %v5449
        %v5458 = vadd.f32 %v5434, %v5450
        %v5459 = vadd.f32 %v5435, %v5451
        %v5460 = vadd.f32 %v5436, %v5452
        %v5461 = vadd.f32 %v5437, %v5453
        %5462 = vst [vmem:[%s446] sm:$0xff] %v5454
        %5463 = vst [vmem:[%s446 + $0x8] sm:$0xff] %v5455
        %5464 = vst [vmem:[%s446 + $0x10] sm:$0xff] %v5456
        %5465 = vst [vmem:[%s446 + $0x18] sm:$0xff] %v5457
        %5466 = vst [vmem:[%s446 + $0x20] sm:$0xff] %v5458
        %5467 = vst [vmem:[%s446 + $0x28] sm:$0xff] %v5459
        %5468 = vst [vmem:[%s446 + $0x30] sm:$0xff] %v5460
        %5469 = vst [vmem:[%s446 + $0x38] sm:$0xff] %v5461
        %s5470 = sand.u32 %s255, 1
        %s5471 = scalar_lea.sflag [#allocation4], %s5470
        %s5472 = sand.u32 %s255, 1
        %s5473 = smul.addr %s5472, 64
        %s5474 = scalar_lea.vmem [#allocation7], %s5473
        %s5475 = sand.u32 %s283, 1
        %s5476 = scalar_lea.sflag [#allocation9], %s5475
        %s5477 = sand.u32 %s283, 1
        %s5478 = smul.addr %s5477, 64
        %s5479 = scalar_lea.vmem [#allocation8], %s5478
        // Predicated region
        $region65: #{tpu_custom_call.1} parent=55 // pred_check
          %p5480 = pneg %p265
        $region66: #{tpu_custom_call.1} parent=55 // pred_check_branch
          %5482 = sbr.rel (%p5480) target = $region68
        $region67: #{tpu_custom_call.1} parent=55 // pred_region
          %s5483 = smul.u32 2, %s35
          %s5485 = ssub.s32 1024, 1024
          %5486 = vsyncadd %s5471, %s5485
          %s5487 = smul.addr %s34, 8
          %s5488 = sadd.s32 %s5483, %s5487
          %s5489 = smul.addr %s5488, 128
          %s5490 = scalar_lea.hbm %s9, %s5489
          %s5491 = sshll.u32 %s5474, 4
          %s5492 = int_to_ptr.vmem [resolvable:$true] %s5491
          %5497 = dma.vmem_to_hbm [thread:$0]  %s5492, 1024, %s5490, %s5471, 256, 256, 16
        $region68: #{tpu_custom_call.1} parent=55 // pred_fallthru
          _
        // Predicated region
        $region69: #{tpu_custom_call.1} parent=55 // pred_check
          %p5498 = pneg %p293
        $region70: #{tpu_custom_call.1} parent=55 // pred_check_branch
          %5500 = sbr.rel (%p5498) target = $region72
        $region71: #{tpu_custom_call.1} parent=55 // pred_region
          %s5501 = smul.u32 2, %s35
          %s5503 = ssub.s32 1024, 1024
          %5504 = vsyncadd %s5476, %s5503
          %s5505 = smul.addr %s34, 8
          %s5506 = sadd.s32 %s5501, %s5505
          %s5507 = smul.addr %s5506, 128
          %s5508 = scalar_lea.hbm %s10, %s5507
          %s5509 = sshll.u32 %s5479, 4
          %s5510 = int_to_ptr.vmem [resolvable:$true] %s5509
          %5515 = dma.vmem_to_hbm [thread:$0]  %s5510, 1024, %s5508, %s5476, 256, 256, 16
        $region72: #{tpu_custom_call.1} parent=55 // pred_fallthru
          _
      $region56: #{tpu_custom_call.1} parent=5 // pred_fallthru
        _
      %p5516 = scmp.le.s32.totalorder 2, %s25
      // Predicated region
      $region73: #{tpu_custom_call.1} parent=5 // pred_check
        %p5517 = pneg %p5516
      $region74: #{tpu_custom_call.1} parent=5 // pred_check_branch
        %5519 = sbr.rel (%p5517) target = $region76
      $region75: #{tpu_custom_call.1} parent=5 // pred_region
        %s5520 = ssub.s32 %s25, 2
        // Predicated region
        $region77: #{tpu_custom_call.1} parent=75 // pred_check
          %p5521 = pneg %p271
        $region78: #{tpu_custom_call.1} parent=75 // pred_check_branch
          %5523 = sbr.rel (%p5521) target = $region80
        $region79: #{tpu_custom_call.1} parent=75 // pred_region
          %s5524 = sand.u32 %s256, 1
          %s5525 = scalar_lea.sflag [#allocation4], %s5524
          %s5526 = sand.u32 %s256, 1
          %s5527 = smul.addr %s5526, 64
          %s5528 = scalar_lea.vmem [#allocation7], %s5527
          %5529 = dma.done %s5525, 1024
        $region80: #{tpu_custom_call.1} parent=75 // pred_fallthru
          _
        // Predicated region
        $region81: #{tpu_custom_call.1} parent=75 // pred_check
          %p5530 = pneg %p299
        $region82: #{tpu_custom_call.1} parent=75 // pred_check_branch
          %5532 = sbr.rel (%p5530) target = $region84
        $region83: #{tpu_custom_call.1} parent=75 // pred_region
          %s5533 = sand.u32 %s284, 1
          %s5534 = scalar_lea.sflag [#allocation9], %s5533
          %s5535 = sand.u32 %s284, 1
          %s5536 = smul.addr %s5535, 64
          %s5537 = scalar_lea.vmem [#allocation8], %s5536
          %5538 = dma.done %s5534, 1024
        $region84: #{tpu_custom_call.1} parent=75 // pred_fallthru
          _
      $region76: #{tpu_custom_call.1} parent=5 // pred_fallthru
        _
    $region6: #{tpu_custom_call.1} parent=1 // loop_footer
      %s29 = sadd.s32 1, %s25
    $region7: #{tpu_custom_call.1} parent=1 // loop_footer_branch
      %24 = sbr.rel target = $region3
    $region8: #{tpu_custom_call.1} parent=1 // loop_exit
      _
    %5539 = vsyncpa [#allocation3], 1
    %s5540 = scalar_lea.sflag [#allocation3], 1
    %5541 = vsyncpa %s5540, 1
    %5542 = vsyncpa [#allocation6], 1
    %5543 = vsyncpa [#allocation4], 1
    %s5544 = scalar_lea.sflag [#allocation4], 1
    %5545 = vsyncpa %s5544, 1
    %5546 = vsyncpa [#allocation9], 1
    %s5547 = scalar_lea.sflag [#allocation9], 1
    %5548 = vsyncpa %s5547, 1

</llo_original>
